<compile_context>
chip_gen: v7x
topology: tpu7x:2x2x1
jax: 0.10.0
libtpu: 0.0.40
codegen_flags: <defaults>
</compile_context>

<pallas_src>
import functools

import jax
import jax.numpy as jnp
from jax import lax
from jax.experimental import pallas as pl
from jax.experimental.pallas import tpu as pltpu

INPUT_DIM = 48      # self.input_dim
INPUT_DIM1 = 1280   # self.input_dim1
INPUT_DIM2 = 192    # self.input_dim2
FEATURE_DIM = 32    # feature_dim (constructor arg, chosen small)
NBLK = 2            # grid steps over the low1 hidden dim (block width 640)

# ---- packed-parameter slab layouts (static offsets used inside the kernel) --
# Small bf16 weight slab: packed along sublanes, every sub-block starts at
# lane 0 and at a row offset that is a multiple of 16 (bf16 sublane tile).
_R_L2W1 = 0                             # low2 w1 (192, 192)
_R_L2W2 = INPUT_DIM2                    # low2 w2 (192, F)
_R_PHW1 = 2 * INPUT_DIM2                # ph   w1 (48, 48)
_R_PHW2 = 2 * INPUT_DIM2 + INPUT_DIM    # ph   w2 (48, F)
_W_SLAB_ROWS = 2 * (INPUT_DIM2 + INPUT_DIM)   # 480
_W_SLAB_COLS = INPUT_DIM2                     # 192

# Single-row f32 bias slab; every bias starts at a 128-lane-aligned offset.
_C_PHB1, _C_PHB2, _C_L2B1, _C_L2B2, _C_L1B2 = 0, 128, 256, 512, 640
_BIAS_SLAB_COLS = 768


# ----------------------------------------------------------------------------
# In-kernel helpers
# ----------------------------------------------------------------------------
def _l2_normalize(y):
    # F.normalize(dim=1): y / max(||y||, 1e-12)  ==  y * rsqrt(max(||y||^2, 1e-24))
    ss = jnp.sum(y * y, axis=1, keepdims=True)
    return y * lax.rsqrt(jnp.maximum(ss, 1e-24))


def _head(x_bf16, w1, b1, w2, b2):
    """Linear -> ReLU -> Linear -> F.normalize(dim=1); bf16 weights, f32 acc."""
    h = jnp.dot(x_bf16, w1, preferred_element_type=jnp.float32) + b1
    h = jnp.maximum(h, 0.0).astype(jnp.bfloat16)
    y = jnp.dot(h, w2, preferred_element_type=jnp.float32) + b2
    return _l2_normalize(y)


def _gram(c, batch):
    """C1 = c1 @ c1^T, C2 = c2 @ c2^T without materialising a transpose."""
    dn = (((1,), (1,)), ((), ()))   # contract the feature axis of both operands
    C1 = lax.dot_general(c[:batch], c[:batch], dn, preferred_element_type=jnp.float32)
    C2 = lax.dot_general(c[batch:], c[batch:], dn, preferred_element_type=jnp.float32)
    return C1, C2


def _block_diag_apply(C1, C2, z, batch):
    top = jnp.dot(C1, z[:batch], preferred_element_type=jnp.float32)
    bot = jnp.dot(C2, z[batch:], preferred_element_type=jnp.float32)
    return jnp.concatenate([top, bot], axis=0)


# ----------------------------------------------------------------------------
# Fused, pipelined kernel
# ----------------------------------------------------------------------------
def _mlp_fused_kernel(h_ref, z3_ref, c_ref, w_ref, b_ref, l1b1_ref, z5_ref,
                      l1w1_ref, l1w2_ref, out_ref, acc_ref, *, batch, feat):
    j = pl.program_id(0)
    last = pl.num_programs(0) - 1

    # ---- low1 head: blocked over its 1280-wide hidden dim (every step) ------
    @pl.when(j == 0)
    def _init_acc():
        acc_ref[...] = jnp.zeros_like(acc_ref)

    hid = jnp.dot(z5_ref[...], l1w1_ref[...], preferred_element_type=jnp.float32)
    hid = jnp.maximum(hid + l1b1_ref[...], 0.0).astype(jnp.bfloat16)
    acc_ref[...] += jnp.dot(hid, l1w2_ref[...], preferred_element_type=jnp.float32)

    # ---- step 0: tiny heads + Gram, hidden under the next weight-block DMA --
    @pl.when(j == 0)
    def _small_heads():
        out_ref[...] = jnp.zeros_like(out_ref)

        ph_w1 = w_ref[_R_PHW1:_R_PHW1 + INPUT_DIM, 0:INPUT_DIM]
        ph_w2 = w_ref[_R_PHW2:_R_PHW2 + INPUT_DIM, 0:feat]
        l2_w1 = w_ref[_R_L2W1:_R_L2W1 + INPUT_DIM2, 0:INPUT_DIM2]
        l2_w2 = w_ref[_R_L2W2:_R_L2W2 + INPUT_DIM2, 0:feat]

        z_ph = _head(h_ref[...], ph_w1,
                     b_ref[:, _C_PHB1:_C_PHB1 + INPUT_DIM],
                     ph_w2,
                     b_ref[:, _C_PHB2:_C_PHB2 + feat])
        z_l2 = _head(z3_ref[...], l2_w1,
                     b_ref[:, _C_L2B1:_C_L2B1 + INPUT_DIM2],
                     l2_w2,
                     b_ref[:, _C_L2B2:_C_L2B2 + feat])

        C1, C2 = _gram(c_ref[...], batch)
        zc_l2 = _block_diag_apply(C1, C2, z_l2, batch)

        out_ref[:, 0:feat] = z_ph
        out_ref[:, feat:2 * feat] = z_l2
        out_ref[:, 2 * feat:3 * feat] = zc_l2
        out_ref[:, 5 * feat:5 * feat + batch] = jnp.concatenate([C1, C2], axis=0)

    # ---- last step: finish low1 head, apply Gram, pack ----------------------
    @pl.when(j == last)
    def _finalize():
        y = acc_ref[...] + b_ref[:, _C_L1B2:_C_L1B2 + feat]
        z_l1 = _l2_normalize(y)
        C1, C2 = _gram(c_ref[...], batch)      # trivial (B x 48) recompute
        zc_l1 = _block_diag_apply(C1, C2, z_l1, batch)
        out_ref[:, 3 * feat:4 * feat] = z_l1
        out_ref[:, 4 * feat:5 * feat] = zc_l1


def mlp_fused(h_bf16, z3_bf16, z5_bf16, c_f32, packed, *, feat, nblk=NBLK):
    two_b = h_bf16.shape[0]
    b = two_b // 2
    pack_w = ((5 * feat + b + 127) // 128) * 128   # lane-dense packed slab width

    assert INPUT_DIM1 % nblk == 0
    blk = INPUT_DIM1 // nblk
    assert blk % 128 == 0, "low1 weight block width must be a lane multiple"

    grid_spec = pltpu.PrefetchScalarGridSpec(
        num_scalar_prefetch=0,
        grid=(nblk,),
        in_specs=[
            pl.BlockSpec((two_b, INPUT_DIM), lambda j: (0, 0)),            # h (bf16)
            pl.BlockSpec((two_b, INPUT_DIM2), lambda j: (0, 0)),           # z3 (bf16)
            pl.BlockSpec((two_b, INPUT_DIM), lambda j: (0, 0)),            # c (f32)
            pl.BlockSpec((_W_SLAB_ROWS, _W_SLAB_COLS), lambda j: (0, 0)),  # small weights
            pl.BlockSpec((1, _BIAS_SLAB_COLS), lambda j: (0, 0)),          # biases
            pl.BlockSpec((1, blk), lambda j: (0, j)),                      # l1_b1 block
            pl.BlockSpec((two_b, INPUT_DIM1), lambda j: (0, 0)),           # z5 (bf16)
            pl.BlockSpec((INPUT_DIM1, blk), lambda j: (0, j)),             # l1_w1 block
            pl.BlockSpec((blk, feat), lambda j: (j, 0)),                   # l1_w2 block
        ],
        out_specs=pl.BlockSpec((two_b, pack_w), lambda j: (0, 0)),
        scratch_shapes=[pltpu.VMEM((two_b, feat), jnp.float32)],
    )
    return pl.pallas_call(
        functools.partial(_mlp_fused_kernel, batch=b, feat=feat),
        out_shape=jax.ShapeDtypeStruct((two_b, pack_w), jnp.float32),
        grid_spec=grid_spec,
        compiler_params=pltpu.CompilerParams(dimension_semantics=("arbitrary",)),
    )(h_bf16, z3_bf16, c_f32, packed["w_slab"], packed["b_slab"],
      packed["l1_b1"], z5_bf16, packed["l1_w1"], packed["l1_w2"])


# ----------------------------------------------------------------------------
# Deterministic parameter construction (synthetic, matching nn.Linear shapes)
# ----------------------------------------------------------------------------
def _make_proj_head(key, in_dim, out_dim):
    k1, k2, k3, k4 = jax.random.split(key, 4)
    s = 1.0 / jnp.sqrt(jnp.float32(in_dim))
    # weights stored (in, out) in bf16 (equivalent to x @ W.T with torch W=(out,in));
    # biases stored (1, out) f32 so everything in the kernel stays 2-D.
    w1 = jax.random.uniform(k1, (in_dim, in_dim), jnp.float32, -s, s).astype(jnp.bfloat16)
    b1 = jax.random.uniform(k2, (1, in_dim), jnp.float32, -s, s)
    w2 = jax.random.uniform(k3, (in_dim, out_dim), jnp.float32, -s, s).astype(jnp.bfloat16)
    b2 = jax.random.uniform(k4, (1, out_dim), jnp.float32, -s, s)
    return (w1, b1, w2, b2)


def pack_mlp_params(mlp_params):
    """Consolidate the 10 small parameter tensors into one bf16 weight slab and
    one f32 bias slab (fewer DMA descriptors, no per-bias sublane padding).
    The low1 weights stay separate so the kernel can grid-block them."""
    ph_w1, ph_b1, ph_w2, ph_b2 = mlp_params["Projection_head"]
    l2_w1, l2_b1, l2_w2, l2_b2 = mlp_params["low2_Projection_head"]
    l1_w1, l1_b1, l1_w2, l1_b2 = mlp_params["low1_Projection_head"]
    feat = ph_w2.shape[1]
    assert feat <= 128, "bias-slab layout assumes feature_dim <= 128"

    w_slab = jnp.zeros((_W_SLAB_ROWS, _W_SLAB_COLS), jnp.bfloat16)
    w_slab = w_slab.at[_R_L2W1:_R_L2W1 + INPUT_DIM2, :INPUT_DIM2].set(l2_w1)
    w_slab = w_slab.at[_R_L2W2:_R_L2W2 + INPUT_DIM2, :feat].set(l2_w2)
    w_slab = w_slab.at[_R_PHW1:_R_PHW1 + INPUT_DIM, :INPUT_DIM].set(ph_w1)
    w_slab = w_slab.at[_R_PHW2:_R_PHW2 + INPUT_DIM, :feat].set(ph_w2)

    b_slab = jnp.zeros((1, _BIAS_SLAB_COLS), jnp.float32)
    b_slab = b_slab.at[:, _C_PHB1:_C_PHB1 + INPUT_DIM].set(ph_b1)
    b_slab = b_slab.at[:, _C_PHB2:_C_PHB2 + feat].set(ph_b2)
    b_slab = b_slab.at[:, _C_L2B1:_C_L2B1 + INPUT_DIM2].set(l2_b1)
    b_slab = b_slab.at[:, _C_L2B2:_C_L2B2 + feat].set(l2_b2)
    b_slab = b_slab.at[:, _C_L1B2:_C_L1B2 + feat].set(l1_b2)

    return {"w_slab": w_slab, "b_slab": b_slab,
            "l1_w1": l1_w1, "l1_b1": l1_b1, "l1_w2": l1_w2}


def _make_convae_params(key, in_flat):
    k1, k2, k3, k4 = jax.random.split(key, 4)
    sc = 0.05
    return {
        "Wh": sc * jax.random.normal(k1, (in_flat, INPUT_DIM), jnp.float32),
        "Wc": sc * jax.random.normal(k2, (in_flat, INPUT_DIM), jnp.float32),
        "W3": sc * jax.random.normal(k3, (in_flat, INPUT_DIM2), jnp.float32),
        "W5": sc * jax.random.normal(k4, (in_flat, INPUT_DIM1), jnp.float32),
    }


def convae_apply(params, x):
    # TODO(synk): stand-in for the external ConvAE encoder (plain-JAX glue).
    xf = x.reshape(x.shape[0], -1)
    z = x                         # "reconstruction" slot
    h = xf @ params["Wh"]         # -> (*, 48)
    c = xf @ params["Wc"]         # -> (*, 48)
    z3 = xf @ params["W3"]        # -> (*, 192)
    z5 = xf @ params["W5"]        # -> (*, 1280)
    return z, h, c, z3, z5


# ----------------------------------------------------------------------------
# MLP.forward
# ----------------------------------------------------------------------------
def mlp_forward(packed_params, convae_params, x_i, x_j, feature_dim):
    b = x_i.shape[0]
    f = feature_dim

    # Single encoder pass on the stacked batch (stand-in is linear => identical
    # to two separate passes).
    x_stack = jnp.concatenate([x_i, x_j], axis=0)
    z_stack, h_stack, c_stack, z3_stack, z5_stack = convae_apply(convae_params, x_stack)

    z1, z2 = z_stack[:b], z_stack[b:]
    h_1, h_2 = h_stack[:b], h_stack[b:]
    c1, c2 = c_stack[:b], c_stack[b:]

    # Activations fed to the projection heads are pre-cast to bf16 (halves DMA,
    # removes in-kernel casts); c stays f32 for the Gram matrices.
    h_flat = h_stack.reshape(2 * b, -1).astype(jnp.bfloat16)
    z3_flat = z3_stack.reshape(2 * b, -1).astype(jnp.bfloat16)
    z5_flat = z5_stack.reshape(2 * b, -1).astype(jnp.bfloat16)
    c_flat = c_stack.reshape(2 * b, -1)

    packed_out = mlp_fused(h_flat, z3_flat, z5_flat, c_flat, packed_params, feat=f)

    z_ph = packed_out[:, 0 * f:1 * f]
    z_l2 = packed_out[:, 1 * f:2 * f]
    zc_l2 = packed_out[:, 2 * f:3 * f]
    z_l1 = packed_out[:, 3 * f:4 * f]
    zc_l1 = packed_out[:, 4 * f:5 * f]
    Cs = packed_out[:, 5 * f:5 * f + b]

    z_i, z_j = z_ph[:b], z_ph[b:]
    z3_i, z4_j = z_l2[:b], z_l2[b:]
    z5_i, z6_j = z_l1[:b], z_l1[b:]
    z3c, z4c = zc_l2[:b], zc_l2[b:]
    z5c, z6c = zc_l1[:b], zc_l1[b:]
    C1, C2 = Cs[:b], Cs[b:]

    return (z_i, z_j, h_1, h_2, z1, z2, c1, c2, C1, C2,
            z3c, z4c, z5c, z6c, z3_i, z4_j, z5_i, z6_j)


if __name__ == "__main__":
    key = jax.random.PRNGKey(0)
    k_xi, k_xj, k_ae, k_ph, k_l1, k_l2 = jax.random.split(key, 6)

    B, C, H, W = 8, 1, 16, 16          # small synthetic image batch (NCHW)
    x_i = jax.random.normal(k_xi, (B, C, H, W), jnp.float32)
    x_j = jax.random.normal(k_xj, (B, C, H, W), jnp.float32)

    convae_params = _make_convae_params(k_ae, C * H * W)
    mlp_params = {
        "Projection_head": _make_proj_head(k_ph, INPUT_DIM, FEATURE_DIM),
        "low1_Projection_head": _make_proj_head(k_l1, INPUT_DIM1, FEATURE_DIM),
        "low2_Projection_head": _make_proj_head(k_l2, INPUT_DIM2, FEATURE_DIM),
    }
    packed_params = pack_mlp_params(mlp_params)

    outs = jax.block_until_ready(
        mlp_forward(packed_params, convae_params, x_i, x_j, FEATURE_DIM))

    (z_i, z_j, h_1, h_2, z1, z2, c1, c2, C1, C2,
     z3c, z4c, z5c, z6c, z3_i, z4_j, z5_i, z6_j) = outs

    # --- light sanity checks: shapes / normalization / Gram application ------
    assert z_i.shape == (B, FEATURE_DIM) and z_j.shape == (B, FEATURE_DIM)
    assert C1.shape == (B, B) and C2.shape == (B, B)
    assert z5c.shape == (B, FEATURE_DIM) and z3c.shape == (B, FEATURE_DIM)
    for z in (z_i, z_j, z3_i, z4_j, z5_i, z6_j):
        assert bool(jnp.allclose(jnp.linalg.norm(z, axis=1), 1.0, atol=1e-4))
    ref_z3c = jnp.matmul(C1, z3_i, precision=jax.lax.Precision.HIGHEST)
    ref_z6c = jnp.matmul(C2, z6_j, precision=jax.lax.Precision.HIGHEST)
    assert bool(jnp.allclose(z3c, ref_z3c, atol=2e-2, rtol=2e-2))
    assert bool(jnp.allclose(z6c, ref_z6c, atol=2e-2, rtol=2e-2))

    # --- pure-JAX reference for the blocked low1 head (same bf16 weights) ----
    x_stack = jnp.concatenate([x_i, x_j], axis=0)
    _, _, _, _, z5_stack = convae_apply(convae_params, x_stack)
    z5_bf = z5_stack.astype(jnp.bfloat16).astype(jnp.float32)
    l1_w1f = mlp_params["low1_Projection_head"][0].astype(jnp.float32)
    l1_b1 = mlp_params["low1_Projection_head"][1]
    l1_w2f = mlp_params["low1_Projection_head"][2].astype(jnp.float32)
    l1_b2 = mlp_params["low1_Projection_head"][3]
    hid_ref = jnp.maximum(z5_bf @ l1_w1f + l1_b1, 0.0)
    y_ref = hid_ref @ l1_w2f + l1_b2
    zl1_ref = y_ref / jnp.maximum(jnp.linalg.norm(y_ref, axis=1, keepdims=True), 1e-12)
    zl1_got = jnp.concatenate([z5_i, z6_j], axis=0)
    assert bool(jnp.allclose(zl1_got, zl1_ref, atol=2e-2, rtol=2e-2))

    print("KERNEL_OK")
</pallas_src>

<mosaic_0001>
module attributes {stable_mosaic.version = 11 : i64} {
  func.func @_mlp_fused_kernel(%arg0: i32, %arg1: memref<16x48xbf16, #tpu.memory_space<vmem>>, %arg2: memref<16x192xbf16, #tpu.memory_space<vmem>>, %arg3: memref<16x48xf32, #tpu.memory_space<vmem>>, %arg4: memref<480x192xbf16, #tpu.memory_space<vmem>>, %arg5: memref<1x768xf32, #tpu.memory_space<vmem>>, %arg6: memref<1x640xf32, #tpu.memory_space<vmem>>, %arg7: memref<16x1280xbf16, #tpu.memory_space<vmem>>, %arg8: memref<1280x640xbf16, #tpu.memory_space<vmem>>, %arg9: memref<640x32xbf16, #tpu.memory_space<vmem>>, %arg10: memref<16x256xf32, #tpu.memory_space<vmem>>, %arg11: memref<16x32xf32, #tpu.memory_space<vmem>>) attributes {dimension_semantics = [#tpu.dimension_semantics<arbitrary>], iteration_bounds = array<i64: 2>, scalar_prefetch = 0 : i64, scratch_operands = 1 : i64, tpu.core_type = #tpu.core_type<tc>, window_params = [{pipeline_mode = #tpu.pipeline_mode<synchronous>, transform_indices = @transform_0, window_bounds = array<i64: 16, 48>}, {pipeline_mode = #tpu.pipeline_mode<synchronous>, transform_indices = @transform_1, window_bounds = array<i64: 16, 192>}, {pipeline_mode = #tpu.pipeline_mode<synchronous>, transform_indices = @transform_2, window_bounds = array<i64: 16, 48>}, {pipeline_mode = #tpu.pipeline_mode<synchronous>, transform_indices = @transform_3, window_bounds = array<i64: 480, 192>}, {pipeline_mode = #tpu.pipeline_mode<synchronous>, transform_indices = @transform_4, window_bounds = array<i64: 1, 768>}, {transform_indices = @transform_5, window_bounds = array<i64: 1, 640>}, {pipeline_mode = #tpu.pipeline_mode<synchronous>, transform_indices = @transform_6, window_bounds = array<i64: 16, 1280>}, {transform_indices = @transform_7, window_bounds = array<i64: 1280, 640>}, {transform_indices = @transform_8, window_bounds = array<i64: 640, 32>}, {pipeline_mode = #tpu.pipeline_mode<synchronous>, transform_indices = @transform_9, window_bounds = array<i64: 16, 256>}]} {
    %c0_i32 = arith.constant 0 : i32
    %0 = arith.cmpi eq, %arg0, %c0_i32 : i32
    %1 = arith.extui %0 : i1 to i32
    %c0_i32_0 = arith.constant 0 : i32
    %2 = arith.cmpi ne, %1, %c0_i32_0 : i32
    scf.if %2 {
      %cst_17 = arith.constant 0.000000e+00 : f32
      %23 = vector.broadcast %cst_17 : f32 to vector<16x32xf32>
      %c0_18 = arith.constant 0 : index
      %c0_19 = arith.constant 0 : index
      %24 = vector.load %arg11[%c0_18, %c0_19] : memref<16x32xf32, #tpu.memory_space<vmem>>, vector<16x32xf32>
      tpu.vector_store %arg11[%c0_18, %c0_19], %23 {strides = array<i32>} : memref<16x32xf32, #tpu.memory_space<vmem>>, vector<16x32xf32>,
    } else {
    }
    %c0 = arith.constant 0 : index
    %c0_1 = arith.constant 0 : index
    %3 = vector.load %arg7[%c0, %c0_1] : memref<16x1280xbf16, #tpu.memory_space<vmem>>, vector<16x1280xbf16>
    %c0_2 = arith.constant 0 : index
    %c0_3 = arith.constant 0 : index
    %4 = vector.load %arg8[%c0_2, %c0_3] : memref<1280x640xbf16, #tpu.memory_space<vmem>>, vector<1280x640xbf16>
    %cst = arith.constant dense<0.000000e+00> : vector<16x640xf32>
    %5 = tpu.matmul %3, %4, %cst {dimension_numbers = #tpu.dot_dimension_numbers<[1], [0], [0], [1], [0, 0, 1, 1], [], []>} : vector<16x1280xbf16>, vector<1280x640xbf16>, vector<16x640xf32> -> vector<16x640xf32>
    %c0_4 = arith.constant 0 : index
    %c0_5 = arith.constant 0 : index
    %6 = vector.load %arg6[%c0_4, %c0_5] : memref<1x640xf32, #tpu.memory_space<vmem>>, vector<1x640xf32>
    %7 = vector.broadcast %6 : vector<1x640xf32> to vector<16x640xf32>
    %8 = arith.addf %5, %7 : vector<16x640xf32>
    %cst_6 = arith.constant 0.000000e+00 : f32
    %9 = vector.broadcast %cst_6 : f32 to vector<16x640xf32>
    %10 = arith.maximumf %8, %9 : vector<16x640xf32>
    %11 = arith.truncf %10 : vector<16x640xf32> to vector<16x640xbf16>
    %c0_7 = arith.constant 0 : index
    %c0_8 = arith.constant 0 : index
    %12 = vector.load %arg11[%c0_7, %c0_8] : memref<16x32xf32, #tpu.memory_space<vmem>>, vector<16x32xf32>
    %c0_9 = arith.constant 0 : index
    %c0_10 = arith.constant 0 : index
    %13 = vector.load %arg9[%c0_9, %c0_10] : memref<640x32xbf16, #tpu.memory_space<vmem>>, vector<640x32xbf16>
    %cst_11 = arith.constant dense<0.000000e+00> : vector<16x32xf32>
    %14 = tpu.matmul %11, %13, %cst_11 {dimension_numbers = #tpu.dot_dimension_numbers<[1], [0], [0], [1], [0, 0, 1, 1], [], []>} : vector<16x640xbf16>, vector<640x32xbf16>, vector<16x32xf32> -> vector<16x32xf32>
    %15 = arith.addf %12, %14 : vector<16x32xf32>
    %c0_12 = arith.constant 0 : index
    %c0_13 = arith.constant 0 : index
    %16 = vector.load %arg11[%c0_12, %c0_13] : memref<16x32xf32, #tpu.memory_space<vmem>>, vector<16x32xf32>
    tpu.vector_store %arg11[%c0_12, %c0_13], %15 {strides = array<i32>} : memref<16x32xf32, #tpu.memory_space<vmem>>, vector<16x32xf32>,
    %c0_i32_14 = arith.constant 0 : i32
    %17 = arith.cmpi eq, %arg0, %c0_i32_14 : i32
    %18 = arith.extui %17 : i1 to i32
    %c0_i32_15 = arith.constant 0 : i32
    %19 = arith.cmpi ne, %18, %c0_i32_15 : i32
    scf.if %19 {
      %cst_17 = arith.constant 0.000000e+00 : f32
      %23 = vector.broadcast %cst_17 : f32 to vector<16x256xf32>
      %c0_18 = arith.constant 0 : index
      %c0_19 = arith.constant 0 : index
      %24 = vector.load %arg10[%c0_18, %c0_19] : memref<16x256xf32, #tpu.memory_space<vmem>>, vector<16x256xf32>
      tpu.vector_store %arg10[%c0_18, %c0_19], %23 {strides = array<i32>} : memref<16x256xf32, #tpu.memory_space<vmem>>, vector<16x256xf32>,
      %c384 = arith.constant 384 : index
      %c0_20 = arith.constant 0 : index
      %25 = vector.load %arg4[%c384, %c0_20] : memref<480x192xbf16, #tpu.memory_space<vmem>>, vector<48x48xbf16>
      %c432 = arith.constant 432 : index
      %c0_21 = arith.constant 0 : index
      %26 = vector.load %arg4[%c432, %c0_21] : memref<480x192xbf16, #tpu.memory_space<vmem>>, vector<48x32xbf16>
      %c0_22 = arith.constant 0 : index
      %c0_23 = arith.constant 0 : index
      %27 = vector.load %arg4[%c0_22, %c0_23] : memref<480x192xbf16, #tpu.memory_space<vmem>>, vector<192x192xbf16>
      %c192 = arith.constant 192 : index
      %c0_24 = arith.constant 0 : index
      %28 = vector.load %arg4[%c192, %c0_24] : memref<480x192xbf16, #tpu.memory_space<vmem>>, vector<192x32xbf16>
      %c0_25 = arith.constant 0 : index
      %c0_26 = arith.constant 0 : index
      %29 = vector.load %arg1[%c0_25, %c0_26] : memref<16x48xbf16, #tpu.memory_space<vmem>>, vector<16x48xbf16>
      %c0_27 = arith.constant 0 : index
      %c0_28 = arith.constant 0 : index
      %30 = vector.load %arg5[%c0_27, %c0_28] : memref<1x768xf32, #tpu.memory_space<vmem>>, vector<1x48xf32>
      %c0_29 = arith.constant 0 : index
      %c128 = arith.constant 128 : index
      %31 = vector.load %arg5[%c0_29, %c128] : memref<1x768xf32, #tpu.memory_space<vmem>>, vector<1x32xf32>
      %cst_30 = arith.constant dense<0.000000e+00> : vector<16x48xf32>
      %32 = tpu.matmul %29, %25, %cst_30 {dimension_numbers = #tpu.dot_dimension_numbers<[1], [0], [0], [1], [0, 0, 1, 1], [], []>} : vector<16x48xbf16>, vector<48x48xbf16>, vector<16x48xf32> -> vector<16x48xf32>
      %33 = vector.broadcast %30 : vector<1x48xf32> to vector<16x48xf32>
      %34 = arith.addf %32, %33 : vector<16x48xf32>
      %cst_31 = arith.constant 0.000000e+00 : f32
      %35 = vector.broadcast %cst_31 : f32 to vector<16x48xf32>
      %36 = arith.maximumf %34, %35 : vector<16x48xf32>
      %37 = arith.truncf %36 : vector<16x48xf32> to vector<16x48xbf16>
      %cst_32 = arith.constant dense<0.000000e+00> : vector<16x32xf32>
      %38 = tpu.matmul %37, %26, %cst_32 {dimension_numbers = #tpu.dot_dimension_numbers<[1], [0], [0], [1], [0, 0, 1, 1], [], []>} : vector<16x48xbf16>, vector<48x32xbf16>, vector<16x32xf32> -> vector<16x32xf32>
      %39 = vector.broadcast %31 : vector<1x32xf32> to vector<16x32xf32>
      %40 = arith.addf %38, %39 : vector<16x32xf32>
      %41 = arith.mulf %40, %40 : vector<16x32xf32>
      %cst_33 = arith.constant dense<0.000000e+00> : vector<16xf32>
      %42 = vector.multi_reduction <add>, %41, %cst_33 [1] : vector<16x32xf32> to vector<16xf32>
      %43 = vector.shape_cast %42 : vector<16xf32> to vector<16x1xf32>
      %cst_34 = arith.constant 1.000000e-24 : f32
      %44 = vector.broadcast %cst_34 : f32 to vector<16x1xf32>
      %45 = arith.maximumf %43, %44 : vector<16x1xf32>
      %46 = math.rsqrt %45 : vector<16x1xf32>
      %47 = vector.broadcast %46 : vector<16x1xf32> to vector<16x32xf32>
      %48 = arith.mulf %40, %47 : vector<16x32xf32>
      %c0_35 = arith.constant 0 : index
      %c0_36 = arith.constant 0 : index
      %49 = vector.load %arg2[%c0_35, %c0_36] : memref<16x192xbf16, #tpu.memory_space<vmem>>, vector<16x192xbf16>
      %c0_37 = arith.constant 0 : index
      %c256 = arith.constant 256 : index
      %50 = vector.load %arg5[%c0_37, %c256] : memref<1x768xf32, #tpu.memory_space<vmem>>, vector<1x192xf32>
      %c0_38 = arith.constant 0 : index
      %c512 = arith.constant 512 : index
      %51 = vector.load %arg5[%c0_38, %c512] : memref<1x768xf32, #tpu.memory_space<vmem>>, vector<1x32xf32>
      %cst_39 = arith.constant dense<0.000000e+00> : vector<16x192xf32>
      %52 = tpu.matmul %49, %27, %cst_39 {dimension_numbers = #tpu.dot_dimension_numbers<[1], [0], [0], [1], [0, 0, 1, 1], [], []>} : vector<16x192xbf16>, vector<192x192xbf16>, vector<16x192xf32> -> vector<16x192xf32>
      %53 = vector.broadcast %50 : vector<1x192xf32> to vector<16x192xf32>
      %54 = arith.addf %52, %53 : vector<16x192xf32>
      %cst_40 = arith.constant 0.000000e+00 : f32
      %55 = vector.broadcast %cst_40 : f32 to vector<16x192xf32>
      %56 = arith.maximumf %54, %55 : vector<16x192xf32>
      %57 = arith.truncf %56 : vector<16x192xf32> to vector<16x192xbf16>
      %cst_41 = arith.constant dense<0.000000e+00> : vector<16x32xf32>
      %58 = tpu.matmul %57, %28, %cst_41 {dimension_numbers = #tpu.dot_dimension_numbers<[1], [0], [0], [1], [0, 0, 1, 1], [], []>} : vector<16x192xbf16>, vector<192x32xbf16>, vector<16x32xf32> -> vector<16x32xf32>
      %59 = vector.broadcast %51 : vector<1x32xf32> to vector<16x32xf32>
      %60 = arith.addf %58, %59 : vector<16x32xf32>
      %61 = arith.mulf %60, %60 : vector<16x32xf32>
      %cst_42 = arith.constant dense<0.000000e+00> : vector<16xf32>
      %62 = vector.multi_reduction <add>, %61, %cst_42 [1] : vector<16x32xf32> to vector<16xf32>
      %63 = vector.shape_cast %62 : vector<16xf32> to vector<16x1xf32>
      %cst_43 = arith.constant 1.000000e-24 : f32
      %64 = vector.broadcast %cst_43 : f32 to vector<16x1xf32>
      %65 = arith.maximumf %63, %64 : vector<16x1xf32>
      %66 = math.rsqrt %65 : vector<16x1xf32>
      %67 = vector.broadcast %66 : vector<16x1xf32> to vector<16x32xf32>
      %68 = arith.mulf %60, %67 : vector<16x32xf32>
      %c0_44 = arith.constant 0 : index
      %c0_45 = arith.constant 0 : index
      %69 = vector.load %arg3[%c0_44, %c0_45] : memref<16x48xf32, #tpu.memory_space<vmem>>, vector<16x48xf32>
      %70 = vector.extract_strided_slice %69 {offsets = [0, 0], sizes = [8, 48], strides = [1, 1]} : vector<16x48xf32> to vector<8x48xf32>
      %71 = vector.extract_strided_slice %69 {offsets = [0, 0], sizes = [8, 48], strides = [1, 1]} : vector<16x48xf32> to vector<8x48xf32>
      %cst_46 = arith.constant dense<0.000000e+00> : vector<8x8xf32>
      %72 = tpu.matmul %70, %71, %cst_46 {dimension_numbers = #tpu.dot_dimension_numbers<[1], [1], [0], [0], [0, 0, 1, 0], [], []>} : vector<8x48xf32>, vector<8x48xf32>, vector<8x8xf32> -> vector<8x8xf32>
      %73 = vector.extract_strided_slice %69 {offsets = [8, 0], sizes = [8, 48], strides = [1, 1]} : vector<16x48xf32> to vector<8x48xf32>
      %74 = vector.extract_strided_slice %69 {offsets = [8, 0], sizes = [8, 48], strides = [1, 1]} : vector<16x48xf32> to vector<8x48xf32>
      %cst_47 = arith.constant dense<0.000000e+00> : vector<8x8xf32>
      %75 = tpu.matmul %73, %74, %cst_47 {dimension_numbers = #tpu.dot_dimension_numbers<[1], [1], [0], [0], [0, 0, 1, 0], [], []>} : vector<8x48xf32>, vector<8x48xf32>, vector<8x8xf32> -> vector<8x8xf32>
      %76 = vector.extract_strided_slice %68 {offsets = [0, 0], sizes = [8, 32], strides = [1, 1]} : vector<16x32xf32> to vector<8x32xf32>
      %cst_48 = arith.constant dense<0.000000e+00> : vector<8x32xf32>
      %77 = tpu.matmul %72, %76, %cst_48 {dimension_numbers = #tpu.dot_dimension_numbers<[1], [0], [0], [1], [0, 0, 1, 1], [], []>} : vector<8x8xf32>, vector<8x32xf32>, vector<8x32xf32> -> vector<8x32xf32>
      %78 = vector.extract_strided_slice %68 {offsets = [8, 0], sizes = [8, 32], strides = [1, 1]} : vector<16x32xf32> to vector<8x32xf32>
      %cst_49 = arith.constant dense<0.000000e+00> : vector<8x32xf32>
      %79 = tpu.matmul %75, %78, %cst_49 {dimension_numbers = #tpu.dot_dimension_numbers<[1], [0], [0], [1], [0, 0, 1, 1], [], []>} : vector<8x8xf32>, vector<8x32xf32>, vector<8x32xf32> -> vector<8x32xf32>
      %80 = tpu.concatenate %77, %79 in 0 : vector<8x32xf32>, vector<8x32xf32> -> vector<16x32xf32>
      %c0_50 = arith.constant 0 : index
      %c0_51 = arith.constant 0 : index
      %81 = vector.load %arg10[%c0_50, %c0_51] : memref<16x256xf32, #tpu.memory_space<vmem>>, vector<16x32xf32>
      tpu.vector_store %arg10[%c0_50, %c0_51], %48 {strides = array<i32>} : memref<16x256xf32, #tpu.memory_space<vmem>>, vector<16x32xf32>,
      %c0_52 = arith.constant 0 : index
      %c32 = arith.constant 32 : index
      %82 = vector.load %arg10[%c0_52, %c32] : memref<16x256xf32, #tpu.memory_space<vmem>>, vector<16x32xf32>
      tpu.vector_store %arg10[%c0_52, %c32], %68 {strides = array<i32>} : memref<16x256xf32, #tpu.memory_space<vmem>>, vector<16x32xf32>,
      %c0_53 = arith.constant 0 : index
      %c64 = arith.constant 64 : index
      %83 = vector.load %arg10[%c0_53, %c64] : memref<16x256xf32, #tpu.memory_space<vmem>>, vector<16x32xf32>
      tpu.vector_store %arg10[%c0_53, %c64], %80 {strides = array<i32>} : memref<16x256xf32, #tpu.memory_space<vmem>>, vector<16x32xf32>,
      %84 = tpu.concatenate %72, %75 in 0 : vector<8x8xf32>, vector<8x8xf32> -> vector<16x8xf32>
      %c0_54 = arith.constant 0 : index
      %c160 = arith.constant 160 : index
      %85 = vector.load %arg10[%c0_54, %c160] : memref<16x256xf32, #tpu.memory_space<vmem>>, vector<16x8xf32>
      tpu.vector_store %arg10[%c0_54, %c160], %84 {strides = array<i32>} : memref<16x256xf32, #tpu.memory_space<vmem>>, vector<16x8xf32>,
    } else {
    }
    %c1_i32 = arith.constant 1 : i32
    %20 = arith.cmpi eq, %arg0, %c1_i32 : i32
    %21 = arith.extui %20 : i1 to i32
    %c0_i32_16 = arith.constant 0 : i32
    %22 = arith.cmpi ne, %21, %c0_i32_16 : i32
    scf.if %22 {
      %c0_17 = arith.constant 0 : index
      %c0_18 = arith.constant 0 : index
      %23 = vector.load %arg11[%c0_17, %c0_18] : memref<16x32xf32, #tpu.memory_space<vmem>>, vector<16x32xf32>
      %c0_19 = arith.constant 0 : index
      %c640 = arith.constant 640 : index
      %24 = vector.load %arg5[%c0_19, %c640] : memref<1x768xf32, #tpu.memory_space<vmem>>, vector<1x32xf32>
      %25 = vector.broadcast %24 : vector<1x32xf32> to vector<16x32xf32>
      %26 = arith.addf %23, %25 : vector<16x32xf32>
      %27 = arith.mulf %26, %26 : vector<16x32xf32>
      %cst_20 = arith.constant dense<0.000000e+00> : vector<16xf32>
      %28 = vector.multi_reduction <add>, %27, %cst_20 [1] : vector<16x32xf32> to vector<16xf32>
      %29 = vector.shape_cast %28 : vector<16xf32> to vector<16x1xf32>
      %cst_21 = arith.constant 1.000000e-24 : f32
      %30 = vector.broadcast %cst_21 : f32 to vector<16x1xf32>
      %31 = arith.maximumf %29, %30 : vector<16x1xf32>
      %32 = math.rsqrt %31 : vector<16x1xf32>
      %33 = vector.broadcast %32 : vector<16x1xf32> to vector<16x32xf32>
      %34 = arith.mulf %26, %33 : vector<16x32xf32>
      %c0_22 = arith.constant 0 : index
      %c0_23 = arith.constant 0 : index
      %35 = vector.load %arg3[%c0_22, %c0_23] : memref<16x48xf32, #tpu.memory_space<vmem>>, vector<16x48xf32>
      %36 = vector.extract_strided_slice %35 {offsets = [0, 0], sizes = [8, 48], strides = [1, 1]} : vector<16x48xf32> to vector<8x48xf32>
      %37 = vector.extract_strided_slice %35 {offsets = [0, 0], sizes = [8, 48], strides = [1, 1]} : vector<16x48xf32> to vector<8x48xf32>
      %cst_24 = arith.constant dense<0.000000e+00> : vector<8x8xf32>
      %38 = tpu.matmul %36, %37, %cst_24 {dimension_numbers = #tpu.dot_dimension_numbers<[1], [1], [0], [0], [0, 0, 1, 0], [], []>} : vector<8x48xf32>, vector<8x48xf32>, vector<8x8xf32> -> vector<8x8xf32>
      %39 = vector.extract_strided_slice %35 {offsets = [8, 0], sizes = [8, 48], strides = [1, 1]} : vector<16x48xf32> to vector<8x48xf32>
      %40 = vector.extract_strided_slice %35 {offsets = [8, 0], sizes = [8, 48], strides = [1, 1]} : vector<16x48xf32> to vector<8x48xf32>
      %cst_25 = arith.constant dense<0.000000e+00> : vector<8x8xf32>
      %41 = tpu.matmul %39, %40, %cst_25 {dimension_numbers = #tpu.dot_dimension_numbers<[1], [1], [0], [0], [0, 0, 1, 0], [], []>} : vector<8x48xf32>, vector<8x48xf32>, vector<8x8xf32> -> vector<8x8xf32>
      %42 = vector.extract_strided_slice %34 {offsets = [0, 0], sizes = [8, 32], strides = [1, 1]} : vector<16x32xf32> to vector<8x32xf32>
      %cst_26 = arith.constant dense<0.000000e+00> : vector<8x32xf32>
      %43 = tpu.matmul %38, %42, %cst_26 {dimension_numbers = #tpu.dot_dimension_numbers<[1], [0], [0], [1], [0, 0, 1, 1], [], []>} : vector<8x8xf32>, vector<8x32xf32>, vector<8x32xf32> -> vector<8x32xf32>
      %44 = vector.extract_strided_slice %34 {offsets = [8, 0], sizes = [8, 32], strides = [1, 1]} : vector<16x32xf32> to vector<8x32xf32>
      %cst_27 = arith.constant dense<0.000000e+00> : vector<8x32xf32>
      %45 = tpu.matmul %41, %44, %cst_27 {dimension_numbers = #tpu.dot_dimension_numbers<[1], [0], [0], [1], [0, 0, 1, 1], [], []>} : vector<8x8xf32>, vector<8x32xf32>, vector<8x32xf32> -> vector<8x32xf32>
      %46 = tpu.concatenate %43, %45 in 0 : vector<8x32xf32>, vector<8x32xf32> -> vector<16x32xf32>
      %c0_28 = arith.constant 0 : index
      %c96 = arith.constant 96 : index
      %47 = vector.load %arg10[%c0_28, %c96] : memref<16x256xf32, #tpu.memory_space<vmem>>, vector<16x32xf32>
      tpu.vector_store %arg10[%c0_28, %c96], %34 {strides = array<i32>} : memref<16x256xf32, #tpu.memory_space<vmem>>, vector<16x32xf32>,
      %c0_29 = arith.constant 0 : index
      %c128 = arith.constant 128 : index
      %48 = vector.load %arg10[%c0_29, %c128] : memref<16x256xf32, #tpu.memory_space<vmem>>, vector<16x32xf32>
      tpu.vector_store %arg10[%c0_29, %c128], %46 {strides = array<i32>} : memref<16x256xf32, #tpu.memory_space<vmem>>, vector<16x32xf32>,
    } else {
    }
    return
  }
  func.func @transform_0(%arg0: i32) -> (i32, i32) {
    %c0_i32 = arith.constant 0 : i32
    %c0_i32_0 = arith.constant 0 : i32
    %c0_i32_1 = arith.constant 0 : i32
    return %c0_i32, %c0_i32_0 : i32, i32
  }
  func.func @transform_1(%arg0: i32) -> (i32, i32) {
    %c0_i32 = arith.constant 0 : i32
    %c0_i32_0 = arith.constant 0 : i32
    %c0_i32_1 = arith.constant 0 : i32
    return %c0_i32, %c0_i32_0 : i32, i32
  }
  func.func @transform_2(%arg0: i32) -> (i32, i32) {
    %c0_i32 = arith.constant 0 : i32
    %c0_i32_0 = arith.constant 0 : i32
    %c0_i32_1 = arith.constant 0 : i32
    return %c0_i32, %c0_i32_0 : i32, i32
  }
  func.func @transform_3(%arg0: i32) -> (i32, i32) {
    %c0_i32 = arith.constant 0 : i32
    %c0_i32_0 = arith.constant 0 : i32
    %c0_i32_1 = arith.constant 0 : i32
    return %c0_i32, %c0_i32_0 : i32, i32
  }
  func.func @transform_4(%arg0: i32) -> (i32, i32) {
    %c0_i32 = arith.constant 0 : i32
    %c0_i32_0 = arith.constant 0 : i32
    %c0_i32_1 = arith.constant 0 : i32
    return %c0_i32, %c0_i32_0 : i32, i32
  }
  func.func @transform_5(%arg0: i32) -> (i32, i32) {
    %c0_i32 = arith.constant 0 : i32
    %c0_i32_0 = arith.constant 0 : i32
    return %c0_i32, %arg0 : i32, i32
  }
  func.func @transform_6(%arg0: i32) -> (i32, i32) {
    %c0_i32 = arith.constant 0 : i32
    %c0_i32_0 = arith.constant 0 : i32
    %c0_i32_1 = arith.constant 0 : i32
    return %c0_i32, %c0_i32_0 : i32, i32
  }
  func.func @transform_7(%arg0: i32) -> (i32, i32) {
    %c0_i32 = arith.constant 0 : i32
    %c0_i32_0 = arith.constant 0 : i32
    return %c0_i32, %arg0 : i32, i32
  }
  func.func @transform_8(%arg0: i32) -> (i32, i32) {
    %c0_i32 = arith.constant 0 : i32
    %c0_i32_0 = arith.constant 0 : i32
    return %arg0, %c0_i32 : i32, i32
  }
  func.func @transform_9(%arg0: i32) -> (i32, i32) {
    %c0_i32 = arith.constant 0 : i32
    %c0_i32_0 = arith.constant 0 : i32
    %c0_i32_1 = arith.constant 0 : i32
    return %c0_i32, %c0_i32_0 : i32, i32
  }
}

</mosaic_0001>

<llo_original>
// kernel: tpu_custom_call.1
$region0: #{tpu_custom_call.1}
  #allocation0 [shape = 'u32[]', space=smem, size = 0x4, offset = 0x4, fixed_abs, tag = 'smem constant byte address 0x4 - core index']
  #allocation1 [shape = 'u32[144,128]{1,0:T(1,128)}', space=vmem, size = 0x12000, scoped, tag = 'internal scratch']
  #allocation2 [shape = 'f32[16,32]{1,0:T(8,128)}', space=vmem, size = 0x2000, scoped, tag = 'scratch operand']
  %s0 = inlined_call_operand.hbm [shape: bf16[16,48], index: 0, kind: input, shape index: {}]
  %s1 = inlined_call_operand.hbm [shape: bf16[16,192], index: 1, kind: input, shape index: {}]
  %s2 = inlined_call_operand.hbm [shape: f32[16,48], index: 2, kind: input, shape index: {}]
  %s3 = inlined_call_operand.vmem [shape: bf16[480,192], index: 3, kind: input, shape index: {}]
  %s4 = inlined_call_operand.hbm [shape: f32[1,768], index: 4, kind: input, shape index: {}]
  %s5 = inlined_call_operand.hbm [shape: f32[1,1280], index: 5, kind: input, shape index: {}]
  %s6 = inlined_call_operand.hbm [shape: bf16[16,1280], index: 6, kind: input, shape index: {}]
  %s7 = inlined_call_operand.hbm [shape: bf16[1280,1280], index: 7, kind: input, shape index: {}]
  %s8 = inlined_call_operand.vmem [shape: bf16[1280,32], index: 8, kind: input, shape index: {}]
  %s9 = inlined_call_operand.hbm [shape: f32[16,256], index: 9, kind: output, shape index: {}]
  %s10 = sld [smem:[#allocation0]]
  $region109: #{tpu_custom_call.1} parent=0
    _
  %s12 = ssub.s32 1, %s10
  %s13 = scalar_select 0, %s12, %s10
  $region1: #{tpu_custom_call.1} parent=0
    #allocation3 [shape = 'u8[4096]{0}', space=vmem, size = 0x1000, scoped, tag = 'input window, operand 0, single buffered']
    #allocation4 [shape = 's32[2]{0}', space=sflag, size = 0x8, scoped, tag = 'scoped memory for tpu_custom_call.1']
    #allocation5 [shape = 's32[2]{0}', space=sflag, size = 0x8, scoped, tag = 'scoped memory for tpu_custom_call.1']
    #allocation6 [shape = 'u8[8192]{0}', space=vmem, size = 0x2000, scoped, tag = 'input window, operand 1, single buffered']
    #allocation7 [shape = 's32[1]{0}', space=sflag, size = 0x4, scoped, tag = 'scoped memory for tpu_custom_call.1']
    #allocation8 [shape = 'u8[8192]{0}', space=vmem, size = 0x2000, scoped, tag = 'input window, operand 2, single buffered']
    #allocation9 [shape = 'u8[3072]{0}', space=vmem, size = 0xc00, scoped, tag = 'input window, operand 4, single buffered']
    #allocation10 [shape = 's32[1]{0}', space=sflag, size = 0x4, scoped, tag = 'scoped memory for tpu_custom_call.1']
    #allocation11 [shape = 'u8[5120]{0}', space=vmem, size = 0x1400, scoped, tag = 'input window, operand 5']
    #allocation12 [shape = 'u8[40960]{0}', space=vmem, size = 0xa000, scoped, tag = 'input window, operand 6, single buffered']
    #allocation13 [shape = 'u8[3276800]{0}', space=vmem, size = 0x320000, scoped, tag = 'input window, operand 7']
    #allocation14 [shape = 'u8[16384]{0}', space=vmem, size = 0x4000, scoped, tag = 'output window, operand 0, single buffered']
    %14 = vsyncpa [#allocation4], 0
    %15 = vsyncpa [#allocation7], 0
    %16 = vsyncpa [#allocation10], 0
    %17 = vsyncpa [#allocation5], 0
    loop: start=0, step=1, limit=4
    $region2: #{tpu_custom_call.1} parent=1 // loop_pre_header
      _
    $region3: #{tpu_custom_call.1} parent=1 // loop_header
      %s19 = sphi 0, %s23
      %p20 = scmp.ge.s32.totalorder %s19, 4
      %s27 = sphi 0, %s27
      %s29 = sphi 0, %s27
      %s30 = sphi 0, %s29
      %s44 = sphi 0, %s30
      %s48 = sphi 0, %s48
      %s50 = sphi 0, %s48
      %s51 = sphi 0, %s50
      %s65 = sphi 0, %s51
      %s69 = sphi 0, %s69
      %s71 = sphi 0, %s69
      %s72 = sphi 0, %s71
      %s86 = sphi 0, %s72
      %s90 = sphi 0, %s90
      %s92 = sphi 0, %s90
      %s93 = sphi 0, %s92
      %s107 = sphi 0, %s93
      %s111 = sphi 0, %s111
      %s113 = sphi 0, %s111
      %s114 = sphi 0, %s113
      %s128 = sphi 0, %s114
      %s134 = sphi 0, %s136
      %s137 = sphi 0, %s134
      %s138 = sphi 0, %s137
      %s154 = sphi 0, %s138
      %s158 = sphi 0, %s158
      %s160 = sphi 0, %s158
      %s161 = sphi 0, %s160
      %s175 = sphi 0, %s161
      %s181 = sphi 0, %s183
      %s184 = sphi 0, %s181
      %s185 = sphi 0, %s184
      %s201 = sphi 0, %s185
      %s207 = sphi 0, %s209
      %s210 = sphi 0, %s207
      %s211 = sphi 0, %s210
      %s227 = sphi 0, %s211
      %s231 = sphi 0, %s231
      %s233 = sphi 0, %s231
      %s234 = sphi 0, %s233
      %s248 = sphi 0, %s234
    $region4: #{tpu_custom_call.1} parent=1 // loop_header_branch
      %22 = sbr.rel (%p20) target = $region8
    $region5: #{tpu_custom_call.1} parent=1 // loop_body
      %s24 = ssub.s32 %s19, 1
      %s25 = ssub.s32 %s19, 2
      %s26 = sadd.s32 %s19, 1
      %s28 = sadd.s32 %s27, 1
      %p31 = scmp.eq.s32.totalorder %s19, 1
      %p32 = scmp.ne.s32.totalorder %s27, %s29
      %p33 = scmp.eq.s32.totalorder %s19, 0
      %p34 = por %p32, %p33
      %p35 = scmp.ne.s32.totalorder %s27, %s29
      %p36 = scmp.eq.s32.totalorder %s24, 1
      %p37 = por %p35, %p36
      %p38 = scmp.ne.s32.totalorder %s29, %s30
      %p39 = scmp.eq.s32.totalorder %s24, 0
      %p40 = por %p38, %p39
      %p41 = scmp.ne.s32.totalorder %s29, %s30
      %p42 = scmp.eq.s32.totalorder %s25, 1
      %p43 = por %p41, %p42
      %p45 = scmp.ne.s32.totalorder %s30, %s44
      %p46 = scmp.eq.s32.totalorder %s25, 0
      %p47 = por %p45, %p46
      %s49 = sadd.s32 %s48, 1
      %p52 = scmp.eq.s32.totalorder %s19, 1
      %p53 = scmp.ne.s32.totalorder %s48, %s50
      %p54 = scmp.eq.s32.totalorder %s19, 0
      %p55 = por %p53, %p54
      %p56 = scmp.ne.s32.totalorder %s48, %s50
      %p57 = scmp.eq.s32.totalorder %s24, 1
      %p58 = por %p56, %p57
      %p59 = scmp.ne.s32.totalorder %s50, %s51
      %p60 = scmp.eq.s32.totalorder %s24, 0
      %p61 = por %p59, %p60
      %p62 = scmp.ne.s32.totalorder %s50, %s51
      %p63 = scmp.eq.s32.totalorder %s25, 1
      %p64 = por %p62, %p63
      %p66 = scmp.ne.s32.totalorder %s51, %s65
      %p67 = scmp.eq.s32.totalorder %s25, 0
      %p68 = por %p66, %p67
      %s70 = sadd.s32 %s69, 1
      %p73 = scmp.eq.s32.totalorder %s19, 1
      %p74 = scmp.ne.s32.totalorder %s69, %s71
      %p75 = scmp.eq.s32.totalorder %s19, 0
      %p76 = por %p74, %p75
      %p77 = scmp.ne.s32.totalorder %s69, %s71
      %p78 = scmp.eq.s32.totalorder %s24, 1
      %p79 = por %p77, %p78
      %p80 = scmp.ne.s32.totalorder %s71, %s72
      %p81 = scmp.eq.s32.totalorder %s24, 0
      %p82 = por %p80, %p81
      %p83 = scmp.ne.s32.totalorder %s71, %s72
      %p84 = scmp.eq.s32.totalorder %s25, 1
      %p85 = por %p83, %p84
      %p87 = scmp.ne.s32.totalorder %s72, %s86
      %p88 = scmp.eq.s32.totalorder %s25, 0
      %p89 = por %p87, %p88
      %s91 = sadd.s32 %s90, 1
      %p94 = scmp.eq.s32.totalorder %s19, 1
      %p95 = scmp.ne.s32.totalorder %s90, %s92
      %p96 = scmp.eq.s32.totalorder %s19, 0
      %p97 = por %p95, %p96
      %p98 = scmp.ne.s32.totalorder %s90, %s92
      %p99 = scmp.eq.s32.totalorder %s24, 1
      %p100 = por %p98, %p99
      %p101 = scmp.ne.s32.totalorder %s92, %s93
      %p102 = scmp.eq.s32.totalorder %s24, 0
      %p103 = por %p101, %p102
      %p104 = scmp.ne.s32.totalorder %s92, %s93
      %p105 = scmp.eq.s32.totalorder %s25, 1
      %p106 = por %p104, %p105
      %p108 = scmp.ne.s32.totalorder %s93, %s107
      %p109 = scmp.eq.s32.totalorder %s25, 0
      %p110 = por %p108, %p109
      %s112 = sadd.s32 %s111, 1
      %p115 = scmp.eq.s32.totalorder %s19, 1
      %p116 = scmp.ne.s32.totalorder %s111, %s113
      %p117 = scmp.eq.s32.totalorder %s19, 0
      %p118 = por %p116, %p117
      %p119 = scmp.ne.s32.totalorder %s111, %s113
      %p120 = scmp.eq.s32.totalorder %s24, 1
      %p121 = por %p119, %p120
      %p122 = scmp.ne.s32.totalorder %s113, %s114
      %p123 = scmp.eq.s32.totalorder %s24, 0
      %p124 = por %p122, %p123
      %p125 = scmp.ne.s32.totalorder %s113, %s114
      %p126 = scmp.eq.s32.totalorder %s25, 1
      %p127 = por %p125, %p126
      %p129 = scmp.ne.s32.totalorder %s114, %s128
      %p130 = scmp.eq.s32.totalorder %s25, 0
      %p131 = por %p129, %p130
      %s132 = ssub.s32 %s19, %s26
      %p133 = scmp.eq.s32.totalorder %s132, 0
      %s135 = sadd.s32 %s134, 1
      %s136 = scalar_select %p133, %s134, %s135
      %p139 = pneg %p133
      %p140 = scmp.eq.s32.totalorder %s19, 1
      %p141 = por %p139, %p140
      %p142 = scmp.ne.s32.totalorder %s134, %s137
      %p143 = scmp.eq.s32.totalorder %s19, 0
      %p144 = por %p142, %p143
      %p145 = scmp.ne.s32.totalorder %s134, %s137
      %p146 = scmp.eq.s32.totalorder %s24, 1
      %p147 = por %p145, %p146
      %p148 = scmp.ne.s32.totalorder %s137, %s138
      %p149 = scmp.eq.s32.totalorder %s24, 0
      %p150 = por %p148, %p149
      %p151 = scmp.ne.s32.totalorder %s137, %s138
      %p152 = scmp.eq.s32.totalorder %s25, 1
      %p153 = por %p151, %p152
      %p155 = scmp.ne.s32.totalorder %s138, %s154
      %p156 = scmp.eq.s32.totalorder %s25, 0
      %p157 = por %p155, %p156
      %s159 = sadd.s32 %s158, 1
      %p162 = scmp.eq.s32.totalorder %s19, 1
      %p163 = scmp.ne.s32.totalorder %s158, %s160
      %p164 = scmp.eq.s32.totalorder %s19, 0
      %p165 = por %p163, %p164
      %p166 = scmp.ne.s32.totalorder %s158, %s160
      %p167 = scmp.eq.s32.totalorder %s24, 1
      %p168 = por %p166, %p167
      %p169 = scmp.ne.s32.totalorder %s160, %s161
      %p170 = scmp.eq.s32.totalorder %s24, 0
      %p171 = por %p169, %p170
      %p172 = scmp.ne.s32.totalorder %s160, %s161
      %p173 = scmp.eq.s32.totalorder %s25, 1
      %p174 = por %p172, %p173
      %p176 = scmp.ne.s32.totalorder %s161, %s175
      %p177 = scmp.eq.s32.totalorder %s25, 0
      %p178 = por %p176, %p177
      %s179 = ssub.s32 %s19, %s26
      %p180 = scmp.eq.s32.totalorder %s179, 0
      %s182 = sadd.s32 %s181, 1
      %s183 = scalar_select %p180, %s181, %s182
      %p186 = pneg %p180
      %p187 = scmp.eq.s32.totalorder %s19, 1
      %p188 = por %p186, %p187
      %p189 = scmp.ne.s32.totalorder %s181, %s184
      %p190 = scmp.eq.s32.totalorder %s19, 0
      %p191 = por %p189, %p190
      %p192 = scmp.ne.s32.totalorder %s181, %s184
      %p193 = scmp.eq.s32.totalorder %s24, 1
      %p194 = por %p192, %p193
      %p195 = scmp.ne.s32.totalorder %s184, %s185
      %p196 = scmp.eq.s32.totalorder %s24, 0
      %p197 = por %p195, %p196
      %p198 = scmp.ne.s32.totalorder %s184, %s185
      %p199 = scmp.eq.s32.totalorder %s25, 1
      %p200 = por %p198, %p199
      %p202 = scmp.ne.s32.totalorder %s185, %s201
      %p203 = scmp.eq.s32.totalorder %s25, 0
      %p204 = por %p202, %p203
      %s205 = ssub.s32 %s19, %s26
      %p206 = scmp.eq.s32.totalorder %s205, 0
      %s208 = sadd.s32 %s207, 1
      %s209 = scalar_select %p206, %s207, %s208
      %p212 = pneg %p206
      %p213 = scmp.eq.s32.totalorder %s19, 1
      %p214 = por %p212, %p213
      %p215 = scmp.ne.s32.totalorder %s207, %s210
      %p216 = scmp.eq.s32.totalorder %s19, 0
      %p217 = por %p215, %p216
      %p218 = scmp.ne.s32.totalorder %s207, %s210
      %p219 = scmp.eq.s32.totalorder %s24, 1
      %p220 = por %p218, %p219
      %p221 = scmp.ne.s32.totalorder %s210, %s211
      %p222 = scmp.eq.s32.totalorder %s24, 0
      %p223 = por %p221, %p222
      %p224 = scmp.ne.s32.totalorder %s210, %s211
      %p225 = scmp.eq.s32.totalorder %s25, 1
      %p226 = por %p224, %p225
      %p228 = scmp.ne.s32.totalorder %s211, %s227
      %p229 = scmp.eq.s32.totalorder %s25, 0
      %p230 = por %p228, %p229
      %s232 = sadd.s32 %s231, 1
      %p235 = scmp.eq.s32.totalorder %s19, 1
      %p236 = scmp.ne.s32.totalorder %s231, %s233
      %p237 = scmp.eq.s32.totalorder %s19, 0
      %p238 = por %p236, %p237
      %p239 = scmp.ne.s32.totalorder %s231, %s233
      %p240 = scmp.eq.s32.totalorder %s24, 1
      %p241 = por %p239, %p240
      %p242 = scmp.ne.s32.totalorder %s233, %s234
      %p243 = scmp.eq.s32.totalorder %s24, 0
      %p244 = por %p242, %p243
      %p245 = scmp.ne.s32.totalorder %s233, %s234
      %p246 = scmp.eq.s32.totalorder %s25, 1
      %p247 = por %p245, %p246
      %p249 = scmp.ne.s32.totalorder %s234, %s248
      %p250 = scmp.eq.s32.totalorder %s25, 0
      %p251 = por %p249, %p250
      %p252 = scmp.le.s32.totalorder 1, %s19
      %p253 = scmp.lt.s32.totalorder %s19, 3
      %p254 = pnand %p252, %p253
      %p255 = pneg %p254
      // Predicated region
      $region9: #{tpu_custom_call.1} parent=5 // pred_check
        _
      $region10: #{tpu_custom_call.1} parent=5 // pred_check_branch
        %257 = sbr.rel (%p254) target = $region12
      $region11: #{tpu_custom_call.1} parent=5 // pred_region
        %s258 = ssub.s32 %s19, 1
        // Predicated region
        $region13: #{tpu_custom_call.1} parent=11 // pred_check
          %p259 = pneg %p40
        $region14: #{tpu_custom_call.1} parent=11 // pred_check_branch
          %261 = sbr.rel (%p259) target = $region16
        $region15: #{tpu_custom_call.1} parent=11 // pred_region
          %s263 = ssub.s32 128, 128
          %264 = vsyncadd [#allocation4], %s263
          %s265 = sshll.u32 [#allocation3], 4
          %s266 = int_to_ptr.vmem [resolvable:$true] %s265
          %271 = dma.hbm_to_vmem [thread:$0]  %s0, 128, %s266, [#allocation4], 64, 64, 4
        $region16: #{tpu_custom_call.1} parent=11 // pred_fallthru
          _
        // Predicated region
        $region17: #{tpu_custom_call.1} parent=11 // pred_check
          %p272 = pneg %p61
        $region18: #{tpu_custom_call.1} parent=11 // pred_check_branch
          %274 = sbr.rel (%p272) target = $region20
        $region19: #{tpu_custom_call.1} parent=11 // pred_region
          %s276 = ssub.s32 256, 256
          %277 = vsyncadd [#allocation7], %s276
          %s278 = sshll.u32 [#allocation6], 4
          %s279 = int_to_ptr.vmem [resolvable:$true] %s278
          %284 = dma.hbm_to_vmem [thread:$0]  %s1, 256, %s279, [#allocation7], 128, 128, 8
        $region20: #{tpu_custom_call.1} parent=11 // pred_fallthru
          _
        // Predicated region
        $region21: #{tpu_custom_call.1} parent=11 // pred_check
          %p285 = pneg %p82
        $region22: #{tpu_custom_call.1} parent=11 // pred_check_branch
          %287 = sbr.rel (%p285) target = $region24
        $region23: #{tpu_custom_call.1} parent=11 // pred_region
          %s289 = ssub.s32 256, 256
          %290 = vsyncadd [#allocation7], %s289
          %s291 = sshll.u32 [#allocation8], 4
          %s292 = int_to_ptr.vmem [resolvable:$true] %s291
          %297 = dma.hbm_to_vmem [thread:$0]  %s2, 256, %s292, [#allocation7], 128, 128, 8
        $region24: #{tpu_custom_call.1} parent=11 // pred_fallthru
          _
        // Predicated region
        $region25: #{tpu_custom_call.1} parent=11 // pred_check
          %p298 = pneg %p103
        $region26: #{tpu_custom_call.1} parent=11 // pred_check_branch
          %300 = sbr.rel (%p298) target = $region28
        $region27: #{tpu_custom_call.1} parent=11 // pred_region
          _
        $region28: #{tpu_custom_call.1} parent=11 // pred_fallthru
          _
        // Predicated region
        $region29: #{tpu_custom_call.1} parent=11 // pred_check
          %p301 = pneg %p124
        $region30: #{tpu_custom_call.1} parent=11 // pred_check_branch
          %303 = sbr.rel (%p301) target = $region32
        $region31: #{tpu_custom_call.1} parent=11 // pred_region
          %s305 = ssub.s32 96, 96
          %306 = vsyncadd [#allocation10], %s305
          %s308 = sshll.u32 [#allocation9], 4
          %s309 = int_to_ptr.vmem [resolvable:$true] %s308
          %311 = dma.hbm_to_vmem [thread:$0]  %s4, 96, %s309, [#allocation10]
        $region32: #{tpu_custom_call.1} parent=11 // pred_fallthru
          _
        // Predicated region
        $region33: #{tpu_custom_call.1} parent=11 // pred_check
          %p312 = pneg %p171
        $region34: #{tpu_custom_call.1} parent=11 // pred_check_branch
          %314 = sbr.rel (%p312) target = $region36
        $region35: #{tpu_custom_call.1} parent=11 // pred_region
          %s316 = ssub.s32 1280, 1280
          %317 = vsyncadd [#allocation7], %s316
          %s318 = sshll.u32 [#allocation12], 4
          %s319 = int_to_ptr.vmem [resolvable:$true] %s318
          %324 = dma.hbm_to_vmem [thread:$0]  %s6, 1280, %s319, [#allocation7], 640, 640, 40
        $region36: #{tpu_custom_call.1} parent=11 // pred_fallthru
          _
      $region12: #{tpu_custom_call.1} parent=5 // pred_fallthru
        _
      %p325 = scmp.lt.s32.totalorder %s19, 2
      // Predicated region
      $region37: #{tpu_custom_call.1} parent=5 // pred_check
        %p326 = pneg %p325
      $region38: #{tpu_custom_call.1} parent=5 // pred_check_branch
        %328 = sbr.rel (%p326) target = $region40
      $region39: #{tpu_custom_call.1} parent=5 // pred_region
        // Predicated region
        $region41: #{tpu_custom_call.1} parent=39 // pred_check
          %p329 = pneg %p144
        $region42: #{tpu_custom_call.1} parent=39 // pred_check_branch
          %331 = sbr.rel (%p329) target = $region44
        $region43: #{tpu_custom_call.1} parent=39 // pred_region
          %s332 = sand.u32 %s19, 1
          %s333 = scalar_lea.sflag [#allocation4], %s332
          %s334 = sand.u32 %s134, 1
          %s335 = smul.addr %s334, 5
          %s336 = scalar_lea.vmem [#allocation11], %s335
          %s337 = smul.u32 5, %s19
          %s339 = ssub.s32 80, 80
          %340 = vsyncadd %s333, %s339
          %s341 = smul.addr %s337, 16
          %s342 = scalar_lea.hbm %s5, %s341
          %s344 = sshll.u32 %s336, 4
          %s345 = int_to_ptr.vmem [resolvable:$true] %s344
          %347 = dma.hbm_to_vmem [thread:$0]  %s342, 80, %s345, %s333
        $region44: #{tpu_custom_call.1} parent=39 // pred_fallthru
          _
        // Predicated region
        $region45: #{tpu_custom_call.1} parent=39 // pred_check
          %p348 = pneg %p191
        $region46: #{tpu_custom_call.1} parent=39 // pred_check_branch
          %350 = sbr.rel (%p348) target = $region48
        $region47: #{tpu_custom_call.1} parent=39 // pred_region
          %s351 = sand.u32 %s19, 1
          %s352 = scalar_lea.sflag [#allocation4], %s351
          %s353 = sand.u32 %s181, 1
          %s354 = smul.addr %s353, 3200
          %s355 = scalar_lea.vmem [#allocation13], %s354
          %s356 = smul.u32 5, %s19
          %s358 = ssub.s32 51200, 51200
          %359 = vsyncadd %s352, %s358
          %s360 = smul.addr %s356, 64
          %s361 = scalar_lea.hbm %s7, %s360
          %s362 = sshll.u32 %s355, 4
          %s363 = int_to_ptr.vmem [resolvable:$true] %s362
          %368 = dma.hbm_to_vmem [thread:$0]  %s361, 51200, %s363, %s352, 640, 320, 20
        $region48: #{tpu_custom_call.1} parent=39 // pred_fallthru
          _
        // Predicated region
        $region49: #{tpu_custom_call.1} parent=39 // pred_check
          %p369 = pneg %p217
        $region50: #{tpu_custom_call.1} parent=39 // pred_check_branch
          %371 = sbr.rel (%p369) target = $region52
        $region51: #{tpu_custom_call.1} parent=39 // pred_region
          %s372 = smul.u32 80, %s19
          %p373 = scmp.lt.s32.totalorder %s372, 159
          %s374 = scalar_select %p373, %s372, 159
          %s375 = smul.addr %s374, 4
          %s376 = scalar_lea.vmem %s8, %s375
          %s377 = smul.u32 80, %s19
        $region52: #{tpu_custom_call.1} parent=39 // pred_fallthru
          _
      $region40: #{tpu_custom_call.1} parent=5 // pred_fallthru
        _
      %p378 = scmp.le.s32.totalorder 1, %s19
      %p379 = scmp.lt.s32.totalorder %s19, 3
      %p380 = pnand %p378, %p379
      %p381 = pneg %p380
      // Predicated region
      $region53: #{tpu_custom_call.1} parent=5 // pred_check
        _
      $region54: #{tpu_custom_call.1} parent=5 // pred_check_branch
        %383 = sbr.rel (%p380) target = $region56
      $region55: #{tpu_custom_call.1} parent=5 // pred_region
        %s384 = ssub.s32 %s19, 1
        // Predicated region
        $region57: #{tpu_custom_call.1} parent=55 // pred_check
          %p385 = pneg %p40
        $region58: #{tpu_custom_call.1} parent=55 // pred_check_branch
          %387 = sbr.rel (%p385) target = $region60
        $region59: #{tpu_custom_call.1} parent=55 // pred_region
          %388 = dma.done [#allocation4], 128
        $region60: #{tpu_custom_call.1} parent=55 // pred_fallthru
          _
        // Predicated region
        $region61: #{tpu_custom_call.1} parent=55 // pred_check
          %p389 = pneg %p61
        $region62: #{tpu_custom_call.1} parent=55 // pred_check_branch
          %391 = sbr.rel (%p389) target = $region64
        $region63: #{tpu_custom_call.1} parent=55 // pred_region
          %392 = dma.done [#allocation7], 256
        $region64: #{tpu_custom_call.1} parent=55 // pred_fallthru
          _
        // Predicated region
        $region65: #{tpu_custom_call.1} parent=55 // pred_check
          %p393 = pneg %p82
        $region66: #{tpu_custom_call.1} parent=55 // pred_check_branch
          %395 = sbr.rel (%p393) target = $region68
        $region67: #{tpu_custom_call.1} parent=55 // pred_region
          %396 = dma.done [#allocation7], 256
        $region68: #{tpu_custom_call.1} parent=55 // pred_fallthru
          _
        // Predicated region
        $region69: #{tpu_custom_call.1} parent=55 // pred_check
          %p397 = pneg %p124
        $region70: #{tpu_custom_call.1} parent=55 // pred_check_branch
          %399 = sbr.rel (%p397) target = $region72
        $region71: #{tpu_custom_call.1} parent=55 // pred_region
          %400 = dma.done [#allocation10], 96
        $region72: #{tpu_custom_call.1} parent=55 // pred_fallthru
          _
        %s401 = sand.u32 %s24, 1
        %s402 = scalar_lea.sflag [#allocation4], %s401
        %s403 = sand.u32 %s137, 1
        %s404 = smul.addr %s403, 5
        %s405 = scalar_lea.vmem [#allocation11], %s404
        // Predicated region
        $region73: #{tpu_custom_call.1} parent=55 // pred_check
          %p406 = pneg %p150
        $region74: #{tpu_custom_call.1} parent=55 // pred_check_branch
          %408 = sbr.rel (%p406) target = $region76
        $region75: #{tpu_custom_call.1} parent=55 // pred_region
          %409 = dma.done %s402, 80
        $region76: #{tpu_custom_call.1} parent=55 // pred_fallthru
          _
        // Predicated region
        $region77: #{tpu_custom_call.1} parent=55 // pred_check
          %p410 = pneg %p171
        $region78: #{tpu_custom_call.1} parent=55 // pred_check_branch
          %412 = sbr.rel (%p410) target = $region80
        $region79: #{tpu_custom_call.1} parent=55 // pred_region
          %413 = dma.done [#allocation7], 1280
        $region80: #{tpu_custom_call.1} parent=55 // pred_fallthru
          _
        %s414 = sand.u32 %s24, 1
        %s415 = scalar_lea.sflag [#allocation4], %s414
        %s416 = sand.u32 %s184, 1
        %s417 = smul.addr %s416, 3200
        %s418 = scalar_lea.vmem [#allocation13], %s417
        // Predicated region
        $region81: #{tpu_custom_call.1} parent=55 // pred_check
          %p419 = pneg %p197
        $region82: #{tpu_custom_call.1} parent=55 // pred_check_branch
          %421 = sbr.rel (%p419) target = $region84
        $region83: #{tpu_custom_call.1} parent=55 // pred_region
          %422 = dma.done %s415, 51200
        $region84: #{tpu_custom_call.1} parent=55 // pred_fallthru
          _
        %p423 = pneg %p40
        %p424 = pneg %p37
        %p425 = pneg %p61
        %p426 = pneg %p58
        %p427 = pneg %p82
        %p428 = pneg %p79
        %p429 = pneg %p103
        %p430 = pneg %p100
        %p431 = pneg %p124
        %p432 = pneg %p121
        %s433 = sand.u32 %s24, 1
        %s434 = scalar_lea.sflag [#allocation4], %s433
        %s435 = sand.u32 %s137, 1
        %s436 = smul.addr %s435, 5
        %s437 = scalar_lea.vmem [#allocation11], %s436
        %p438 = pneg %p150
        %p439 = pneg %p147
        %p440 = pneg %p171
        %p441 = pneg %p168
        %s442 = sand.u32 %s24, 1
        %s443 = scalar_lea.sflag [#allocation4], %s442
        %s444 = sand.u32 %s184, 1
        %s445 = smul.addr %s444, 3200
        %s446 = scalar_lea.vmem [#allocation13], %s445
        %p447 = pneg %p197
        %p448 = pneg %p194
        %s449 = smul.u32 80, %s24
        %p450 = scmp.lt.s32.totalorder %s449, 159
        %s451 = scalar_select %p450, %s449, 159
        %s452 = smul.addr %s451, 4
        %s453 = scalar_lea.vmem %s8, %s452
        %p454 = pneg %p223
        %p455 = pneg %p220
        %p456 = pneg %p244
        %p457 = pneg %p241
        %s458 = smul.u32 5, %s24
        %s459 = smul.u32 5, %s24
        %s460 = smul.u32 80, %s24
        %p461 = scmp.lt.s32.totalorder %s460, 159
        %s462 = scalar_select %p461, %s460, 159
        %s463 = smul.addr %s462, 4
        %s464 = scalar_lea.vmem %s8, %s463
        %s465 = smul.u32 80, %s24
        %p467 = scmp.eq.s32.totalorder %s24, 0
        // Predicated region
        $region85: #{tpu_custom_call.1} parent=55 // pred_check
          %p468 = pneg %p467
        $region86: #{tpu_custom_call.1} parent=55 // pred_check_branch
          %470 = sbr.rel (%p468) target = $region88
        $region87: #{tpu_custom_call.1} parent=55 // pred_region
          %vm471 = vcmask 261120
          %472 = vst.msk [vmem:[#allocation2] sm:$0xff] %vm471, 0.0
          %473 = vst.msk [vmem:[#allocation2 + $0x8] sm:$0xff] %vm471, 0.0
        $region88: #{tpu_custom_call.1} parent=55 // pred_fallthru
          _
        %v474 = vld [vmem:[#allocation12] sm:$0xff]
        %v475 = vld [vmem:[#allocation12 + $0x8] sm:$0xff]
        %v476 = vld [vmem:[#allocation12 + $0x10] sm:$0xff]
        %v477 = vld [vmem:[#allocation12 + $0x18] sm:$0xff]
        %v478 = vld [vmem:[#allocation12 + $0x20] sm:$0xff]
        %v479 = vld [vmem:[#allocation12 + $0x28] sm:$0xff]
        %v480 = vld [vmem:[#allocation12 + $0x30] sm:$0xff]
        %v481 = vld [vmem:[#allocation12 + $0x38] sm:$0xff]
        %v482 = vld [vmem:[#allocation12 + $0x40] sm:$0xff]
        %v483 = vld [vmem:[#allocation12 + $0x48] sm:$0xff]
        %v484 = vld [vmem:[%s418] sm:$0xff]
        %v485 = vld [vmem:[%s418 + $0x8] sm:$0xff]
        %v486 = vld [vmem:[%s418 + $0x10] sm:$0xf]
        %v487 = vld [vmem:[%s418 + $0x14] sm:$0xff]
        %v488 = vld [vmem:[%s418 + $0x1c] sm:$0xff]
        %v489 = vld [vmem:[%s418 + $0x24] sm:$0xf]
        %v490 = vld [vmem:[%s418 + $0x28] sm:$0xff]
        %v491 = vld [vmem:[%s418 + $0x30] sm:$0xff]
        %v492 = vld [vmem:[%s418 + $0x38] sm:$0xf]
        %v493 = vld [vmem:[%s418 + $0x3c] sm:$0xff]
        %v494 = vld [vmem:[%s418 + $0x44] sm:$0xff]
        %v495 = vld [vmem:[%s418 + $0x4c] sm:$0xf]
        %v496 = vld [vmem:[%s418 + $0x50] sm:$0xff]
        %v497 = vld [vmem:[%s418 + $0x58] sm:$0xff]
        %v498 = vld [vmem:[%s418 + $0x60] sm:$0xf]
        %v499 = vld [vmem:[%s418 + $0x64] sm:$0xff]
        %v500 = vld [vmem:[%s418 + $0x6c] sm:$0xff]
        %v501 = vld [vmem:[%s418 + $0x74] sm:$0xf]
        %v502 = vld [vmem:[%s418 + $0x78] sm:$0xff]
        %v503 = vld [vmem:[%s418 + $0x80] sm:$0xff]
        %v504 = vld [vmem:[%s418 + $0x88] sm:$0xf]
        %v505 = vld [vmem:[%s418 + $0x8c] sm:$0xff]
        %v506 = vld [vmem:[%s418 + $0x94] sm:$0xff]
        %v507 = vld [vmem:[%s418 + $0x9c] sm:$0xf]
        %v508 = vld [vmem:[%s418 + $0xa0] sm:$0xff]
        %v509 = vld [vmem:[%s418 + $0xa8] sm:$0xff]
        %v510 = vld [vmem:[%s418 + $0xb0] sm:$0xf]
        %v511 = vld [vmem:[%s418 + $0xb4] sm:$0xff]
        %v512 = vld [vmem:[%s418 + $0xbc] sm:$0xff]
        %v513 = vld [vmem:[%s418 + $0xc4] sm:$0xf]
        %v514 = vld [vmem:[%s418 + $0xc8] sm:$0xff]
        %v515 = vld [vmem:[%s418 + $0xd0] sm:$0xff]
        %v516 = vld [vmem:[%s418 + $0xd8] sm:$0xf]
        %v517 = vld [vmem:[%s418 + $0xdc] sm:$0xff]
        %v518 = vld [vmem:[%s418 + $0xe4] sm:$0xff]
        %v519 = vld [vmem:[%s418 + $0xec] sm:$0xf]
        %v520 = vld [vmem:[%s418 + $0xf0] sm:$0xff]
        %v521 = vld [vmem:[%s418 + $0xf8] sm:$0xff]
        %v522 = vld [vmem:[%s418 + $0x100] sm:$0xf]
        %v523 = vld [vmem:[%s418 + $0x104] sm:$0xff]
        %v524 = vld [vmem:[%s418 + $0x10c] sm:$0xff]
        %v525 = vld [vmem:[%s418 + $0x114] sm:$0xf]
        %v526 = vld [vmem:[%s418 + $0x118] sm:$0xff]
        %v527 = vld [vmem:[%s418 + $0x120] sm:$0xff]
        %v528 = vld [vmem:[%s418 + $0x128] sm:$0xf]
        %v529 = vld [vmem:[%s418 + $0x12c] sm:$0xff]
        %v530 = vld [vmem:[%s418 + $0x134] sm:$0xff]
        %v531 = vld [vmem:[%s418 + $0x13c] sm:$0xf]
        %v532 = vld [vmem:[%s418 + $0x140] sm:$0xff]
        %v533 = vld [vmem:[%s418 + $0x148] sm:$0xff]
        %v534 = vld [vmem:[%s418 + $0x150] sm:$0xf]
        %v535 = vld [vmem:[%s418 + $0x154] sm:$0xff]
        %v536 = vld [vmem:[%s418 + $0x15c] sm:$0xff]
        %v537 = vld [vmem:[%s418 + $0x164] sm:$0xf]
        %v538 = vld [vmem:[%s418 + $0x168] sm:$0xff]
        %v539 = vld [vmem:[%s418 + $0x170] sm:$0xff]
        %v540 = vld [vmem:[%s418 + $0x178] sm:$0xf]
        %v541 = vld [vmem:[%s418 + $0x17c] sm:$0xff]
        %v542 = vld [vmem:[%s418 + $0x184] sm:$0xff]
        %v543 = vld [vmem:[%s418 + $0x18c] sm:$0xf]
        %v544 = vld [vmem:[%s418 + $0x190] sm:$0xff]
        %v545 = vld [vmem:[%s418 + $0x198] sm:$0xff]
        %v546 = vld [vmem:[%s418 + $0x1a0] sm:$0xf]
        %v547 = vld [vmem:[%s418 + $0x1a4] sm:$0xff]
        %v548 = vld [vmem:[%s418 + $0x1ac] sm:$0xff]
        %v549 = vld [vmem:[%s418 + $0x1b4] sm:$0xf]
        %v550 = vld [vmem:[%s418 + $0x1b8] sm:$0xff]
        %v551 = vld [vmem:[%s418 + $0x1c0] sm:$0xff]
        %v552 = vld [vmem:[%s418 + $0x1c8] sm:$0xf]
        %v553 = vld [vmem:[%s418 + $0x1cc] sm:$0xff]
        %v554 = vld [vmem:[%s418 + $0x1d4] sm:$0xff]
        %v555 = vld [vmem:[%s418 + $0x1dc] sm:$0xf]
        %v556 = vld [vmem:[%s418 + $0x1e0] sm:$0xff]
        %v557 = vld [vmem:[%s418 + $0x1e8] sm:$0xff]
        %v558 = vld [vmem:[%s418 + $0x1f0] sm:$0xf]
        %v559 = vld [vmem:[%s418 + $0x1f4] sm:$0xff]
        %v560 = vld [vmem:[%s418 + $0x1fc] sm:$0xff]
        %v561 = vld [vmem:[%s418 + $0x204] sm:$0xf]
        %v562 = vld [vmem:[%s418 + $0x208] sm:$0xff]
        %v563 = vld [vmem:[%s418 + $0x210] sm:$0xff]
        %v564 = vld [vmem:[%s418 + $0x218] sm:$0xf]
        %v565 = vld [vmem:[%s418 + $0x21c] sm:$0xff]
        %v566 = vld [vmem:[%s418 + $0x224] sm:$0xff]
        %v567 = vld [vmem:[%s418 + $0x22c] sm:$0xf]
        %v568 = vld [vmem:[%s418 + $0x230] sm:$0xff]
        %v569 = vld [vmem:[%s418 + $0x238] sm:$0xff]
        %v570 = vld [vmem:[%s418 + $0x240] sm:$0xf]
        %v571 = vld [vmem:[%s418 + $0x244] sm:$0xff]
        %v572 = vld [vmem:[%s418 + $0x24c] sm:$0xff]
        %v573 = vld [vmem:[%s418 + $0x254] sm:$0xf]
        %v574 = vld [vmem:[%s418 + $0x258] sm:$0xff]
        %v575 = vld [vmem:[%s418 + $0x260] sm:$0xff]
        %v576 = vld [vmem:[%s418 + $0x268] sm:$0xf]
        %v577 = vld [vmem:[%s418 + $0x26c] sm:$0xff]
        %v578 = vld [vmem:[%s418 + $0x274] sm:$0xff]
        %v579 = vld [vmem:[%s418 + $0x27c] sm:$0xf]
        %v580 = vld [vmem:[%s418 + $0x280] sm:$0xff]
        %v581 = vld [vmem:[%s418 + $0x288] sm:$0xff]
        %v582 = vld [vmem:[%s418 + $0x290] sm:$0xf]
        %v583 = vld [vmem:[%s418 + $0x294] sm:$0xff]
        %v584 = vld [vmem:[%s418 + $0x29c] sm:$0xff]
        %v585 = vld [vmem:[%s418 + $0x2a4] sm:$0xf]
        %v586 = vld [vmem:[%s418 + $0x2a8] sm:$0xff]
        %v587 = vld [vmem:[%s418 + $0x2b0] sm:$0xff]
        %v588 = vld [vmem:[%s418 + $0x2b8] sm:$0xf]
        %v589 = vld [vmem:[%s418 + $0x2bc] sm:$0xff]
        %v590 = vld [vmem:[%s418 + $0x2c4] sm:$0xff]
        %v591 = vld [vmem:[%s418 + $0x2cc] sm:$0xf]
        %v592 = vld [vmem:[%s418 + $0x2d0] sm:$0xff]
        %v593 = vld [vmem:[%s418 + $0x2d8] sm:$0xff]
        %v594 = vld [vmem:[%s418 + $0x2e0] sm:$0xf]
        %v595 = vld [vmem:[%s418 + $0x2e4] sm:$0xff]
        %v596 = vld [vmem:[%s418 + $0x2ec] sm:$0xff]
        %v597 = vld [vmem:[%s418 + $0x2f4] sm:$0xf]
        %v598 = vld [vmem:[%s418 + $0x2f8] sm:$0xff]
        %v599 = vld [vmem:[%s418 + $0x300] sm:$0xff]
        %v600 = vld [vmem:[%s418 + $0x308] sm:$0xf]
        %v601 = vld [vmem:[%s418 + $0x30c] sm:$0xff]
        %v602 = vld [vmem:[%s418 + $0x314] sm:$0xff]
        %v603 = vld [vmem:[%s418 + $0x31c] sm:$0xf]
        %v604 = vld [vmem:[%s418 + $0x320] sm:$0xff]
        %v605 = vld [vmem:[%s418 + $0x328] sm:$0xff]
        %v606 = vld [vmem:[%s418 + $0x330] sm:$0xf]
        %v607 = vld [vmem:[%s418 + $0x334] sm:$0xff]
        %v608 = vld [vmem:[%s418 + $0x33c] sm:$0xff]
        %v609 = vld [vmem:[%s418 + $0x344] sm:$0xf]
        %v610 = vld [vmem:[%s418 + $0x348] sm:$0xff]
        %v611 = vld [vmem:[%s418 + $0x350] sm:$0xff]
        %v612 = vld [vmem:[%s418 + $0x358] sm:$0xf]
        %v613 = vld [vmem:[%s418 + $0x35c] sm:$0xff]
        %v614 = vld [vmem:[%s418 + $0x364] sm:$0xff]
        %v615 = vld [vmem:[%s418 + $0x36c] sm:$0xf]
        %v616 = vld [vmem:[%s418 + $0x370] sm:$0xff]
        %v617 = vld [vmem:[%s418 + $0x378] sm:$0xff]
        %v618 = vld [vmem:[%s418 + $0x380] sm:$0xf]
        %v619 = vld [vmem:[%s418 + $0x384] sm:$0xff]
        %v620 = vld [vmem:[%s418 + $0x38c] sm:$0xff]
        %v621 = vld [vmem:[%s418 + $0x394] sm:$0xf]
        %v622 = vld [vmem:[%s418 + $0x398] sm:$0xff]
        %v623 = vld [vmem:[%s418 + $0x3a0] sm:$0xff]
        %v624 = vld [vmem:[%s418 + $0x3a8] sm:$0xf]
        %v625 = vld [vmem:[%s418 + $0x3ac] sm:$0xff]
        %v626 = vld [vmem:[%s418 + $0x3b4] sm:$0xff]
        %v627 = vld [vmem:[%s418 + $0x3bc] sm:$0xf]
        %v628 = vld [vmem:[%s418 + $0x3c0] sm:$0xff]
        %v629 = vld [vmem:[%s418 + $0x3c8] sm:$0xff]
        %v630 = vld [vmem:[%s418 + $0x3d0] sm:$0xf]
        %v631 = vld [vmem:[%s418 + $0x3d4] sm:$0xff]
        %v632 = vld [vmem:[%s418 + $0x3dc] sm:$0xff]
        %v633 = vld [vmem:[%s418 + $0x3e4] sm:$0xf]
        %v634 = vld [vmem:[%s418 + $0x3e8] sm:$0xff]
        %v635 = vld [vmem:[%s418 + $0x3f0] sm:$0xff]
        %v636 = vld [vmem:[%s418 + $0x3f8] sm:$0xf]
        %v637 = vld [vmem:[%s418 + $0x3fc] sm:$0xff]
        %v638 = vld [vmem:[%s418 + $0x404] sm:$0xff]
        %v639 = vld [vmem:[%s418 + $0x40c] sm:$0xf]
        %v640 = vld [vmem:[%s418 + $0x410] sm:$0xff]
        %v641 = vld [vmem:[%s418 + $0x418] sm:$0xff]
        %v642 = vld [vmem:[%s418 + $0x420] sm:$0xf]
        %v643 = vld [vmem:[%s418 + $0x424] sm:$0xff]
        %v644 = vld [vmem:[%s418 + $0x42c] sm:$0xff]
        %v645 = vld [vmem:[%s418 + $0x434] sm:$0xf]
        %v646 = vld [vmem:[%s418 + $0x438] sm:$0xff]
        %v647 = vld [vmem:[%s418 + $0x440] sm:$0xff]
        %v648 = vld [vmem:[%s418 + $0x448] sm:$0xf]
        %v649 = vld [vmem:[%s418 + $0x44c] sm:$0xff]
        %v650 = vld [vmem:[%s418 + $0x454] sm:$0xff]
        %v651 = vld [vmem:[%s418 + $0x45c] sm:$0xf]
        %v652 = vld [vmem:[%s418 + $0x460] sm:$0xff]
        %v653 = vld [vmem:[%s418 + $0x468] sm:$0xff]
        %v654 = vld [vmem:[%s418 + $0x470] sm:$0xf]
        %v655 = vld [vmem:[%s418 + $0x474] sm:$0xff]
        %v656 = vld [vmem:[%s418 + $0x47c] sm:$0xff]
        %v657 = vld [vmem:[%s418 + $0x484] sm:$0xf]
        %v658 = vld [vmem:[%s418 + $0x488] sm:$0xff]
        %v659 = vld [vmem:[%s418 + $0x490] sm:$0xff]
        %v660 = vld [vmem:[%s418 + $0x498] sm:$0xf]
        %v661 = vld [vmem:[%s418 + $0x49c] sm:$0xff]
        %v662 = vld [vmem:[%s418 + $0x4a4] sm:$0xff]
        %v663 = vld [vmem:[%s418 + $0x4ac] sm:$0xf]
        %v664 = vld [vmem:[%s418 + $0x4b0] sm:$0xff]
        %v665 = vld [vmem:[%s418 + $0x4b8] sm:$0xff]
        %v666 = vld [vmem:[%s418 + $0x4c0] sm:$0xf]
        %v667 = vld [vmem:[%s418 + $0x4c4] sm:$0xff]
        %v668 = vld [vmem:[%s418 + $0x4cc] sm:$0xff]
        %v669 = vld [vmem:[%s418 + $0x4d4] sm:$0xf]
        %v670 = vld [vmem:[%s418 + $0x4d8] sm:$0xff]
        %v671 = vld [vmem:[%s418 + $0x4e0] sm:$0xff]
        %v672 = vld [vmem:[%s418 + $0x4e8] sm:$0xf]
        %v673 = vld [vmem:[%s418 + $0x4ec] sm:$0xff]
        %v674 = vld [vmem:[%s418 + $0x4f4] sm:$0xff]
        %v675 = vld [vmem:[%s418 + $0x4fc] sm:$0xf]
        %v676 = vld [vmem:[%s418 + $0x500] sm:$0xff]
        %v677 = vld [vmem:[%s418 + $0x508] sm:$0xff]
        %v678 = vld [vmem:[%s418 + $0x510] sm:$0xf]
        %v679 = vld [vmem:[%s418 + $0x514] sm:$0xff]
        %v680 = vld [vmem:[%s418 + $0x51c] sm:$0xff]
        %v681 = vld [vmem:[%s418 + $0x524] sm:$0xf]
        %v682 = vld [vmem:[%s418 + $0x528] sm:$0xff]
        %v683 = vld [vmem:[%s418 + $0x530] sm:$0xff]
        %v684 = vld [vmem:[%s418 + $0x538] sm:$0xf]
        %v685 = vld [vmem:[%s418 + $0x53c] sm:$0xff]
        %v686 = vld [vmem:[%s418 + $0x544] sm:$0xff]
        %v687 = vld [vmem:[%s418 + $0x54c] sm:$0xf]
        %v688 = vld [vmem:[%s418 + $0x550] sm:$0xff]
        %v689 = vld [vmem:[%s418 + $0x558] sm:$0xff]
        %v690 = vld [vmem:[%s418 + $0x560] sm:$0xf]
        %v691 = vld [vmem:[%s418 + $0x564] sm:$0xff]
        %v692 = vld [vmem:[%s418 + $0x56c] sm:$0xff]
        %v693 = vld [vmem:[%s418 + $0x574] sm:$0xf]
        %v694 = vld [vmem:[%s418 + $0x578] sm:$0xff]
        %v695 = vld [vmem:[%s418 + $0x580] sm:$0xff]
        %v696 = vld [vmem:[%s418 + $0x588] sm:$0xf]
        %v697 = vld [vmem:[%s418 + $0x58c] sm:$0xff]
        %v698 = vld [vmem:[%s418 + $0x594] sm:$0xff]
        %v699 = vld [vmem:[%s418 + $0x59c] sm:$0xf]
        %v700 = vld [vmem:[%s418 + $0x5a0] sm:$0xff]
        %v701 = vld [vmem:[%s418 + $0x5a8] sm:$0xff]
        %v702 = vld [vmem:[%s418 + $0x5b0] sm:$0xf]
        %v703 = vld [vmem:[%s418 + $0x5b4] sm:$0xff]
        %v704 = vld [vmem:[%s418 + $0x5bc] sm:$0xff]
        %v705 = vld [vmem:[%s418 + $0x5c4] sm:$0xf]
        %v706 = vld [vmem:[%s418 + $0x5c8] sm:$0xff]
        %v707 = vld [vmem:[%s418 + $0x5d0] sm:$0xff]
        %v708 = vld [vmem:[%s418 + $0x5d8] sm:$0xf]
        %v709 = vld [vmem:[%s418 + $0x5dc] sm:$0xff]
        %v710 = vld [vmem:[%s418 + $0x5e4] sm:$0xff]
        %v711 = vld [vmem:[%s418 + $0x5ec] sm:$0xf]
        %v712 = vld [vmem:[%s418 + $0x5f0] sm:$0xff]
        %v713 = vld [vmem:[%s418 + $0x5f8] sm:$0xff]
        %v714 = vld [vmem:[%s418 + $0x600] sm:$0xf]
        %v715 = vld [vmem:[%s418 + $0x604] sm:$0xff]
        %v716 = vld [vmem:[%s418 + $0x60c] sm:$0xff]
        %v717 = vld [vmem:[%s418 + $0x614] sm:$0xf]
        %v718 = vld [vmem:[%s418 + $0x618] sm:$0xff]
        %v719 = vld [vmem:[%s418 + $0x620] sm:$0xff]
        %v720 = vld [vmem:[%s418 + $0x628] sm:$0xf]
        %v721 = vld [vmem:[%s418 + $0x62c] sm:$0xff]
        %v722 = vld [vmem:[%s418 + $0x634] sm:$0xff]
        %v723 = vld [vmem:[%s418 + $0x63c] sm:$0xf]
        %v724 = vld [vmem:[%s418 + $0x640] sm:$0xff]
        %v725 = vld [vmem:[%s418 + $0x648] sm:$0xff]
        %v726 = vld [vmem:[%s418 + $0x650] sm:$0xf]
        %v727 = vld [vmem:[%s418 + $0x654] sm:$0xff]
        %v728 = vld [vmem:[%s418 + $0x65c] sm:$0xff]
        %v729 = vld [vmem:[%s418 + $0x664] sm:$0xf]
        %v730 = vld [vmem:[%s418 + $0x668] sm:$0xff]
        %v731 = vld [vmem:[%s418 + $0x670] sm:$0xff]
        %v732 = vld [vmem:[%s418 + $0x678] sm:$0xf]
        %v733 = vld [vmem:[%s418 + $0x67c] sm:$0xff]
        %v734 = vld [vmem:[%s418 + $0x684] sm:$0xff]
        %v735 = vld [vmem:[%s418 + $0x68c] sm:$0xf]
        %v736 = vld [vmem:[%s418 + $0x690] sm:$0xff]
        %v737 = vld [vmem:[%s418 + $0x698] sm:$0xff]
        %v738 = vld [vmem:[%s418 + $0x6a0] sm:$0xf]
        %v739 = vld [vmem:[%s418 + $0x6a4] sm:$0xff]
        %v740 = vld [vmem:[%s418 + $0x6ac] sm:$0xff]
        %v741 = vld [vmem:[%s418 + $0x6b4] sm:$0xf]
        %v742 = vld [vmem:[%s418 + $0x6b8] sm:$0xff]
        %v743 = vld [vmem:[%s418 + $0x6c0] sm:$0xff]
        %v744 = vld [vmem:[%s418 + $0x6c8] sm:$0xf]
        %v745 = vld [vmem:[%s418 + $0x6cc] sm:$0xff]
        %v746 = vld [vmem:[%s418 + $0x6d4] sm:$0xff]
        %v747 = vld [vmem:[%s418 + $0x6dc] sm:$0xf]
        %v748 = vld [vmem:[%s418 + $0x6e0] sm:$0xff]
        %v749 = vld [vmem:[%s418 + $0x6e8] sm:$0xff]
        %v750 = vld [vmem:[%s418 + $0x6f0] sm:$0xf]
        %v751 = vld [vmem:[%s418 + $0x6f4] sm:$0xff]
        %v752 = vld [vmem:[%s418 + $0x6fc] sm:$0xff]
        %v753 = vld [vmem:[%s418 + $0x704] sm:$0xf]
        %v754 = vld [vmem:[%s418 + $0x708] sm:$0xff]
        %v755 = vld [vmem:[%s418 + $0x710] sm:$0xff]
        %v756 = vld [vmem:[%s418 + $0x718] sm:$0xf]
        %v757 = vld [vmem:[%s418 + $0x71c] sm:$0xff]
        %v758 = vld [vmem:[%s418 + $0x724] sm:$0xff]
        %v759 = vld [vmem:[%s418 + $0x72c] sm:$0xf]
        %v760 = vld [vmem:[%s418 + $0x730] sm:$0xff]
        %v761 = vld [vmem:[%s418 + $0x738] sm:$0xff]
        %v762 = vld [vmem:[%s418 + $0x740] sm:$0xf]
        %v763 = vld [vmem:[%s418 + $0x744] sm:$0xff]
        %v764 = vld [vmem:[%s418 + $0x74c] sm:$0xff]
        %v765 = vld [vmem:[%s418 + $0x754] sm:$0xf]
        %v766 = vld [vmem:[%s418 + $0x758] sm:$0xff]
        %v767 = vld [vmem:[%s418 + $0x760] sm:$0xff]
        %v768 = vld [vmem:[%s418 + $0x768] sm:$0xf]
        %v769 = vld [vmem:[%s418 + $0x76c] sm:$0xff]
        %v770 = vld [vmem:[%s418 + $0x774] sm:$0xff]
        %v771 = vld [vmem:[%s418 + $0x77c] sm:$0xf]
        %v772 = vld [vmem:[%s418 + $0x780] sm:$0xff]
        %v773 = vld [vmem:[%s418 + $0x788] sm:$0xff]
        %v774 = vld [vmem:[%s418 + $0x790] sm:$0xf]
        %v775 = vld [vmem:[%s418 + $0x794] sm:$0xff]
        %v776 = vld [vmem:[%s418 + $0x79c] sm:$0xff]
        %v777 = vld [vmem:[%s418 + $0x7a4] sm:$0xf]
        %v778 = vld [vmem:[%s418 + $0x7a8] sm:$0xff]
        %v779 = vld [vmem:[%s418 + $0x7b0] sm:$0xff]
        %v780 = vld [vmem:[%s418 + $0x7b8] sm:$0xf]
        %v781 = vld [vmem:[%s418 + $0x7bc] sm:$0xff]
        %v782 = vld [vmem:[%s418 + $0x7c4] sm:$0xff]
        %v783 = vld [vmem:[%s418 + $0x7cc] sm:$0xf]
        %v784 = vld [vmem:[%s418 + $0x7d0] sm:$0xff]
        %v785 = vld [vmem:[%s418 + $0x7d8] sm:$0xff]
        %v786 = vld [vmem:[%s418 + $0x7e0] sm:$0xf]
        %v787 = vld [vmem:[%s418 + $0x7e4] sm:$0xff]
        %v788 = vld [vmem:[%s418 + $0x7ec] sm:$0xff]
        %v789 = vld [vmem:[%s418 + $0x7f4] sm:$0xf]
        %v790 = vld [vmem:[%s418 + $0x7f8] sm:$0xff]
        %v791 = vld [vmem:[%s418 + $0x800] sm:$0xff]
        %v792 = vld [vmem:[%s418 + $0x808] sm:$0xf]
        %v793 = vld [vmem:[%s418 + $0x80c] sm:$0xff]
        %v794 = vld [vmem:[%s418 + $0x814] sm:$0xff]
        %v795 = vld [vmem:[%s418 + $0x81c] sm:$0xf]
        %v796 = vld [vmem:[%s418 + $0x820] sm:$0xff]
        %v797 = vld [vmem:[%s418 + $0x828] sm:$0xff]
        %v798 = vld [vmem:[%s418 + $0x830] sm:$0xf]
        %v799 = vld [vmem:[%s418 + $0x834] sm:$0xff]
        %v800 = vld [vmem:[%s418 + $0x83c] sm:$0xff]
        %v801 = vld [vmem:[%s418 + $0x844] sm:$0xf]
        %v802 = vld [vmem:[%s418 + $0x848] sm:$0xff]
        %v803 = vld [vmem:[%s418 + $0x850] sm:$0xff]
        %v804 = vld [vmem:[%s418 + $0x858] sm:$0xf]
        %v805 = vld [vmem:[%s418 + $0x85c] sm:$0xff]
        %v806 = vld [vmem:[%s418 + $0x864] sm:$0xff]
        %v807 = vld [vmem:[%s418 + $0x86c] sm:$0xf]
        %v808 = vld [vmem:[%s418 + $0x870] sm:$0xff]
        %v809 = vld [vmem:[%s418 + $0x878] sm:$0xff]
        %v810 = vld [vmem:[%s418 + $0x880] sm:$0xf]
        %v811 = vld [vmem:[%s418 + $0x884] sm:$0xff]
        %v812 = vld [vmem:[%s418 + $0x88c] sm:$0xff]
        %v813 = vld [vmem:[%s418 + $0x894] sm:$0xf]
        %v814 = vld [vmem:[%s418 + $0x898] sm:$0xff]
        %v815 = vld [vmem:[%s418 + $0x8a0] sm:$0xff]
        %v816 = vld [vmem:[%s418 + $0x8a8] sm:$0xf]
        %v817 = vld [vmem:[%s418 + $0x8ac] sm:$0xff]
        %v818 = vld [vmem:[%s418 + $0x8b4] sm:$0xff]
        %v819 = vld [vmem:[%s418 + $0x8bc] sm:$0xf]
        %v820 = vld [vmem:[%s418 + $0x8c0] sm:$0xff]
        %v821 = vld [vmem:[%s418 + $0x8c8] sm:$0xff]
        %v822 = vld [vmem:[%s418 + $0x8d0] sm:$0xf]
        %v823 = vld [vmem:[%s418 + $0x8d4] sm:$0xff]
        %v824 = vld [vmem:[%s418 + $0x8dc] sm:$0xff]
        %v825 = vld [vmem:[%s418 + $0x8e4] sm:$0xf]
        %v826 = vld [vmem:[%s418 + $0x8e8] sm:$0xff]
        %v827 = vld [vmem:[%s418 + $0x8f0] sm:$0xff]
        %v828 = vld [vmem:[%s418 + $0x8f8] sm:$0xf]
        %v829 = vld [vmem:[%s418 + $0x8fc] sm:$0xff]
        %v830 = vld [vmem:[%s418 + $0x904] sm:$0xff]
        %v831 = vld [vmem:[%s418 + $0x90c] sm:$0xf]
        %v832 = vld [vmem:[%s418 + $0x910] sm:$0xff]
        %v833 = vld [vmem:[%s418 + $0x918] sm:$0xff]
        %v834 = vld [vmem:[%s418 + $0x920] sm:$0xf]
        %v835 = vld [vmem:[%s418 + $0x924] sm:$0xff]
        %v836 = vld [vmem:[%s418 + $0x92c] sm:$0xff]
        %v837 = vld [vmem:[%s418 + $0x934] sm:$0xf]
        %v838 = vld [vmem:[%s418 + $0x938] sm:$0xff]
        %v839 = vld [vmem:[%s418 + $0x940] sm:$0xff]
        %v840 = vld [vmem:[%s418 + $0x948] sm:$0xf]
        %v841 = vld [vmem:[%s418 + $0x94c] sm:$0xff]
        %v842 = vld [vmem:[%s418 + $0x954] sm:$0xff]
        %v843 = vld [vmem:[%s418 + $0x95c] sm:$0xf]
        %v844 = vld [vmem:[%s418 + $0x960] sm:$0xff]
        %v845 = vld [vmem:[%s418 + $0x968] sm:$0xff]
        %v846 = vld [vmem:[%s418 + $0x970] sm:$0xf]
        %v847 = vld [vmem:[%s418 + $0x974] sm:$0xff]
        %v848 = vld [vmem:[%s418 + $0x97c] sm:$0xff]
        %v849 = vld [vmem:[%s418 + $0x984] sm:$0xf]
        %v850 = vld [vmem:[%s418 + $0x988] sm:$0xff]
        %v851 = vld [vmem:[%s418 + $0x990] sm:$0xff]
        %v852 = vld [vmem:[%s418 + $0x998] sm:$0xf]
        %v853 = vld [vmem:[%s418 + $0x99c] sm:$0xff]
        %v854 = vld [vmem:[%s418 + $0x9a4] sm:$0xff]
        %v855 = vld [vmem:[%s418 + $0x9ac] sm:$0xf]
        %v856 = vld [vmem:[%s418 + $0x9b0] sm:$0xff]
        %v857 = vld [vmem:[%s418 + $0x9b8] sm:$0xff]
        %v858 = vld [vmem:[%s418 + $0x9c0] sm:$0xf]
        %v859 = vld [vmem:[%s418 + $0x9c4] sm:$0xff]
        %v860 = vld [vmem:[%s418 + $0x9cc] sm:$0xff]
        %v861 = vld [vmem:[%s418 + $0x9d4] sm:$0xf]
        %v862 = vld [vmem:[%s418 + $0x9d8] sm:$0xff]
        %v863 = vld [vmem:[%s418 + $0x9e0] sm:$0xff]
        %v864 = vld [vmem:[%s418 + $0x9e8] sm:$0xf]
        %v865 = vld [vmem:[%s418 + $0x9ec] sm:$0xff]
        %v866 = vld [vmem:[%s418 + $0x9f4] sm:$0xff]
        %v867 = vld [vmem:[%s418 + $0x9fc] sm:$0xf]
        %v868 = vld [vmem:[%s418 + $0xa00] sm:$0xff]
        %v869 = vld [vmem:[%s418 + $0xa08] sm:$0xff]
        %v870 = vld [vmem:[%s418 + $0xa10] sm:$0xf]
        %v871 = vld [vmem:[%s418 + $0xa14] sm:$0xff]
        %v872 = vld [vmem:[%s418 + $0xa1c] sm:$0xff]
        %v873 = vld [vmem:[%s418 + $0xa24] sm:$0xf]
        %v874 = vld [vmem:[%s418 + $0xa28] sm:$0xff]
        %v875 = vld [vmem:[%s418 + $0xa30] sm:$0xff]
        %v876 = vld [vmem:[%s418 + $0xa38] sm:$0xf]
        %v877 = vld [vmem:[%s418 + $0xa3c] sm:$0xff]
        %v878 = vld [vmem:[%s418 + $0xa44] sm:$0xff]
        %v879 = vld [vmem:[%s418 + $0xa4c] sm:$0xf]
        %v880 = vld [vmem:[%s418 + $0xa50] sm:$0xff]
        %v881 = vld [vmem:[%s418 + $0xa58] sm:$0xff]
        %v882 = vld [vmem:[%s418 + $0xa60] sm:$0xf]
        %v883 = vld [vmem:[%s418 + $0xa64] sm:$0xff]
        %v884 = vld [vmem:[%s418 + $0xa6c] sm:$0xff]
        %v885 = vld [vmem:[%s418 + $0xa74] sm:$0xf]
        %v886 = vld [vmem:[%s418 + $0xa78] sm:$0xff]
        %v887 = vld [vmem:[%s418 + $0xa80] sm:$0xff]
        %v888 = vld [vmem:[%s418 + $0xa88] sm:$0xf]
        %v889 = vld [vmem:[%s418 + $0xa8c] sm:$0xff]
        %v890 = vld [vmem:[%s418 + $0xa94] sm:$0xff]
        %v891 = vld [vmem:[%s418 + $0xa9c] sm:$0xf]
        %v892 = vld [vmem:[%s418 + $0xaa0] sm:$0xff]
        %v893 = vld [vmem:[%s418 + $0xaa8] sm:$0xff]
        %v894 = vld [vmem:[%s418 + $0xab0] sm:$0xf]
        %v895 = vld [vmem:[%s418 + $0xab4] sm:$0xff]
        %v896 = vld [vmem:[%s418 + $0xabc] sm:$0xff]
        %v897 = vld [vmem:[%s418 + $0xac4] sm:$0xf]
        %v898 = vld [vmem:[%s418 + $0xac8] sm:$0xff]
        %v899 = vld [vmem:[%s418 + $0xad0] sm:$0xff]
        %v900 = vld [vmem:[%s418 + $0xad8] sm:$0xf]
        %v901 = vld [vmem:[%s418 + $0xadc] sm:$0xff]
        %v902 = vld [vmem:[%s418 + $0xae4] sm:$0xff]
        %v903 = vld [vmem:[%s418 + $0xaec] sm:$0xf]
        %v904 = vld [vmem:[%s418 + $0xaf0] sm:$0xff]
        %v905 = vld [vmem:[%s418 + $0xaf8] sm:$0xff]
        %v906 = vld [vmem:[%s418 + $0xb00] sm:$0xf]
        %v907 = vld [vmem:[%s418 + $0xb04] sm:$0xff]
        %v908 = vld [vmem:[%s418 + $0xb0c] sm:$0xff]
        %v909 = vld [vmem:[%s418 + $0xb14] sm:$0xf]
        %v910 = vld [vmem:[%s418 + $0xb18] sm:$0xff]
        %v911 = vld [vmem:[%s418 + $0xb20] sm:$0xff]
        %v912 = vld [vmem:[%s418 + $0xb28] sm:$0xf]
        %v913 = vld [vmem:[%s418 + $0xb2c] sm:$0xff]
        %v914 = vld [vmem:[%s418 + $0xb34] sm:$0xff]
        %v915 = vld [vmem:[%s418 + $0xb3c] sm:$0xf]
        %v916 = vld [vmem:[%s418 + $0xb40] sm:$0xff]
        %v917 = vld [vmem:[%s418 + $0xb48] sm:$0xff]
        %v918 = vld [vmem:[%s418 + $0xb50] sm:$0xf]
        %v919 = vld [vmem:[%s418 + $0xb54] sm:$0xff]
        %v920 = vld [vmem:[%s418 + $0xb5c] sm:$0xff]
        %v921 = vld [vmem:[%s418 + $0xb64] sm:$0xf]
        %v922 = vld [vmem:[%s418 + $0xb68] sm:$0xff]
        %v923 = vld [vmem:[%s418 + $0xb70] sm:$0xff]
        %v924 = vld [vmem:[%s418 + $0xb78] sm:$0xf]
        %v925 = vld [vmem:[%s418 + $0xb7c] sm:$0xff]
        %v926 = vld [vmem:[%s418 + $0xb84] sm:$0xff]
        %v927 = vld [vmem:[%s418 + $0xb8c] sm:$0xf]
        %v928 = vld [vmem:[%s418 + $0xb90] sm:$0xff]
        %v929 = vld [vmem:[%s418 + $0xb98] sm:$0xff]
        %v930 = vld [vmem:[%s418 + $0xba0] sm:$0xf]
        %v931 = vld [vmem:[%s418 + $0xba4] sm:$0xff]
        %v932 = vld [vmem:[%s418 + $0xbac] sm:$0xff]
        %v933 = vld [vmem:[%s418 + $0xbb4] sm:$0xf]
        %v934 = vld [vmem:[%s418 + $0xbb8] sm:$0xff]
        %v935 = vld [vmem:[%s418 + $0xbc0] sm:$0xff]
        %v936 = vld [vmem:[%s418 + $0xbc8] sm:$0xf]
        %v937 = vld [vmem:[%s418 + $0xbcc] sm:$0xff]
        %v938 = vld [vmem:[%s418 + $0xbd4] sm:$0xff]
        %v939 = vld [vmem:[%s418 + $0xbdc] sm:$0xf]
        %v940 = vld [vmem:[%s418 + $0xbe0] sm:$0xff]
        %v941 = vld [vmem:[%s418 + $0xbe8] sm:$0xff]
        %v942 = vld [vmem:[%s418 + $0xbf0] sm:$0xf]
        %v943 = vld [vmem:[%s418 + $0xbf4] sm:$0xff]
        %v944 = vld [vmem:[%s418 + $0xbfc] sm:$0xff]
        %v945 = vld [vmem:[%s418 + $0xc04] sm:$0xf]
        %v946 = vld [vmem:[%s418 + $0xc08] sm:$0xff]
        %v947 = vld [vmem:[%s418 + $0xc10] sm:$0xff]
        %v948 = vld [vmem:[%s418 + $0xc18] sm:$0xf]
        %v949 = vld [vmem:[%s418 + $0xc1c] sm:$0xff]
        %v950 = vld [vmem:[%s418 + $0xc24] sm:$0xff]
        %v951 = vld [vmem:[%s418 + $0xc2c] sm:$0xf]
        %v952 = vld [vmem:[%s418 + $0xc30] sm:$0xff]
        %v953 = vld [vmem:[%s418 + $0xc38] sm:$0xff]
        %v954 = vld [vmem:[%s418 + $0xc40] sm:$0xf]
        %v955 = vld [vmem:[%s418 + $0xc44] sm:$0xff]
        %v956 = vld [vmem:[%s418 + $0xc4c] sm:$0xff]
        %v957 = vld [vmem:[%s418 + $0xc54] sm:$0xf]
        %v958 = vld [vmem:[%s418 + $0xc58] sm:$0xff]
        %v959 = vld [vmem:[%s418 + $0xc60] sm:$0xff]
        %v960 = vld [vmem:[%s418 + $0xc68] sm:$0xf]
        %v961 = vld [vmem:[%s418 + $0xc6c] sm:$0xff]
        %v962 = vld [vmem:[%s418 + $0xc74] sm:$0xff]
        %v963 = vld [vmem:[%s418 + $0xc7c] sm:$0xf]
        %v964 = vld [vmem:[%s405] sm:$0x1f]
        %v966 = vlaneseq
        %v967 = vshrl.u32 %v966, 7
        %v968 = vsub.s32 0, %v967
        %v969 = vrot.slane %v964, %v968
        %v970 = vlaneseq
        %v971 = vshrl.u32 %v970, 7
        %v972 = vsub.s32 1, %v971
        %v973 = vrot.slane %v964, %v972
        %v974 = vlaneseq
        %v975 = vshrl.u32 %v974, 7
        %v976 = vsub.s32 2, %v975
        %v977 = vrot.slane %v964, %v976
        %v978 = vlaneseq
        %v979 = vshrl.u32 %v978, 7
        %v980 = vsub.s32 3, %v979
        %v981 = vrot.slane %v964, %v980
        %v982 = vlaneseq
        %v983 = vshrl.u32 %v982, 7
        %v984 = vsub.s32 4, %v983
        %v985 = vrot.slane %v964, %v984
        %v1001 = vunpack.c.l.b16 %v474
        %v1002 = vunpack.c.h.b16 %v474
        %v1003 = vunpack.c.l.b16 %v475
        %v1004 = vunpack.c.h.b16 %v475
        %v1005 = vunpack.c.l.b16 %v476
        %v1006 = vunpack.c.h.b16 %v476
        %v1007 = vunpack.c.l.b16 %v477
        %v1008 = vunpack.c.h.b16 %v477
        %v1009 = vunpack.c.l.b16 %v478
        %v1010 = vunpack.c.h.b16 %v478
        %v1011 = vunpack.c.l.b16 %v479
        %v1012 = vunpack.c.h.b16 %v479
        %v1013 = vunpack.c.l.b16 %v480
        %v1014 = vunpack.c.h.b16 %v480
        %v1015 = vunpack.c.l.b16 %v481
        %v1016 = vunpack.c.h.b16 %v481
        %v1017 = vunpack.c.l.b16 %v482
        %v1018 = vunpack.c.h.b16 %v482
        %v1019 = vunpack.c.l.b16 %v483
        %v1020 = vunpack.c.h.b16 %v483
        %v1021 = vpack.c.b16 %v1011, %v1001
        %v1022 = vpack.c.b16 %v1012, %v1002
        %v1023 = vpack.c.b16 %v1013, %v1003
        %v1024 = vpack.c.b16 %v1014, %v1004
        %v1025 = vpack.c.b16 %v1015, %v1005
        %v1026 = vpack.c.b16 %v1016, %v1006
        %v1027 = vpack.c.b16 %v1017, %v1007
        %v1028 = vpack.c.b16 %v1018, %v1008
        %v1029 = vpack.c.b16 %v1019, %v1009
        %v1030 = vpack.c.b16 %v1020, %v1010
        %v1521 = vunpack.c.l.b16 %v484
        %v1522 = vunpack.c.h.b16 %v484
        %v1523 = vunpack.c.l.b16 %v485
        %v1524 = vunpack.c.h.b16 %v485
        %v1525 = vunpack.c.l.b16 %v486
        %v1526 = vunpack.c.l.b16 %v487
        %v1527 = vunpack.c.h.b16 %v487
        %v1528 = vunpack.c.l.b16 %v488
        %v1529 = vunpack.c.h.b16 %v488
        %v1530 = vunpack.c.l.b16 %v489
        %v1531 = vunpack.c.l.b16 %v490
        %v1532 = vunpack.c.h.b16 %v490
        %v1533 = vunpack.c.l.b16 %v491
        %v1534 = vunpack.c.h.b16 %v491
        %v1535 = vunpack.c.l.b16 %v492
        %v1536 = vunpack.c.l.b16 %v493
        %v1537 = vunpack.c.h.b16 %v493
        %v1538 = vunpack.c.l.b16 %v494
        %v1539 = vunpack.c.h.b16 %v494
        %v1540 = vunpack.c.l.b16 %v495
        %v1541 = vunpack.c.l.b16 %v496
        %v1542 = vunpack.c.h.b16 %v496
        %v1543 = vunpack.c.l.b16 %v497
        %v1544 = vunpack.c.h.b16 %v497
        %v1545 = vunpack.c.l.b16 %v498
        %v1546 = vunpack.c.l.b16 %v499
        %v1547 = vunpack.c.h.b16 %v499
        %v1548 = vunpack.c.l.b16 %v500
        %v1549 = vunpack.c.h.b16 %v500
        %v1550 = vunpack.c.l.b16 %v501
        %v1551 = vunpack.c.l.b16 %v502
        %v1552 = vunpack.c.h.b16 %v502
        %v1553 = vunpack.c.l.b16 %v503
        %v1554 = vunpack.c.h.b16 %v503
        %v1555 = vunpack.c.l.b16 %v504
        %v1556 = vunpack.c.l.b16 %v505
        %v1557 = vunpack.c.h.b16 %v505
        %v1558 = vunpack.c.l.b16 %v506
        %v1559 = vunpack.c.h.b16 %v506
        %v1560 = vunpack.c.l.b16 %v507
        %v1561 = vunpack.c.l.b16 %v508
        %v1562 = vunpack.c.h.b16 %v508
        %v1563 = vunpack.c.l.b16 %v509
        %v1564 = vunpack.c.h.b16 %v509
        %v1565 = vunpack.c.l.b16 %v510
        %v1566 = vunpack.c.l.b16 %v511
        %v1567 = vunpack.c.h.b16 %v511
        %v1568 = vunpack.c.l.b16 %v512
        %v1569 = vunpack.c.h.b16 %v512
        %v1570 = vunpack.c.l.b16 %v513
        %v1571 = vunpack.c.l.b16 %v514
        %v1572 = vunpack.c.h.b16 %v514
        %v1573 = vunpack.c.l.b16 %v515
        %v1574 = vunpack.c.h.b16 %v515
        %v1575 = vunpack.c.l.b16 %v516
        %v1576 = vunpack.c.l.b16 %v517
        %v1577 = vunpack.c.h.b16 %v517
        %v1578 = vunpack.c.l.b16 %v518
        %v1579 = vunpack.c.h.b16 %v518
        %v1580 = vunpack.c.l.b16 %v519
        %v1581 = vunpack.c.l.b16 %v520
        %v1582 = vunpack.c.h.b16 %v520
        %v1583 = vunpack.c.l.b16 %v521
        %v1584 = vunpack.c.h.b16 %v521
        %v1585 = vunpack.c.l.b16 %v522
        %v1586 = vunpack.c.l.b16 %v523
        %v1587 = vunpack.c.h.b16 %v523
        %v1588 = vunpack.c.l.b16 %v524
        %v1589 = vunpack.c.h.b16 %v524
        %v1590 = vunpack.c.l.b16 %v525
        %v1591 = vunpack.c.l.b16 %v526
        %v1592 = vunpack.c.h.b16 %v526
        %v1593 = vunpack.c.l.b16 %v527
        %v1594 = vunpack.c.h.b16 %v527
        %v1595 = vunpack.c.l.b16 %v528
        %v1596 = vunpack.c.l.b16 %v529
        %v1597 = vunpack.c.h.b16 %v529
        %v1598 = vunpack.c.l.b16 %v530
        %v1599 = vunpack.c.h.b16 %v530
        %v1600 = vunpack.c.l.b16 %v531
        %v1601 = vunpack.c.l.b16 %v532
        %v1602 = vunpack.c.h.b16 %v532
        %v1603 = vunpack.c.l.b16 %v533
        %v1604 = vunpack.c.h.b16 %v533
        %v1605 = vunpack.c.l.b16 %v534
        %v1606 = vunpack.c.l.b16 %v535
        %v1607 = vunpack.c.h.b16 %v535
        %v1608 = vunpack.c.l.b16 %v536
        %v1609 = vunpack.c.h.b16 %v536
        %v1610 = vunpack.c.l.b16 %v537
        %v1611 = vunpack.c.l.b16 %v538
        %v1612 = vunpack.c.h.b16 %v538
        %v1613 = vunpack.c.l.b16 %v539
        %v1614 = vunpack.c.h.b16 %v539
        %v1615 = vunpack.c.l.b16 %v540
        %v1616 = vunpack.c.l.b16 %v541
        %v1617 = vunpack.c.h.b16 %v541
        %v1618 = vunpack.c.l.b16 %v542
        %v1619 = vunpack.c.h.b16 %v542
        %v1620 = vunpack.c.l.b16 %v543
        %v1621 = vunpack.c.l.b16 %v544
        %v1622 = vunpack.c.h.b16 %v544
        %v1623 = vunpack.c.l.b16 %v545
        %v1624 = vunpack.c.h.b16 %v545
        %v1625 = vunpack.c.l.b16 %v546
        %v1626 = vunpack.c.l.b16 %v547
        %v1627 = vunpack.c.h.b16 %v547
        %v1628 = vunpack.c.l.b16 %v548
        %v1629 = vunpack.c.h.b16 %v548
        %v1630 = vunpack.c.l.b16 %v549
        %v1631 = vunpack.c.l.b16 %v550
        %v1632 = vunpack.c.h.b16 %v550
        %v1633 = vunpack.c.l.b16 %v551
        %v1634 = vunpack.c.h.b16 %v551
        %v1635 = vunpack.c.l.b16 %v552
        %v1636 = vunpack.c.l.b16 %v553
        %v1637 = vunpack.c.h.b16 %v553
        %v1638 = vunpack.c.l.b16 %v554
        %v1639 = vunpack.c.h.b16 %v554
        %v1640 = vunpack.c.l.b16 %v555
        %v1641 = vunpack.c.l.b16 %v556
        %v1642 = vunpack.c.h.b16 %v556
        %v1643 = vunpack.c.l.b16 %v557
        %v1644 = vunpack.c.h.b16 %v557
        %v1645 = vunpack.c.l.b16 %v558
        %v1646 = vunpack.c.l.b16 %v559
        %v1647 = vunpack.c.h.b16 %v559
        %v1648 = vunpack.c.l.b16 %v560
        %v1649 = vunpack.c.h.b16 %v560
        %v1650 = vunpack.c.l.b16 %v561
        %v1651 = vunpack.c.l.b16 %v562
        %v1652 = vunpack.c.h.b16 %v562
        %v1653 = vunpack.c.l.b16 %v563
        %v1654 = vunpack.c.h.b16 %v563
        %v1655 = vunpack.c.l.b16 %v564
        %v1656 = vunpack.c.l.b16 %v565
        %v1657 = vunpack.c.h.b16 %v565
        %v1658 = vunpack.c.l.b16 %v566
        %v1659 = vunpack.c.h.b16 %v566
        %v1660 = vunpack.c.l.b16 %v567
        %v1661 = vunpack.c.l.b16 %v568
        %v1662 = vunpack.c.h.b16 %v568
        %v1663 = vunpack.c.l.b16 %v569
        %v1664 = vunpack.c.h.b16 %v569
        %v1665 = vunpack.c.l.b16 %v570
        %v1666 = vunpack.c.l.b16 %v571
        %v1667 = vunpack.c.h.b16 %v571
        %v1668 = vunpack.c.l.b16 %v572
        %v1669 = vunpack.c.h.b16 %v572
        %v1670 = vunpack.c.l.b16 %v573
        %v1671 = vunpack.c.l.b16 %v574
        %v1672 = vunpack.c.h.b16 %v574
        %v1673 = vunpack.c.l.b16 %v575
        %v1674 = vunpack.c.h.b16 %v575
        %v1675 = vunpack.c.l.b16 %v576
        %v1676 = vunpack.c.l.b16 %v577
        %v1677 = vunpack.c.h.b16 %v577
        %v1678 = vunpack.c.l.b16 %v578
        %v1679 = vunpack.c.h.b16 %v578
        %v1680 = vunpack.c.l.b16 %v579
        %v1681 = vunpack.c.l.b16 %v580
        %v1682 = vunpack.c.h.b16 %v580
        %v1683 = vunpack.c.l.b16 %v581
        %v1684 = vunpack.c.h.b16 %v581
        %v1685 = vunpack.c.l.b16 %v582
        %v1686 = vunpack.c.l.b16 %v583
        %v1687 = vunpack.c.h.b16 %v583
        %v1688 = vunpack.c.l.b16 %v584
        %v1689 = vunpack.c.h.b16 %v584
        %v1690 = vunpack.c.l.b16 %v585
        %v1691 = vunpack.c.l.b16 %v586
        %v1692 = vunpack.c.h.b16 %v586
        %v1693 = vunpack.c.l.b16 %v587
        %v1694 = vunpack.c.h.b16 %v587
        %v1695 = vunpack.c.l.b16 %v588
        %v1696 = vunpack.c.l.b16 %v589
        %v1697 = vunpack.c.h.b16 %v589
        %v1698 = vunpack.c.l.b16 %v590
        %v1699 = vunpack.c.h.b16 %v590
        %v1700 = vunpack.c.l.b16 %v591
        %v1701 = vunpack.c.l.b16 %v592
        %v1702 = vunpack.c.h.b16 %v592
        %v1703 = vunpack.c.l.b16 %v593
        %v1704 = vunpack.c.h.b16 %v593
        %v1705 = vunpack.c.l.b16 %v594
        %v1706 = vunpack.c.l.b16 %v595
        %v1707 = vunpack.c.h.b16 %v595
        %v1708 = vunpack.c.l.b16 %v596
        %v1709 = vunpack.c.h.b16 %v596
        %v1710 = vunpack.c.l.b16 %v597
        %v1711 = vunpack.c.l.b16 %v598
        %v1712 = vunpack.c.h.b16 %v598
        %v1713 = vunpack.c.l.b16 %v599
        %v1714 = vunpack.c.h.b16 %v599
        %v1715 = vunpack.c.l.b16 %v600
        %v1716 = vunpack.c.l.b16 %v601
        %v1717 = vunpack.c.h.b16 %v601
        %v1718 = vunpack.c.l.b16 %v602
        %v1719 = vunpack.c.h.b16 %v602
        %v1720 = vunpack.c.l.b16 %v603
        %v1721 = vunpack.c.l.b16 %v604
        %v1722 = vunpack.c.h.b16 %v604
        %v1723 = vunpack.c.l.b16 %v605
        %v1724 = vunpack.c.h.b16 %v605
        %v1725 = vunpack.c.l.b16 %v606
        %v1726 = vunpack.c.l.b16 %v607
        %v1727 = vunpack.c.h.b16 %v607
        %v1728 = vunpack.c.l.b16 %v608
        %v1729 = vunpack.c.h.b16 %v608
        %v1730 = vunpack.c.l.b16 %v609
        %v1731 = vunpack.c.l.b16 %v610
        %v1732 = vunpack.c.h.b16 %v610
        %v1733 = vunpack.c.l.b16 %v611
        %v1734 = vunpack.c.h.b16 %v611
        %v1735 = vunpack.c.l.b16 %v612
        %v1736 = vunpack.c.l.b16 %v613
        %v1737 = vunpack.c.h.b16 %v613
        %v1738 = vunpack.c.l.b16 %v614
        %v1739 = vunpack.c.h.b16 %v614
        %v1740 = vunpack.c.l.b16 %v615
        %v1741 = vunpack.c.l.b16 %v616
        %v1742 = vunpack.c.h.b16 %v616
        %v1743 = vunpack.c.l.b16 %v617
        %v1744 = vunpack.c.h.b16 %v617
        %v1745 = vunpack.c.l.b16 %v618
        %v1746 = vunpack.c.l.b16 %v619
        %v1747 = vunpack.c.h.b16 %v619
        %v1748 = vunpack.c.l.b16 %v620
        %v1749 = vunpack.c.h.b16 %v620
        %v1750 = vunpack.c.l.b16 %v621
        %v1751 = vunpack.c.l.b16 %v622
        %v1752 = vunpack.c.h.b16 %v622
        %v1753 = vunpack.c.l.b16 %v623
        %v1754 = vunpack.c.h.b16 %v623
        %v1755 = vunpack.c.l.b16 %v624
        %v1756 = vunpack.c.l.b16 %v625
        %v1757 = vunpack.c.h.b16 %v625
        %v1758 = vunpack.c.l.b16 %v626
        %v1759 = vunpack.c.h.b16 %v626
        %v1760 = vunpack.c.l.b16 %v627
        %v1761 = vunpack.c.l.b16 %v628
        %v1762 = vunpack.c.h.b16 %v628
        %v1763 = vunpack.c.l.b16 %v629
        %v1764 = vunpack.c.h.b16 %v629
        %v1765 = vunpack.c.l.b16 %v630
        %v1766 = vunpack.c.l.b16 %v631
        %v1767 = vunpack.c.h.b16 %v631
        %v1768 = vunpack.c.l.b16 %v632
        %v1769 = vunpack.c.h.b16 %v632
        %v1770 = vunpack.c.l.b16 %v633
        %v1771 = vunpack.c.l.b16 %v634
        %v1772 = vunpack.c.h.b16 %v634
        %v1773 = vunpack.c.l.b16 %v635
        %v1774 = vunpack.c.h.b16 %v635
        %v1775 = vunpack.c.l.b16 %v636
        %v1776 = vunpack.c.l.b16 %v637
        %v1777 = vunpack.c.h.b16 %v637
        %v1778 = vunpack.c.l.b16 %v638
        %v1779 = vunpack.c.h.b16 %v638
        %v1780 = vunpack.c.l.b16 %v639
        %v1781 = vunpack.c.l.b16 %v640
        %v1782 = vunpack.c.h.b16 %v640
        %v1783 = vunpack.c.l.b16 %v641
        %v1784 = vunpack.c.h.b16 %v641
        %v1785 = vunpack.c.l.b16 %v642
        %v1786 = vunpack.c.l.b16 %v643
        %v1787 = vunpack.c.h.b16 %v643
        %v1788 = vunpack.c.l.b16 %v644
        %v1789 = vunpack.c.h.b16 %v644
        %v1790 = vunpack.c.l.b16 %v645
        %v1791 = vunpack.c.l.b16 %v646
        %v1792 = vunpack.c.h.b16 %v646
        %v1793 = vunpack.c.l.b16 %v647
        %v1794 = vunpack.c.h.b16 %v647
        %v1795 = vunpack.c.l.b16 %v648
        %v1796 = vunpack.c.l.b16 %v649
        %v1797 = vunpack.c.h.b16 %v649
        %v1798 = vunpack.c.l.b16 %v650
        %v1799 = vunpack.c.h.b16 %v650
        %v1800 = vunpack.c.l.b16 %v651
        %v1801 = vunpack.c.l.b16 %v652
        %v1802 = vunpack.c.h.b16 %v652
        %v1803 = vunpack.c.l.b16 %v653
        %v1804 = vunpack.c.h.b16 %v653
        %v1805 = vunpack.c.l.b16 %v654
        %v1806 = vunpack.c.l.b16 %v655
        %v1807 = vunpack.c.h.b16 %v655
        %v1808 = vunpack.c.l.b16 %v656
        %v1809 = vunpack.c.h.b16 %v656
        %v1810 = vunpack.c.l.b16 %v657
        %v1811 = vunpack.c.l.b16 %v658
        %v1812 = vunpack.c.h.b16 %v658
        %v1813 = vunpack.c.l.b16 %v659
        %v1814 = vunpack.c.h.b16 %v659
        %v1815 = vunpack.c.l.b16 %v660
        %v1816 = vunpack.c.l.b16 %v661
        %v1817 = vunpack.c.h.b16 %v661
        %v1818 = vunpack.c.l.b16 %v662
        %v1819 = vunpack.c.h.b16 %v662
        %v1820 = vunpack.c.l.b16 %v663
        %v1821 = vunpack.c.l.b16 %v664
        %v1822 = vunpack.c.h.b16 %v664
        %v1823 = vunpack.c.l.b16 %v665
        %v1824 = vunpack.c.h.b16 %v665
        %v1825 = vunpack.c.l.b16 %v666
        %v1826 = vunpack.c.l.b16 %v667
        %v1827 = vunpack.c.h.b16 %v667
        %v1828 = vunpack.c.l.b16 %v668
        %v1829 = vunpack.c.h.b16 %v668
        %v1830 = vunpack.c.l.b16 %v669
        %v1831 = vunpack.c.l.b16 %v670
        %v1832 = vunpack.c.h.b16 %v670
        %v1833 = vunpack.c.l.b16 %v671
        %v1834 = vunpack.c.h.b16 %v671
        %v1835 = vunpack.c.l.b16 %v672
        %v1836 = vunpack.c.l.b16 %v673
        %v1837 = vunpack.c.h.b16 %v673
        %v1838 = vunpack.c.l.b16 %v674
        %v1839 = vunpack.c.h.b16 %v674
        %v1840 = vunpack.c.l.b16 %v675
        %v1841 = vunpack.c.l.b16 %v676
        %v1842 = vunpack.c.h.b16 %v676
        %v1843 = vunpack.c.l.b16 %v677
        %v1844 = vunpack.c.h.b16 %v677
        %v1845 = vunpack.c.l.b16 %v678
        %v1846 = vunpack.c.l.b16 %v679
        %v1847 = vunpack.c.h.b16 %v679
        %v1848 = vunpack.c.l.b16 %v680
        %v1849 = vunpack.c.h.b16 %v680
        %v1850 = vunpack.c.l.b16 %v681
        %v1851 = vunpack.c.l.b16 %v682
        %v1852 = vunpack.c.h.b16 %v682
        %v1853 = vunpack.c.l.b16 %v683
        %v1854 = vunpack.c.h.b16 %v683
        %v1855 = vunpack.c.l.b16 %v684
        %v1856 = vunpack.c.l.b16 %v685
        %v1857 = vunpack.c.h.b16 %v685
        %v1858 = vunpack.c.l.b16 %v686
        %v1859 = vunpack.c.h.b16 %v686
        %v1860 = vunpack.c.l.b16 %v687
        %v1861 = vunpack.c.l.b16 %v688
        %v1862 = vunpack.c.h.b16 %v688
        %v1863 = vunpack.c.l.b16 %v689
        %v1864 = vunpack.c.h.b16 %v689
        %v1865 = vunpack.c.l.b16 %v690
        %v1866 = vunpack.c.l.b16 %v691
        %v1867 = vunpack.c.h.b16 %v691
        %v1868 = vunpack.c.l.b16 %v692
        %v1869 = vunpack.c.h.b16 %v692
        %v1870 = vunpack.c.l.b16 %v693
        %v1871 = vunpack.c.l.b16 %v694
        %v1872 = vunpack.c.h.b16 %v694
        %v1873 = vunpack.c.l.b16 %v695
        %v1874 = vunpack.c.h.b16 %v695
        %v1875 = vunpack.c.l.b16 %v696
        %v1876 = vunpack.c.l.b16 %v697
        %v1877 = vunpack.c.h.b16 %v697
        %v1878 = vunpack.c.l.b16 %v698
        %v1879 = vunpack.c.h.b16 %v698
        %v1880 = vunpack.c.l.b16 %v699
        %v1881 = vunpack.c.l.b16 %v700
        %v1882 = vunpack.c.h.b16 %v700
        %v1883 = vunpack.c.l.b16 %v701
        %v1884 = vunpack.c.h.b16 %v701
        %v1885 = vunpack.c.l.b16 %v702
        %v1886 = vunpack.c.l.b16 %v703
        %v1887 = vunpack.c.h.b16 %v703
        %v1888 = vunpack.c.l.b16 %v704
        %v1889 = vunpack.c.h.b16 %v704
        %v1890 = vunpack.c.l.b16 %v705
        %v1891 = vunpack.c.l.b16 %v706
        %v1892 = vunpack.c.h.b16 %v706
        %v1893 = vunpack.c.l.b16 %v707
        %v1894 = vunpack.c.h.b16 %v707
        %v1895 = vunpack.c.l.b16 %v708
        %v1896 = vunpack.c.l.b16 %v709
        %v1897 = vunpack.c.h.b16 %v709
        %v1898 = vunpack.c.l.b16 %v710
        %v1899 = vunpack.c.h.b16 %v710
        %v1900 = vunpack.c.l.b16 %v711
        %v1901 = vunpack.c.l.b16 %v712
        %v1902 = vunpack.c.h.b16 %v712
        %v1903 = vunpack.c.l.b16 %v713
        %v1904 = vunpack.c.h.b16 %v713
        %v1905 = vunpack.c.l.b16 %v714
        %v1906 = vunpack.c.l.b16 %v715
        %v1907 = vunpack.c.h.b16 %v715
        %v1908 = vunpack.c.l.b16 %v716
        %v1909 = vunpack.c.h.b16 %v716
        %v1910 = vunpack.c.l.b16 %v717
        %v1911 = vunpack.c.l.b16 %v718
        %v1912 = vunpack.c.h.b16 %v718
        %v1913 = vunpack.c.l.b16 %v719
        %v1914 = vunpack.c.h.b16 %v719
        %v1915 = vunpack.c.l.b16 %v720
        %v1916 = vunpack.c.l.b16 %v721
        %v1917 = vunpack.c.h.b16 %v721
        %v1918 = vunpack.c.l.b16 %v722
        %v1919 = vunpack.c.h.b16 %v722
        %v1920 = vunpack.c.l.b16 %v723
        %v1921 = vunpack.c.l.b16 %v724
        %v1922 = vunpack.c.h.b16 %v724
        %v1923 = vunpack.c.l.b16 %v725
        %v1924 = vunpack.c.h.b16 %v725
        %v1925 = vunpack.c.l.b16 %v726
        %v1926 = vunpack.c.l.b16 %v727
        %v1927 = vunpack.c.h.b16 %v727
        %v1928 = vunpack.c.l.b16 %v728
        %v1929 = vunpack.c.h.b16 %v728
        %v1930 = vunpack.c.l.b16 %v729
        %v1931 = vunpack.c.l.b16 %v730
        %v1932 = vunpack.c.h.b16 %v730
        %v1933 = vunpack.c.l.b16 %v731
        %v1934 = vunpack.c.h.b16 %v731
        %v1935 = vunpack.c.l.b16 %v732
        %v1936 = vunpack.c.l.b16 %v733
        %v1937 = vunpack.c.h.b16 %v733
        %v1938 = vunpack.c.l.b16 %v734
        %v1939 = vunpack.c.h.b16 %v734
        %v1940 = vunpack.c.l.b16 %v735
        %v1941 = vunpack.c.l.b16 %v736
        %v1942 = vunpack.c.h.b16 %v736
        %v1943 = vunpack.c.l.b16 %v737
        %v1944 = vunpack.c.h.b16 %v737
        %v1945 = vunpack.c.l.b16 %v738
        %v1946 = vunpack.c.l.b16 %v739
        %v1947 = vunpack.c.h.b16 %v739
        %v1948 = vunpack.c.l.b16 %v740
        %v1949 = vunpack.c.h.b16 %v740
        %v1950 = vunpack.c.l.b16 %v741
        %v1951 = vunpack.c.l.b16 %v742
        %v1952 = vunpack.c.h.b16 %v742
        %v1953 = vunpack.c.l.b16 %v743
        %v1954 = vunpack.c.h.b16 %v743
        %v1955 = vunpack.c.l.b16 %v744
        %v1956 = vunpack.c.l.b16 %v745
        %v1957 = vunpack.c.h.b16 %v745
        %v1958 = vunpack.c.l.b16 %v746
        %v1959 = vunpack.c.h.b16 %v746
        %v1960 = vunpack.c.l.b16 %v747
        %v1961 = vunpack.c.l.b16 %v748
        %v1962 = vunpack.c.h.b16 %v748
        %v1963 = vunpack.c.l.b16 %v749
        %v1964 = vunpack.c.h.b16 %v749
        %v1965 = vunpack.c.l.b16 %v750
        %v1966 = vunpack.c.l.b16 %v751
        %v1967 = vunpack.c.h.b16 %v751
        %v1968 = vunpack.c.l.b16 %v752
        %v1969 = vunpack.c.h.b16 %v752
        %v1970 = vunpack.c.l.b16 %v753
        %v1971 = vunpack.c.l.b16 %v754
        %v1972 = vunpack.c.h.b16 %v754
        %v1973 = vunpack.c.l.b16 %v755
        %v1974 = vunpack.c.h.b16 %v755
        %v1975 = vunpack.c.l.b16 %v756
        %v1976 = vunpack.c.l.b16 %v757
        %v1977 = vunpack.c.h.b16 %v757
        %v1978 = vunpack.c.l.b16 %v758
        %v1979 = vunpack.c.h.b16 %v758
        %v1980 = vunpack.c.l.b16 %v759
        %v1981 = vunpack.c.l.b16 %v760
        %v1982 = vunpack.c.h.b16 %v760
        %v1983 = vunpack.c.l.b16 %v761
        %v1984 = vunpack.c.h.b16 %v761
        %v1985 = vunpack.c.l.b16 %v762
        %v1986 = vunpack.c.l.b16 %v763
        %v1987 = vunpack.c.h.b16 %v763
        %v1988 = vunpack.c.l.b16 %v764
        %v1989 = vunpack.c.h.b16 %v764
        %v1990 = vunpack.c.l.b16 %v765
        %v1991 = vunpack.c.l.b16 %v766
        %v1992 = vunpack.c.h.b16 %v766
        %v1993 = vunpack.c.l.b16 %v767
        %v1994 = vunpack.c.h.b16 %v767
        %v1995 = vunpack.c.l.b16 %v768
        %v1996 = vunpack.c.l.b16 %v769
        %v1997 = vunpack.c.h.b16 %v769
        %v1998 = vunpack.c.l.b16 %v770
        %v1999 = vunpack.c.h.b16 %v770
        %v2000 = vunpack.c.l.b16 %v771
        %v2001 = vunpack.c.l.b16 %v772
        %v2002 = vunpack.c.h.b16 %v772
        %v2003 = vunpack.c.l.b16 %v773
        %v2004 = vunpack.c.h.b16 %v773
        %v2005 = vunpack.c.l.b16 %v774
        %v2006 = vunpack.c.l.b16 %v775
        %v2007 = vunpack.c.h.b16 %v775
        %v2008 = vunpack.c.l.b16 %v776
        %v2009 = vunpack.c.h.b16 %v776
        %v2010 = vunpack.c.l.b16 %v777
        %v2011 = vunpack.c.l.b16 %v778
        %v2012 = vunpack.c.h.b16 %v778
        %v2013 = vunpack.c.l.b16 %v779
        %v2014 = vunpack.c.h.b16 %v779
        %v2015 = vunpack.c.l.b16 %v780
        %v2016 = vunpack.c.l.b16 %v781
        %v2017 = vunpack.c.h.b16 %v781
        %v2018 = vunpack.c.l.b16 %v782
        %v2019 = vunpack.c.h.b16 %v782
        %v2020 = vunpack.c.l.b16 %v783
        %v2021 = vunpack.c.l.b16 %v784
        %v2022 = vunpack.c.h.b16 %v784
        %v2023 = vunpack.c.l.b16 %v785
        %v2024 = vunpack.c.h.b16 %v785
        %v2025 = vunpack.c.l.b16 %v786
        %v2026 = vunpack.c.l.b16 %v787
        %v2027 = vunpack.c.h.b16 %v787
        %v2028 = vunpack.c.l.b16 %v788
        %v2029 = vunpack.c.h.b16 %v788
        %v2030 = vunpack.c.l.b16 %v789
        %v2031 = vunpack.c.l.b16 %v790
        %v2032 = vunpack.c.h.b16 %v790
        %v2033 = vunpack.c.l.b16 %v791
        %v2034 = vunpack.c.h.b16 %v791
        %v2035 = vunpack.c.l.b16 %v792
        %v2036 = vunpack.c.l.b16 %v793
        %v2037 = vunpack.c.h.b16 %v793
        %v2038 = vunpack.c.l.b16 %v794
        %v2039 = vunpack.c.h.b16 %v794
        %v2040 = vunpack.c.l.b16 %v795
        %v2041 = vunpack.c.l.b16 %v796
        %v2042 = vunpack.c.h.b16 %v796
        %v2043 = vunpack.c.l.b16 %v797
        %v2044 = vunpack.c.h.b16 %v797
        %v2045 = vunpack.c.l.b16 %v798
        %v2046 = vunpack.c.l.b16 %v799
        %v2047 = vunpack.c.h.b16 %v799
        %v2048 = vunpack.c.l.b16 %v800
        %v2049 = vunpack.c.h.b16 %v800
        %v2050 = vunpack.c.l.b16 %v801
        %v2051 = vunpack.c.l.b16 %v802
        %v2052 = vunpack.c.h.b16 %v802
        %v2053 = vunpack.c.l.b16 %v803
        %v2054 = vunpack.c.h.b16 %v803
        %v2055 = vunpack.c.l.b16 %v804
        %v2056 = vunpack.c.l.b16 %v805
        %v2057 = vunpack.c.h.b16 %v805
        %v2058 = vunpack.c.l.b16 %v806
        %v2059 = vunpack.c.h.b16 %v806
        %v2060 = vunpack.c.l.b16 %v807
        %v2061 = vunpack.c.l.b16 %v808
        %v2062 = vunpack.c.h.b16 %v808
        %v2063 = vunpack.c.l.b16 %v809
        %v2064 = vunpack.c.h.b16 %v809
        %v2065 = vunpack.c.l.b16 %v810
        %v2066 = vunpack.c.l.b16 %v811
        %v2067 = vunpack.c.h.b16 %v811
        %v2068 = vunpack.c.l.b16 %v812
        %v2069 = vunpack.c.h.b16 %v812
        %v2070 = vunpack.c.l.b16 %v813
        %v2071 = vunpack.c.l.b16 %v814
        %v2072 = vunpack.c.h.b16 %v814
        %v2073 = vunpack.c.l.b16 %v815
        %v2074 = vunpack.c.h.b16 %v815
        %v2075 = vunpack.c.l.b16 %v816
        %v2076 = vunpack.c.l.b16 %v817
        %v2077 = vunpack.c.h.b16 %v817
        %v2078 = vunpack.c.l.b16 %v818
        %v2079 = vunpack.c.h.b16 %v818
        %v2080 = vunpack.c.l.b16 %v819
        %v2081 = vunpack.c.l.b16 %v820
        %v2082 = vunpack.c.h.b16 %v820
        %v2083 = vunpack.c.l.b16 %v821
        %v2084 = vunpack.c.h.b16 %v821
        %v2085 = vunpack.c.l.b16 %v822
        %v2086 = vunpack.c.l.b16 %v823
        %v2087 = vunpack.c.h.b16 %v823
        %v2088 = vunpack.c.l.b16 %v824
        %v2089 = vunpack.c.h.b16 %v824
        %v2090 = vunpack.c.l.b16 %v825
        %v2091 = vunpack.c.l.b16 %v826
        %v2092 = vunpack.c.h.b16 %v826
        %v2093 = vunpack.c.l.b16 %v827
        %v2094 = vunpack.c.h.b16 %v827
        %v2095 = vunpack.c.l.b16 %v828
        %v2096 = vunpack.c.l.b16 %v829
        %v2097 = vunpack.c.h.b16 %v829
        %v2098 = vunpack.c.l.b16 %v830
        %v2099 = vunpack.c.h.b16 %v830
        %v2100 = vunpack.c.l.b16 %v831
        %v2101 = vunpack.c.l.b16 %v832
        %v2102 = vunpack.c.h.b16 %v832
        %v2103 = vunpack.c.l.b16 %v833
        %v2104 = vunpack.c.h.b16 %v833
        %v2105 = vunpack.c.l.b16 %v834
        %v2106 = vunpack.c.l.b16 %v835
        %v2107 = vunpack.c.h.b16 %v835
        %v2108 = vunpack.c.l.b16 %v836
        %v2109 = vunpack.c.h.b16 %v836
        %v2110 = vunpack.c.l.b16 %v837
        %v2111 = vunpack.c.l.b16 %v838
        %v2112 = vunpack.c.h.b16 %v838
        %v2113 = vunpack.c.l.b16 %v839
        %v2114 = vunpack.c.h.b16 %v839
        %v2115 = vunpack.c.l.b16 %v840
        %v2116 = vunpack.c.l.b16 %v841
        %v2117 = vunpack.c.h.b16 %v841
        %v2118 = vunpack.c.l.b16 %v842
        %v2119 = vunpack.c.h.b16 %v842
        %v2120 = vunpack.c.l.b16 %v843
        %v2121 = vunpack.c.l.b16 %v844
        %v2122 = vunpack.c.h.b16 %v844
        %v2123 = vunpack.c.l.b16 %v845
        %v2124 = vunpack.c.h.b16 %v845
        %v2125 = vunpack.c.l.b16 %v846
        %v2126 = vunpack.c.l.b16 %v847
        %v2127 = vunpack.c.h.b16 %v847
        %v2128 = vunpack.c.l.b16 %v848
        %v2129 = vunpack.c.h.b16 %v848
        %v2130 = vunpack.c.l.b16 %v849
        %v2131 = vunpack.c.l.b16 %v850
        %v2132 = vunpack.c.h.b16 %v850
        %v2133 = vunpack.c.l.b16 %v851
        %v2134 = vunpack.c.h.b16 %v851
        %v2135 = vunpack.c.l.b16 %v852
        %v2136 = vunpack.c.l.b16 %v853
        %v2137 = vunpack.c.h.b16 %v853
        %v2138 = vunpack.c.l.b16 %v854
        %v2139 = vunpack.c.h.b16 %v854
        %v2140 = vunpack.c.l.b16 %v855
        %v2141 = vunpack.c.l.b16 %v856
        %v2142 = vunpack.c.h.b16 %v856
        %v2143 = vunpack.c.l.b16 %v857
        %v2144 = vunpack.c.h.b16 %v857
        %v2145 = vunpack.c.l.b16 %v858
        %v2146 = vunpack.c.l.b16 %v859
        %v2147 = vunpack.c.h.b16 %v859
        %v2148 = vunpack.c.l.b16 %v860
        %v2149 = vunpack.c.h.b16 %v860
        %v2150 = vunpack.c.l.b16 %v861
        %v2151 = vunpack.c.l.b16 %v862
        %v2152 = vunpack.c.h.b16 %v862
        %v2153 = vunpack.c.l.b16 %v863
        %v2154 = vunpack.c.h.b16 %v863
        %v2155 = vunpack.c.l.b16 %v864
        %v2156 = vunpack.c.l.b16 %v865
        %v2157 = vunpack.c.h.b16 %v865
        %v2158 = vunpack.c.l.b16 %v866
        %v2159 = vunpack.c.h.b16 %v866
        %v2160 = vunpack.c.l.b16 %v867
        %v2161 = vunpack.c.l.b16 %v868
        %v2162 = vunpack.c.h.b16 %v868
        %v2163 = vunpack.c.l.b16 %v869
        %v2164 = vunpack.c.h.b16 %v869
        %v2165 = vunpack.c.l.b16 %v870
        %v2166 = vunpack.c.l.b16 %v871
        %v2167 = vunpack.c.h.b16 %v871
        %v2168 = vunpack.c.l.b16 %v872
        %v2169 = vunpack.c.h.b16 %v872
        %v2170 = vunpack.c.l.b16 %v873
        %v2171 = vunpack.c.l.b16 %v874
        %v2172 = vunpack.c.h.b16 %v874
        %v2173 = vunpack.c.l.b16 %v875
        %v2174 = vunpack.c.h.b16 %v875
        %v2175 = vunpack.c.l.b16 %v876
        %v2176 = vunpack.c.l.b16 %v877
        %v2177 = vunpack.c.h.b16 %v877
        %v2178 = vunpack.c.l.b16 %v878
        %v2179 = vunpack.c.h.b16 %v878
        %v2180 = vunpack.c.l.b16 %v879
        %v2181 = vunpack.c.l.b16 %v880
        %v2182 = vunpack.c.h.b16 %v880
        %v2183 = vunpack.c.l.b16 %v881
        %v2184 = vunpack.c.h.b16 %v881
        %v2185 = vunpack.c.l.b16 %v882
        %v2186 = vunpack.c.l.b16 %v883
        %v2187 = vunpack.c.h.b16 %v883
        %v2188 = vunpack.c.l.b16 %v884
        %v2189 = vunpack.c.h.b16 %v884
        %v2190 = vunpack.c.l.b16 %v885
        %v2191 = vunpack.c.l.b16 %v886
        %v2192 = vunpack.c.h.b16 %v886
        %v2193 = vunpack.c.l.b16 %v887
        %v2194 = vunpack.c.h.b16 %v887
        %v2195 = vunpack.c.l.b16 %v888
        %v2196 = vunpack.c.l.b16 %v889
        %v2197 = vunpack.c.h.b16 %v889
        %v2198 = vunpack.c.l.b16 %v890
        %v2199 = vunpack.c.h.b16 %v890
        %v2200 = vunpack.c.l.b16 %v891
        %v2201 = vunpack.c.l.b16 %v892
        %v2202 = vunpack.c.h.b16 %v892
        %v2203 = vunpack.c.l.b16 %v893
        %v2204 = vunpack.c.h.b16 %v893
        %v2205 = vunpack.c.l.b16 %v894
        %v2206 = vunpack.c.l.b16 %v895
        %v2207 = vunpack.c.h.b16 %v895
        %v2208 = vunpack.c.l.b16 %v896
        %v2209 = vunpack.c.h.b16 %v896
        %v2210 = vunpack.c.l.b16 %v897
        %v2211 = vunpack.c.l.b16 %v898
        %v2212 = vunpack.c.h.b16 %v898
        %v2213 = vunpack.c.l.b16 %v899
        %v2214 = vunpack.c.h.b16 %v899
        %v2215 = vunpack.c.l.b16 %v900
        %v2216 = vunpack.c.l.b16 %v901
        %v2217 = vunpack.c.h.b16 %v901
        %v2218 = vunpack.c.l.b16 %v902
        %v2219 = vunpack.c.h.b16 %v902
        %v2220 = vunpack.c.l.b16 %v903
        %v2221 = vunpack.c.l.b16 %v904
        %v2222 = vunpack.c.h.b16 %v904
        %v2223 = vunpack.c.l.b16 %v905
        %v2224 = vunpack.c.h.b16 %v905
        %v2225 = vunpack.c.l.b16 %v906
        %v2226 = vunpack.c.l.b16 %v907
        %v2227 = vunpack.c.h.b16 %v907
        %v2228 = vunpack.c.l.b16 %v908
        %v2229 = vunpack.c.h.b16 %v908
        %v2230 = vunpack.c.l.b16 %v909
        %v2231 = vunpack.c.l.b16 %v910
        %v2232 = vunpack.c.h.b16 %v910
        %v2233 = vunpack.c.l.b16 %v911
        %v2234 = vunpack.c.h.b16 %v911
        %v2235 = vunpack.c.l.b16 %v912
        %v2236 = vunpack.c.l.b16 %v913
        %v2237 = vunpack.c.h.b16 %v913
        %v2238 = vunpack.c.l.b16 %v914
        %v2239 = vunpack.c.h.b16 %v914
        %v2240 = vunpack.c.l.b16 %v915
        %v2241 = vunpack.c.l.b16 %v916
        %v2242 = vunpack.c.h.b16 %v916
        %v2243 = vunpack.c.l.b16 %v917
        %v2244 = vunpack.c.h.b16 %v917
        %v2245 = vunpack.c.l.b16 %v918
        %v2246 = vunpack.c.l.b16 %v919
        %v2247 = vunpack.c.h.b16 %v919
        %v2248 = vunpack.c.l.b16 %v920
        %v2249 = vunpack.c.h.b16 %v920
        %v2250 = vunpack.c.l.b16 %v921
        %v2251 = vunpack.c.l.b16 %v922
        %v2252 = vunpack.c.h.b16 %v922
        %v2253 = vunpack.c.l.b16 %v923
        %v2254 = vunpack.c.h.b16 %v923
        %v2255 = vunpack.c.l.b16 %v924
        %v2256 = vunpack.c.l.b16 %v925
        %v2257 = vunpack.c.h.b16 %v925
        %v2258 = vunpack.c.l.b16 %v926
        %v2259 = vunpack.c.h.b16 %v926
        %v2260 = vunpack.c.l.b16 %v927
        %v2261 = vunpack.c.l.b16 %v928
        %v2262 = vunpack.c.h.b16 %v928
        %v2263 = vunpack.c.l.b16 %v929
        %v2264 = vunpack.c.h.b16 %v929
        %v2265 = vunpack.c.l.b16 %v930
        %v2266 = vunpack.c.l.b16 %v931
        %v2267 = vunpack.c.h.b16 %v931
        %v2268 = vunpack.c.l.b16 %v932
        %v2269 = vunpack.c.h.b16 %v932
        %v2270 = vunpack.c.l.b16 %v933
        %v2271 = vunpack.c.l.b16 %v934
        %v2272 = vunpack.c.h.b16 %v934
        %v2273 = vunpack.c.l.b16 %v935
        %v2274 = vunpack.c.h.b16 %v935
        %v2275 = vunpack.c.l.b16 %v936
        %v2276 = vunpack.c.l.b16 %v937
        %v2277 = vunpack.c.h.b16 %v937
        %v2278 = vunpack.c.l.b16 %v938
        %v2279 = vunpack.c.h.b16 %v938
        %v2280 = vunpack.c.l.b16 %v939
        %v2281 = vunpack.c.l.b16 %v940
        %v2282 = vunpack.c.h.b16 %v940
        %v2283 = vunpack.c.l.b16 %v941
        %v2284 = vunpack.c.h.b16 %v941
        %v2285 = vunpack.c.l.b16 %v942
        %v2286 = vunpack.c.l.b16 %v943
        %v2287 = vunpack.c.h.b16 %v943
        %v2288 = vunpack.c.l.b16 %v944
        %v2289 = vunpack.c.h.b16 %v944
        %v2290 = vunpack.c.l.b16 %v945
        %v2291 = vunpack.c.l.b16 %v946
        %v2292 = vunpack.c.h.b16 %v946
        %v2293 = vunpack.c.l.b16 %v947
        %v2294 = vunpack.c.h.b16 %v947
        %v2295 = vunpack.c.l.b16 %v948
        %v2296 = vunpack.c.l.b16 %v949
        %v2297 = vunpack.c.h.b16 %v949
        %v2298 = vunpack.c.l.b16 %v950
        %v2299 = vunpack.c.h.b16 %v950
        %v2300 = vunpack.c.l.b16 %v951
        %v2301 = vunpack.c.l.b16 %v952
        %v2302 = vunpack.c.h.b16 %v952
        %v2303 = vunpack.c.l.b16 %v953
        %v2304 = vunpack.c.h.b16 %v953
        %v2305 = vunpack.c.l.b16 %v954
        %v2306 = vunpack.c.l.b16 %v955
        %v2307 = vunpack.c.h.b16 %v955
        %v2308 = vunpack.c.l.b16 %v956
        %v2309 = vunpack.c.h.b16 %v956
        %v2310 = vunpack.c.l.b16 %v957
        %v2311 = vunpack.c.l.b16 %v958
        %v2312 = vunpack.c.h.b16 %v958
        %v2313 = vunpack.c.l.b16 %v959
        %v2314 = vunpack.c.h.b16 %v959
        %v2315 = vunpack.c.l.b16 %v960
        %v2316 = vunpack.c.l.b16 %v961
        %v2317 = vunpack.c.h.b16 %v961
        %v2318 = vunpack.c.l.b16 %v962
        %v2319 = vunpack.c.h.b16 %v962
        %v2320 = vunpack.c.l.b16 %v963
        %v2321 = vpack.c.b16 %v1526, %v1521
        %v2322 = vpack.c.b16 %v1527, %v1522
        %v2323 = vpack.c.b16 %v1528, %v1523
        %v2324 = vpack.c.b16 %v1529, %v1524
        %v2325 = vpack.c.b16 %v1530, %v1525
        %v2326 = vpack.c.b16 %v1536, %v1531
        %v2327 = vpack.c.b16 %v1537, %v1532
        %v2328 = vpack.c.b16 %v1538, %v1533
        %v2329 = vpack.c.b16 %v1539, %v1534
        %v2330 = vpack.c.b16 %v1540, %v1535
        %v2331 = vpack.c.b16 %v1546, %v1541
        %v2332 = vpack.c.b16 %v1547, %v1542
        %v2333 = vpack.c.b16 %v1548, %v1543
        %v2334 = vpack.c.b16 %v1549, %v1544
        %v2335 = vpack.c.b16 %v1550, %v1545
        %v2336 = vpack.c.b16 %v1556, %v1551
        %v2337 = vpack.c.b16 %v1557, %v1552
        %v2338 = vpack.c.b16 %v1558, %v1553
        %v2339 = vpack.c.b16 %v1559, %v1554
        %v2340 = vpack.c.b16 %v1560, %v1555
        %v2341 = vpack.c.b16 %v1566, %v1561
        %v2342 = vpack.c.b16 %v1567, %v1562
        %v2343 = vpack.c.b16 %v1568, %v1563
        %v2344 = vpack.c.b16 %v1569, %v1564
        %v2345 = vpack.c.b16 %v1570, %v1565
        %v2346 = vpack.c.b16 %v1576, %v1571
        %v2347 = vpack.c.b16 %v1577, %v1572
        %v2348 = vpack.c.b16 %v1578, %v1573
        %v2349 = vpack.c.b16 %v1579, %v1574
        %v2350 = vpack.c.b16 %v1580, %v1575
        %v2351 = vpack.c.b16 %v1586, %v1581
        %v2352 = vpack.c.b16 %v1587, %v1582
        %v2353 = vpack.c.b16 %v1588, %v1583
        %v2354 = vpack.c.b16 %v1589, %v1584
        %v2355 = vpack.c.b16 %v1590, %v1585
        %v2356 = vpack.c.b16 %v1596, %v1591
        %v2357 = vpack.c.b16 %v1597, %v1592
        %v2358 = vpack.c.b16 %v1598, %v1593
        %v2359 = vpack.c.b16 %v1599, %v1594
        %v2360 = vpack.c.b16 %v1600, %v1595
        %v2361 = vpack.c.b16 %v1606, %v1601
        %v2362 = vpack.c.b16 %v1607, %v1602
        %v2363 = vpack.c.b16 %v1608, %v1603
        %v2364 = vpack.c.b16 %v1609, %v1604
        %v2365 = vpack.c.b16 %v1610, %v1605
        %v2366 = vpack.c.b16 %v1616, %v1611
        %v2367 = vpack.c.b16 %v1617, %v1612
        %v2368 = vpack.c.b16 %v1618, %v1613
        %v2369 = vpack.c.b16 %v1619, %v1614
        %v2370 = vpack.c.b16 %v1620, %v1615
        %v2371 = vpack.c.b16 %v1626, %v1621
        %v2372 = vpack.c.b16 %v1627, %v1622
        %v2373 = vpack.c.b16 %v1628, %v1623
        %v2374 = vpack.c.b16 %v1629, %v1624
        %v2375 = vpack.c.b16 %v1630, %v1625
        %v2376 = vpack.c.b16 %v1636, %v1631
        %v2377 = vpack.c.b16 %v1637, %v1632
        %v2378 = vpack.c.b16 %v1638, %v1633
        %v2379 = vpack.c.b16 %v1639, %v1634
        %v2380 = vpack.c.b16 %v1640, %v1635
        %v2381 = vpack.c.b16 %v1646, %v1641
        %v2382 = vpack.c.b16 %v1647, %v1642
        %v2383 = vpack.c.b16 %v1648, %v1643
        %v2384 = vpack.c.b16 %v1649, %v1644
        %v2385 = vpack.c.b16 %v1650, %v1645
        %v2386 = vpack.c.b16 %v1656, %v1651
        %v2387 = vpack.c.b16 %v1657, %v1652
        %v2388 = vpack.c.b16 %v1658, %v1653
        %v2389 = vpack.c.b16 %v1659, %v1654
        %v2390 = vpack.c.b16 %v1660, %v1655
        %v2391 = vpack.c.b16 %v1666, %v1661
        %v2392 = vpack.c.b16 %v1667, %v1662
        %v2393 = vpack.c.b16 %v1668, %v1663
        %v2394 = vpack.c.b16 %v1669, %v1664
        %v2395 = vpack.c.b16 %v1670, %v1665
        %v2396 = vpack.c.b16 %v1676, %v1671
        %v2397 = vpack.c.b16 %v1677, %v1672
        %v2398 = vpack.c.b16 %v1678, %v1673
        %v2399 = vpack.c.b16 %v1679, %v1674
        %v2400 = vpack.c.b16 %v1680, %v1675
        %v2401 = vpack.c.b16 %v1686, %v1681
        %v2402 = vpack.c.b16 %v1687, %v1682
        %v2403 = vpack.c.b16 %v1688, %v1683
        %v2404 = vpack.c.b16 %v1689, %v1684
        %v2405 = vpack.c.b16 %v1690, %v1685
        %v2406 = vpack.c.b16 %v1696, %v1691
        %v2407 = vpack.c.b16 %v1697, %v1692
        %v2408 = vpack.c.b16 %v1698, %v1693
        %v2409 = vpack.c.b16 %v1699, %v1694
        %v2410 = vpack.c.b16 %v1700, %v1695
        %v2411 = vpack.c.b16 %v1706, %v1701
        %v2412 = vpack.c.b16 %v1707, %v1702
        %v2413 = vpack.c.b16 %v1708, %v1703
        %v2414 = vpack.c.b16 %v1709, %v1704
        %v2415 = vpack.c.b16 %v1710, %v1705
        %v2416 = vpack.c.b16 %v1716, %v1711
        %v2417 = vpack.c.b16 %v1717, %v1712
        %v2418 = vpack.c.b16 %v1718, %v1713
        %v2419 = vpack.c.b16 %v1719, %v1714
        %v2420 = vpack.c.b16 %v1720, %v1715
        %v2421 = vpack.c.b16 %v1726, %v1721
        %v2422 = vpack.c.b16 %v1727, %v1722
        %v2423 = vpack.c.b16 %v1728, %v1723
        %v2424 = vpack.c.b16 %v1729, %v1724
        %v2425 = vpack.c.b16 %v1730, %v1725
        %v2426 = vpack.c.b16 %v1736, %v1731
        %v2427 = vpack.c.b16 %v1737, %v1732
        %v2428 = vpack.c.b16 %v1738, %v1733
        %v2429 = vpack.c.b16 %v1739, %v1734
        %v2430 = vpack.c.b16 %v1740, %v1735
        %v2431 = vpack.c.b16 %v1746, %v1741
        %v2432 = vpack.c.b16 %v1747, %v1742
        %v2433 = vpack.c.b16 %v1748, %v1743
        %v2434 = vpack.c.b16 %v1749, %v1744
        %v2435 = vpack.c.b16 %v1750, %v1745
        %v2436 = vpack.c.b16 %v1756, %v1751
        %v2437 = vpack.c.b16 %v1757, %v1752
        %v2438 = vpack.c.b16 %v1758, %v1753
        %v2439 = vpack.c.b16 %v1759, %v1754
        %v2440 = vpack.c.b16 %v1760, %v1755
        %v2441 = vpack.c.b16 %v1766, %v1761
        %v2442 = vpack.c.b16 %v1767, %v1762
        %v2443 = vpack.c.b16 %v1768, %v1763
        %v2444 = vpack.c.b16 %v1769, %v1764
        %v2445 = vpack.c.b16 %v1770, %v1765
        %v2446 = vpack.c.b16 %v1776, %v1771
        %v2447 = vpack.c.b16 %v1777, %v1772
        %v2448 = vpack.c.b16 %v1778, %v1773
        %v2449 = vpack.c.b16 %v1779, %v1774
        %v2450 = vpack.c.b16 %v1780, %v1775
        %v2451 = vpack.c.b16 %v1786, %v1781
        %v2452 = vpack.c.b16 %v1787, %v1782
        %v2453 = vpack.c.b16 %v1788, %v1783
        %v2454 = vpack.c.b16 %v1789, %v1784
        %v2455 = vpack.c.b16 %v1790, %v1785
        %v2456 = vpack.c.b16 %v1796, %v1791
        %v2457 = vpack.c.b16 %v1797, %v1792
        %v2458 = vpack.c.b16 %v1798, %v1793
        %v2459 = vpack.c.b16 %v1799, %v1794
        %v2460 = vpack.c.b16 %v1800, %v1795
        %v2461 = vpack.c.b16 %v1806, %v1801
        %v2462 = vpack.c.b16 %v1807, %v1802
        %v2463 = vpack.c.b16 %v1808, %v1803
        %v2464 = vpack.c.b16 %v1809, %v1804
        %v2465 = vpack.c.b16 %v1810, %v1805
        %v2466 = vpack.c.b16 %v1816, %v1811
        %v2467 = vpack.c.b16 %v1817, %v1812
        %v2468 = vpack.c.b16 %v1818, %v1813
        %v2469 = vpack.c.b16 %v1819, %v1814
        %v2470 = vpack.c.b16 %v1820, %v1815
        %v2471 = vpack.c.b16 %v1826, %v1821
        %v2472 = vpack.c.b16 %v1827, %v1822
        %v2473 = vpack.c.b16 %v1828, %v1823
        %v2474 = vpack.c.b16 %v1829, %v1824
        %v2475 = vpack.c.b16 %v1830, %v1825
        %v2476 = vpack.c.b16 %v1836, %v1831
        %v2477 = vpack.c.b16 %v1837, %v1832
        %v2478 = vpack.c.b16 %v1838, %v1833
        %v2479 = vpack.c.b16 %v1839, %v1834
        %v2480 = vpack.c.b16 %v1840, %v1835
        %v2481 = vpack.c.b16 %v1846, %v1841
        %v2482 = vpack.c.b16 %v1847, %v1842
        %v2483 = vpack.c.b16 %v1848, %v1843
        %v2484 = vpack.c.b16 %v1849, %v1844
        %v2485 = vpack.c.b16 %v1850, %v1845
        %v2486 = vpack.c.b16 %v1856, %v1851
        %v2487 = vpack.c.b16 %v1857, %v1852
        %v2488 = vpack.c.b16 %v1858, %v1853
        %v2489 = vpack.c.b16 %v1859, %v1854
        %v2490 = vpack.c.b16 %v1860, %v1855
        %v2491 = vpack.c.b16 %v1866, %v1861
        %v2492 = vpack.c.b16 %v1867, %v1862
        %v2493 = vpack.c.b16 %v1868, %v1863
        %v2494 = vpack.c.b16 %v1869, %v1864
        %v2495 = vpack.c.b16 %v1870, %v1865
        %v2496 = vpack.c.b16 %v1876, %v1871
        %v2497 = vpack.c.b16 %v1877, %v1872
        %v2498 = vpack.c.b16 %v1878, %v1873
        %v2499 = vpack.c.b16 %v1879, %v1874
        %v2500 = vpack.c.b16 %v1880, %v1875
        %v2501 = vpack.c.b16 %v1886, %v1881
        %v2502 = vpack.c.b16 %v1887, %v1882
        %v2503 = vpack.c.b16 %v1888, %v1883
        %v2504 = vpack.c.b16 %v1889, %v1884
        %v2505 = vpack.c.b16 %v1890, %v1885
        %v2506 = vpack.c.b16 %v1896, %v1891
        %v2507 = vpack.c.b16 %v1897, %v1892
        %v2508 = vpack.c.b16 %v1898, %v1893
        %v2509 = vpack.c.b16 %v1899, %v1894
        %v2510 = vpack.c.b16 %v1900, %v1895
        %v2511 = vpack.c.b16 %v1906, %v1901
        %v2512 = vpack.c.b16 %v1907, %v1902
        %v2513 = vpack.c.b16 %v1908, %v1903
        %v2514 = vpack.c.b16 %v1909, %v1904
        %v2515 = vpack.c.b16 %v1910, %v1905
        %v2516 = vpack.c.b16 %v1916, %v1911
        %v2517 = vpack.c.b16 %v1917, %v1912
        %v2518 = vpack.c.b16 %v1918, %v1913
        %v2519 = vpack.c.b16 %v1919, %v1914
        %v2520 = vpack.c.b16 %v1920, %v1915
        %v2521 = vpack.c.b16 %v1926, %v1921
        %v2522 = vpack.c.b16 %v1927, %v1922
        %v2523 = vpack.c.b16 %v1928, %v1923
        %v2524 = vpack.c.b16 %v1929, %v1924
        %v2525 = vpack.c.b16 %v1930, %v1925
        %v2526 = vpack.c.b16 %v1936, %v1931
        %v2527 = vpack.c.b16 %v1937, %v1932
        %v2528 = vpack.c.b16 %v1938, %v1933
        %v2529 = vpack.c.b16 %v1939, %v1934
        %v2530 = vpack.c.b16 %v1940, %v1935
        %v2531 = vpack.c.b16 %v1946, %v1941
        %v2532 = vpack.c.b16 %v1947, %v1942
        %v2533 = vpack.c.b16 %v1948, %v1943
        %v2534 = vpack.c.b16 %v1949, %v1944
        %v2535 = vpack.c.b16 %v1950, %v1945
        %v2536 = vpack.c.b16 %v1956, %v1951
        %v2537 = vpack.c.b16 %v1957, %v1952
        %v2538 = vpack.c.b16 %v1958, %v1953
        %v2539 = vpack.c.b16 %v1959, %v1954
        %v2540 = vpack.c.b16 %v1960, %v1955
        %v2541 = vpack.c.b16 %v1966, %v1961
        %v2542 = vpack.c.b16 %v1967, %v1962
        %v2543 = vpack.c.b16 %v1968, %v1963
        %v2544 = vpack.c.b16 %v1969, %v1964
        %v2545 = vpack.c.b16 %v1970, %v1965
        %v2546 = vpack.c.b16 %v1976, %v1971
        %v2547 = vpack.c.b16 %v1977, %v1972
        %v2548 = vpack.c.b16 %v1978, %v1973
        %v2549 = vpack.c.b16 %v1979, %v1974
        %v2550 = vpack.c.b16 %v1980, %v1975
        %v2551 = vpack.c.b16 %v1986, %v1981
        %v2552 = vpack.c.b16 %v1987, %v1982
        %v2553 = vpack.c.b16 %v1988, %v1983
        %v2554 = vpack.c.b16 %v1989, %v1984
        %v2555 = vpack.c.b16 %v1990, %v1985
        %v2556 = vpack.c.b16 %v1996, %v1991
        %v2557 = vpack.c.b16 %v1997, %v1992
        %v2558 = vpack.c.b16 %v1998, %v1993
        %v2559 = vpack.c.b16 %v1999, %v1994
        %v2560 = vpack.c.b16 %v2000, %v1995
        %v2561 = vpack.c.b16 %v2006, %v2001
        %v2562 = vpack.c.b16 %v2007, %v2002
        %v2563 = vpack.c.b16 %v2008, %v2003
        %v2564 = vpack.c.b16 %v2009, %v2004
        %v2565 = vpack.c.b16 %v2010, %v2005
        %v2566 = vpack.c.b16 %v2016, %v2011
        %v2567 = vpack.c.b16 %v2017, %v2012
        %v2568 = vpack.c.b16 %v2018, %v2013
        %v2569 = vpack.c.b16 %v2019, %v2014
        %v2570 = vpack.c.b16 %v2020, %v2015
        %v2571 = vpack.c.b16 %v2026, %v2021
        %v2572 = vpack.c.b16 %v2027, %v2022
        %v2573 = vpack.c.b16 %v2028, %v2023
        %v2574 = vpack.c.b16 %v2029, %v2024
        %v2575 = vpack.c.b16 %v2030, %v2025
        %v2576 = vpack.c.b16 %v2036, %v2031
        %v2577 = vpack.c.b16 %v2037, %v2032
        %v2578 = vpack.c.b16 %v2038, %v2033
        %v2579 = vpack.c.b16 %v2039, %v2034
        %v2580 = vpack.c.b16 %v2040, %v2035
        %v2581 = vpack.c.b16 %v2046, %v2041
        %v2582 = vpack.c.b16 %v2047, %v2042
        %v2583 = vpack.c.b16 %v2048, %v2043
        %v2584 = vpack.c.b16 %v2049, %v2044
        %v2585 = vpack.c.b16 %v2050, %v2045
        %v2586 = vpack.c.b16 %v2056, %v2051
        %v2587 = vpack.c.b16 %v2057, %v2052
        %v2588 = vpack.c.b16 %v2058, %v2053
        %v2589 = vpack.c.b16 %v2059, %v2054
        %v2590 = vpack.c.b16 %v2060, %v2055
        %v2591 = vpack.c.b16 %v2066, %v2061
        %v2592 = vpack.c.b16 %v2067, %v2062
        %v2593 = vpack.c.b16 %v2068, %v2063
        %v2594 = vpack.c.b16 %v2069, %v2064
        %v2595 = vpack.c.b16 %v2070, %v2065
        %v2596 = vpack.c.b16 %v2076, %v2071
        %v2597 = vpack.c.b16 %v2077, %v2072
        %v2598 = vpack.c.b16 %v2078, %v2073
        %v2599 = vpack.c.b16 %v2079, %v2074
        %v2600 = vpack.c.b16 %v2080, %v2075
        %v2601 = vpack.c.b16 %v2086, %v2081
        %v2602 = vpack.c.b16 %v2087, %v2082
        %v2603 = vpack.c.b16 %v2088, %v2083
        %v2604 = vpack.c.b16 %v2089, %v2084
        %v2605 = vpack.c.b16 %v2090, %v2085
        %v2606 = vpack.c.b16 %v2096, %v2091
        %v2607 = vpack.c.b16 %v2097, %v2092
        %v2608 = vpack.c.b16 %v2098, %v2093
        %v2609 = vpack.c.b16 %v2099, %v2094
        %v2610 = vpack.c.b16 %v2100, %v2095
        %v2611 = vpack.c.b16 %v2106, %v2101
        %v2612 = vpack.c.b16 %v2107, %v2102
        %v2613 = vpack.c.b16 %v2108, %v2103
        %v2614 = vpack.c.b16 %v2109, %v2104
        %v2615 = vpack.c.b16 %v2110, %v2105
        %v2616 = vpack.c.b16 %v2116, %v2111
        %v2617 = vpack.c.b16 %v2117, %v2112
        %v2618 = vpack.c.b16 %v2118, %v2113
        %v2619 = vpack.c.b16 %v2119, %v2114
        %v2620 = vpack.c.b16 %v2120, %v2115
        %v2621 = vpack.c.b16 %v2126, %v2121
        %v2622 = vpack.c.b16 %v2127, %v2122
        %v2623 = vpack.c.b16 %v2128, %v2123
        %v2624 = vpack.c.b16 %v2129, %v2124
        %v2625 = vpack.c.b16 %v2130, %v2125
        %v2626 = vpack.c.b16 %v2136, %v2131
        %v2627 = vpack.c.b16 %v2137, %v2132
        %v2628 = vpack.c.b16 %v2138, %v2133
        %v2629 = vpack.c.b16 %v2139, %v2134
        %v2630 = vpack.c.b16 %v2140, %v2135
        %v2631 = vpack.c.b16 %v2146, %v2141
        %v2632 = vpack.c.b16 %v2147, %v2142
        %v2633 = vpack.c.b16 %v2148, %v2143
        %v2634 = vpack.c.b16 %v2149, %v2144
        %v2635 = vpack.c.b16 %v2150, %v2145
        %v2636 = vpack.c.b16 %v2156, %v2151
        %v2637 = vpack.c.b16 %v2157, %v2152
        %v2638 = vpack.c.b16 %v2158, %v2153
        %v2639 = vpack.c.b16 %v2159, %v2154
        %v2640 = vpack.c.b16 %v2160, %v2155
        %v2641 = vpack.c.b16 %v2166, %v2161
        %v2642 = vpack.c.b16 %v2167, %v2162
        %v2643 = vpack.c.b16 %v2168, %v2163
        %v2644 = vpack.c.b16 %v2169, %v2164
        %v2645 = vpack.c.b16 %v2170, %v2165
        %v2646 = vpack.c.b16 %v2176, %v2171
        %v2647 = vpack.c.b16 %v2177, %v2172
        %v2648 = vpack.c.b16 %v2178, %v2173
        %v2649 = vpack.c.b16 %v2179, %v2174
        %v2650 = vpack.c.b16 %v2180, %v2175
        %v2651 = vpack.c.b16 %v2186, %v2181
        %v2652 = vpack.c.b16 %v2187, %v2182
        %v2653 = vpack.c.b16 %v2188, %v2183
        %v2654 = vpack.c.b16 %v2189, %v2184
        %v2655 = vpack.c.b16 %v2190, %v2185
        %v2656 = vpack.c.b16 %v2196, %v2191
        %v2657 = vpack.c.b16 %v2197, %v2192
        %v2658 = vpack.c.b16 %v2198, %v2193
        %v2659 = vpack.c.b16 %v2199, %v2194
        %v2660 = vpack.c.b16 %v2200, %v2195
        %v2661 = vpack.c.b16 %v2206, %v2201
        %v2662 = vpack.c.b16 %v2207, %v2202
        %v2663 = vpack.c.b16 %v2208, %v2203
        %v2664 = vpack.c.b16 %v2209, %v2204
        %v2665 = vpack.c.b16 %v2210, %v2205
        %v2666 = vpack.c.b16 %v2216, %v2211
        %v2667 = vpack.c.b16 %v2217, %v2212
        %v2668 = vpack.c.b16 %v2218, %v2213
        %v2669 = vpack.c.b16 %v2219, %v2214
        %v2670 = vpack.c.b16 %v2220, %v2215
        %v2671 = vpack.c.b16 %v2226, %v2221
        %v2672 = vpack.c.b16 %v2227, %v2222
        %v2673 = vpack.c.b16 %v2228, %v2223
        %v2674 = vpack.c.b16 %v2229, %v2224
        %v2675 = vpack.c.b16 %v2230, %v2225
        %v2676 = vpack.c.b16 %v2236, %v2231
        %v2677 = vpack.c.b16 %v2237, %v2232
        %v2678 = vpack.c.b16 %v2238, %v2233
        %v2679 = vpack.c.b16 %v2239, %v2234
        %v2680 = vpack.c.b16 %v2240, %v2235
        %v2681 = vpack.c.b16 %v2246, %v2241
        %v2682 = vpack.c.b16 %v2247, %v2242
        %v2683 = vpack.c.b16 %v2248, %v2243
        %v2684 = vpack.c.b16 %v2249, %v2244
        %v2685 = vpack.c.b16 %v2250, %v2245
        %v2686 = vpack.c.b16 %v2256, %v2251
        %v2687 = vpack.c.b16 %v2257, %v2252
        %v2688 = vpack.c.b16 %v2258, %v2253
        %v2689 = vpack.c.b16 %v2259, %v2254
        %v2690 = vpack.c.b16 %v2260, %v2255
        %v2691 = vpack.c.b16 %v2266, %v2261
        %v2692 = vpack.c.b16 %v2267, %v2262
        %v2693 = vpack.c.b16 %v2268, %v2263
        %v2694 = vpack.c.b16 %v2269, %v2264
        %v2695 = vpack.c.b16 %v2270, %v2265
        %v2696 = vpack.c.b16 %v2276, %v2271
        %v2697 = vpack.c.b16 %v2277, %v2272
        %v2698 = vpack.c.b16 %v2278, %v2273
        %v2699 = vpack.c.b16 %v2279, %v2274
        %v2700 = vpack.c.b16 %v2280, %v2275
        %v2701 = vpack.c.b16 %v2286, %v2281
        %v2702 = vpack.c.b16 %v2287, %v2282
        %v2703 = vpack.c.b16 %v2288, %v2283
        %v2704 = vpack.c.b16 %v2289, %v2284
        %v2705 = vpack.c.b16 %v2290, %v2285
        %v2706 = vpack.c.b16 %v2296, %v2291
        %v2707 = vpack.c.b16 %v2297, %v2292
        %v2708 = vpack.c.b16 %v2298, %v2293
        %v2709 = vpack.c.b16 %v2299, %v2294
        %v2710 = vpack.c.b16 %v2300, %v2295
        %v2711 = vpack.c.b16 %v2306, %v2301
        %v2712 = vpack.c.b16 %v2307, %v2302
        %v2713 = vpack.c.b16 %v2308, %v2303
        %v2714 = vpack.c.b16 %v2309, %v2304
        %v2715 = vpack.c.b16 %v2310, %v2305
        %v2716 = vpack.c.b16 %v2316, %v2311
        %v2717 = vpack.c.b16 %v2317, %v2312
        %v2718 = vpack.c.b16 %v2318, %v2313
        %v2719 = vpack.c.b16 %v2319, %v2314
        %v2720 = vpack.c.b16 %v2320, %v2315
        %3121 = vmatprep.subr.bf16.mxu0 %v2322
        %3122 = vmatpush1.bf16.msra.mxu0 %v2321
        %3123 = vmatprep.subr.bf16.mxu0 %v2327
        %3124 = vmatpush1.bf16.msra.mxu0 %v2326
        %3125 = vmatprep.subr.bf16.mxu0 %v2332
        %3126 = vmatpush1.bf16.msra.mxu0 %v2331
        %3127 = vmatprep.subr.bf16.mxu0 %v2337
        %3128 = vmatpush1.bf16.msra.mxu0 %v2336
        %3129 = vmatprep.subr.bf16.mxu0 %v2342
        %3130 = vmatpush1.bf16.msra.mxu0 %v2341
        %3131 = vmatprep.subr.bf16.mxu0 %v2347
        %3132 = vmatpush1.bf16.msra.mxu0 %v2346
        %3133 = vmatprep.subr.bf16.mxu0 %v2352
        %3134 = vmatpush1.bf16.msra.mxu0 %v2351
        %3135 = vmatprep.subr.bf16.mxu0 %v2357
        %3136 = vmatpush1.bf16.msra.mxu0 %v2356
        %3137 = vmatprep.subr.bf16.mxu0 %v2362
        %3138 = vmatpush1.bf16.msra.mxu0 %v2361
        %3139 = vmatprep.subr.bf16.mxu0 %v2367
        %3140 = vmatpush1.bf16.msra.mxu0 %v2366
        %3141 = vmatprep.subr.bf16.mxu0 %v2372
        %3142 = vmatpush1.bf16.msra.mxu0 %v2371
        %3143 = vmatprep.subr.bf16.mxu0 %v2377
        %3144 = vmatpush1.bf16.msra.mxu0 %v2376
        %3145 = vmatprep.subr.bf16.mxu0 %v2382
        %3146 = vmatpush1.bf16.msra.mxu0 %v2381
        %3147 = vmatprep.subr.bf16.mxu0 %v2387
        %3148 = vmatpush1.bf16.msra.mxu0 %v2386
        %3149 = vmatprep.subr.bf16.mxu0 %v2392
        %3150 = vmatpush1.bf16.msra.mxu0 %v2391
        %3151 = vmatprep.subr.bf16.mxu0 %v2397
        %3152 = vmatpush1.bf16.msra.mxu0 %v2396
        %3153 = vmatprep.mubr.bf16.mxu0 %v1022
        %3154 = vmatmul.mubr.bf16.gmra.mrb[0].mxu0 %v1021
        %v3155 = vpop.f32.mrb[0].mxu0
        %v3156 = vadd.f32 %v969, %v3155
        %v3157 = vpop.f32.mrb[0].mxu0
        %v3158 = vadd.f32 %v973, %v3157
        %v3159 = vpop.f32.mrb[0].mxu0
        %v3160 = vadd.f32 %v969, %v3159
        %v3161 = vpop.f32.mrb[0].mxu0
        %v3162 = vadd.f32 %v973, %v3161
        %3163 = vdwg.mxu0
        %3164 = vmatprep.subr.bf16.mxu0 %v2402
        %3165 = vmatpush1.bf16.msra.mxu0 %v2401
        %3166 = vmatprep.subr.bf16.mxu0 %v2407
        %3167 = vmatpush1.bf16.msra.mxu0 %v2406
        %3168 = vmatprep.subr.bf16.mxu0 %v2412
        %3169 = vmatpush1.bf16.msra.mxu0 %v2411
        %3170 = vmatprep.subr.bf16.mxu0 %v2417
        %3171 = vmatpush1.bf16.msra.mxu0 %v2416
        %3172 = vmatprep.subr.bf16.mxu0 %v2422
        %3173 = vmatpush1.bf16.msra.mxu0 %v2421
        %3174 = vmatprep.subr.bf16.mxu0 %v2427
        %3175 = vmatpush1.bf16.msra.mxu0 %v2426
        %3176 = vmatprep.subr.bf16.mxu0 %v2432
        %3177 = vmatpush1.bf16.msra.mxu0 %v2431
        %3178 = vmatprep.subr.bf16.mxu0 %v2437
        %3179 = vmatpush1.bf16.msra.mxu0 %v2436
        %3180 = vmatprep.subr.bf16.mxu0 %v2442
        %3181 = vmatpush1.bf16.msra.mxu0 %v2441
        %3182 = vmatprep.subr.bf16.mxu0 %v2447
        %3183 = vmatpush1.bf16.msra.mxu0 %v2446
        %3184 = vmatprep.subr.bf16.mxu0 %v2452
        %3185 = vmatpush1.bf16.msra.mxu0 %v2451
        %3186 = vmatprep.subr.bf16.mxu0 %v2457
        %3187 = vmatpush1.bf16.msra.mxu0 %v2456
        %3188 = vmatprep.subr.bf16.mxu0 %v2462
        %3189 = vmatpush1.bf16.msra.mxu0 %v2461
        %3190 = vmatprep.subr.bf16.mxu0 %v2467
        %3191 = vmatpush1.bf16.msra.mxu0 %v2466
        %3192 = vmatprep.subr.bf16.mxu0 %v2472
        %3193 = vmatpush1.bf16.msra.mxu0 %v2471
        %3194 = vmatprep.subr.bf16.mxu0 %v2477
        %3195 = vmatpush1.bf16.msra.mxu0 %v2476
        %3196 = vmatprep.mubr.bf16.mxu0 %v1024
        %3197 = vmatmul.mubr.bf16.gmra.mrb[0].mxu0 %v1023
        %v3198 = vpop.f32.mrb[0].mxu0
        %v3199 = vadd.f32 %v3156, %v3198
        %v3200 = vpop.f32.mrb[0].mxu0
        %v3201 = vadd.f32 %v3158, %v3200
        %v3202 = vpop.f32.mrb[0].mxu0
        %v3203 = vadd.f32 %v3160, %v3202
        %v3204 = vpop.f32.mrb[0].mxu0
        %v3205 = vadd.f32 %v3162, %v3204
        %3206 = vdwg.mxu0
        %3207 = vmatprep.subr.bf16.mxu0 %v2482
        %3208 = vmatpush1.bf16.msra.mxu0 %v2481
        %3209 = vmatprep.subr.bf16.mxu0 %v2487
        %3210 = vmatpush1.bf16.msra.mxu0 %v2486
        %3211 = vmatprep.subr.bf16.mxu0 %v2492
        %3212 = vmatpush1.bf16.msra.mxu0 %v2491
        %3213 = vmatprep.subr.bf16.mxu0 %v2497
        %3214 = vmatpush1.bf16.msra.mxu0 %v2496
        %3215 = vmatprep.subr.bf16.mxu0 %v2502
        %3216 = vmatpush1.bf16.msra.mxu0 %v2501
        %3217 = vmatprep.subr.bf16.mxu0 %v2507
        %3218 = vmatpush1.bf16.msra.mxu0 %v2506
        %3219 = vmatprep.subr.bf16.mxu0 %v2512
        %3220 = vmatpush1.bf16.msra.mxu0 %v2511
        %3221 = vmatprep.subr.bf16.mxu0 %v2517
        %3222 = vmatpush1.bf16.msra.mxu0 %v2516
        %3223 = vmatprep.subr.bf16.mxu0 %v2522
        %3224 = vmatpush1.bf16.msra.mxu0 %v2521
        %3225 = vmatprep.subr.bf16.mxu0 %v2527
        %3226 = vmatpush1.bf16.msra.mxu0 %v2526
        %3227 = vmatprep.subr.bf16.mxu0 %v2532
        %3228 = vmatpush1.bf16.msra.mxu0 %v2531
        %3229 = vmatprep.subr.bf16.mxu0 %v2537
        %3230 = vmatpush1.bf16.msra.mxu0 %v2536
        %3231 = vmatprep.subr.bf16.mxu0 %v2542
        %3232 = vmatpush1.bf16.msra.mxu0 %v2541
        %3233 = vmatprep.subr.bf16.mxu0 %v2547
        %3234 = vmatpush1.bf16.msra.mxu0 %v2546
        %3235 = vmatprep.subr.bf16.mxu0 %v2552
        %3236 = vmatpush1.bf16.msra.mxu0 %v2551
        %3237 = vmatprep.subr.bf16.mxu0 %v2557
        %3238 = vmatpush1.bf16.msra.mxu0 %v2556
        %3239 = vmatprep.mubr.bf16.mxu0 %v1026
        %3240 = vmatmul.mubr.bf16.gmra.mrb[0].mxu0 %v1025
        %v3241 = vpop.f32.mrb[0].mxu0
        %v3242 = vadd.f32 %v3199, %v3241
        %v3243 = vpop.f32.mrb[0].mxu0
        %v3244 = vadd.f32 %v3201, %v3243
        %v3245 = vpop.f32.mrb[0].mxu0
        %v3246 = vadd.f32 %v3203, %v3245
        %v3247 = vpop.f32.mrb[0].mxu0
        %v3248 = vadd.f32 %v3205, %v3247
        %3249 = vdwg.mxu0
        %3250 = vmatprep.subr.bf16.mxu0 %v2562
        %3251 = vmatpush1.bf16.msra.mxu0 %v2561
        %3252 = vmatprep.subr.bf16.mxu0 %v2567
        %3253 = vmatpush1.bf16.msra.mxu0 %v2566
        %3254 = vmatprep.subr.bf16.mxu0 %v2572
        %3255 = vmatpush1.bf16.msra.mxu0 %v2571
        %3256 = vmatprep.subr.bf16.mxu0 %v2577
        %3257 = vmatpush1.bf16.msra.mxu0 %v2576
        %3258 = vmatprep.subr.bf16.mxu0 %v2582
        %3259 = vmatpush1.bf16.msra.mxu0 %v2581
        %3260 = vmatprep.subr.bf16.mxu0 %v2587
        %3261 = vmatpush1.bf16.msra.mxu0 %v2586
        %3262 = vmatprep.subr.bf16.mxu0 %v2592
        %3263 = vmatpush1.bf16.msra.mxu0 %v2591
        %3264 = vmatprep.subr.bf16.mxu0 %v2597
        %3265 = vmatpush1.bf16.msra.mxu0 %v2596
        %3266 = vmatprep.subr.bf16.mxu0 %v2602
        %3267 = vmatpush1.bf16.msra.mxu0 %v2601
        %3268 = vmatprep.subr.bf16.mxu0 %v2607
        %3269 = vmatpush1.bf16.msra.mxu0 %v2606
        %3270 = vmatprep.subr.bf16.mxu0 %v2612
        %3271 = vmatpush1.bf16.msra.mxu0 %v2611
        %3272 = vmatprep.subr.bf16.mxu0 %v2617
        %3273 = vmatpush1.bf16.msra.mxu0 %v2616
        %3274 = vmatprep.subr.bf16.mxu0 %v2622
        %3275 = vmatpush1.bf16.msra.mxu0 %v2621
        %3276 = vmatprep.subr.bf16.mxu0 %v2627
        %3277 = vmatpush1.bf16.msra.mxu0 %v2626
        %3278 = vmatprep.subr.bf16.mxu0 %v2632
        %3279 = vmatpush1.bf16.msra.mxu0 %v2631
        %3280 = vmatprep.subr.bf16.mxu0 %v2637
        %3281 = vmatpush1.bf16.msra.mxu0 %v2636
        %3282 = vmatprep.mubr.bf16.mxu0 %v1028
        %3283 = vmatmul.mubr.bf16.gmra.mrb[0].mxu0 %v1027
        %v3284 = vpop.f32.mrb[0].mxu0
        %v3285 = vadd.f32 %v3242, %v3284
        %v3286 = vpop.f32.mrb[0].mxu0
        %v3287 = vadd.f32 %v3244, %v3286
        %v3288 = vpop.f32.mrb[0].mxu0
        %v3289 = vadd.f32 %v3246, %v3288
        %v3290 = vpop.f32.mrb[0].mxu0
        %v3291 = vadd.f32 %v3248, %v3290
        %3292 = vdwg.mxu0
        %3293 = vmatprep.subr.bf16.mxu0 %v2642
        %3294 = vmatpush1.bf16.msra.mxu0 %v2641
        %3295 = vmatprep.subr.bf16.mxu0 %v2647
        %3296 = vmatpush1.bf16.msra.mxu0 %v2646
        %3297 = vmatprep.subr.bf16.mxu0 %v2652
        %3298 = vmatpush1.bf16.msra.mxu0 %v2651
        %3299 = vmatprep.subr.bf16.mxu0 %v2657
        %3300 = vmatpush1.bf16.msra.mxu0 %v2656
        %3301 = vmatprep.subr.bf16.mxu0 %v2662
        %3302 = vmatpush1.bf16.msra.mxu0 %v2661
        %3303 = vmatprep.subr.bf16.mxu0 %v2667
        %3304 = vmatpush1.bf16.msra.mxu0 %v2666
        %3305 = vmatprep.subr.bf16.mxu0 %v2672
        %3306 = vmatpush1.bf16.msra.mxu0 %v2671
        %3307 = vmatprep.subr.bf16.mxu0 %v2677
        %3308 = vmatpush1.bf16.msra.mxu0 %v2676
        %3309 = vmatprep.subr.bf16.mxu0 %v2682
        %3310 = vmatpush1.bf16.msra.mxu0 %v2681
        %3311 = vmatprep.subr.bf16.mxu0 %v2687
        %3312 = vmatpush1.bf16.msra.mxu0 %v2686
        %3313 = vmatprep.subr.bf16.mxu0 %v2692
        %3314 = vmatpush1.bf16.msra.mxu0 %v2691
        %3315 = vmatprep.subr.bf16.mxu0 %v2697
        %3316 = vmatpush1.bf16.msra.mxu0 %v2696
        %3317 = vmatprep.subr.bf16.mxu0 %v2702
        %3318 = vmatpush1.bf16.msra.mxu0 %v2701
        %3319 = vmatprep.subr.bf16.mxu0 %v2707
        %3320 = vmatpush1.bf16.msra.mxu0 %v2706
        %3321 = vmatprep.subr.bf16.mxu0 %v2712
        %3322 = vmatpush1.bf16.msra.mxu0 %v2711
        %3323 = vmatprep.subr.bf16.mxu0 %v2717
        %3324 = vmatpush1.bf16.msra.mxu0 %v2716
        %3325 = vmatprep.mubr.bf16.mxu0 %v1030
        %3326 = vmatmul.mubr.bf16.gmra.mrb[0].mxu0 %v1029
        %v3327 = vpop.f32.mrb[0].mxu0
        %v3328 = vadd.f32 %v3285, %v3327
        %v3329 = vpop.f32.mrb[0].mxu0
        %v3330 = vadd.f32 %v3287, %v3329
        %v3331 = vpop.f32.mrb[0].mxu0
        %v3332 = vadd.f32 %v3289, %v3331
        %v3333 = vpop.f32.mrb[0].mxu0
        %v3334 = vadd.f32 %v3291, %v3333
        %3335 = vdwg.mxu0
        %3336 = vmatprep.subr.bf16.mxu0 %v2324
        %3337 = vmatpush1.bf16.msra.mxu0 %v2323
        %3338 = vmatprep.subr.bf16.mxu0 %v2329
        %3339 = vmatpush1.bf16.msra.mxu0 %v2328
        %3340 = vmatprep.subr.bf16.mxu0 %v2334
        %3341 = vmatpush1.bf16.msra.mxu0 %v2333
        %3342 = vmatprep.subr.bf16.mxu0 %v2339
        %3343 = vmatpush1.bf16.msra.mxu0 %v2338
        %3344 = vmatprep.subr.bf16.mxu0 %v2344
        %3345 = vmatpush1.bf16.msra.mxu0 %v2343
        %3346 = vmatprep.subr.bf16.mxu0 %v2349
        %3347 = vmatpush1.bf16.msra.mxu0 %v2348
        %3348 = vmatprep.subr.bf16.mxu0 %v2354
        %3349 = vmatpush1.bf16.msra.mxu0 %v2353
        %3350 = vmatprep.subr.bf16.mxu0 %v2359
        %3351 = vmatpush1.bf16.msra.mxu0 %v2358
        %3352 = vmatprep.subr.bf16.mxu0 %v2364
        %3353 = vmatpush1.bf16.msra.mxu0 %v2363
        %3354 = vmatprep.subr.bf16.mxu0 %v2369
        %3355 = vmatpush1.bf16.msra.mxu0 %v2368
        %3356 = vmatprep.subr.bf16.mxu0 %v2374
        %3357 = vmatpush1.bf16.msra.mxu0 %v2373
        %3358 = vmatprep.subr.bf16.mxu0 %v2379
        %3359 = vmatpush1.bf16.msra.mxu0 %v2378
        %3360 = vmatprep.subr.bf16.mxu0 %v2384
        %3361 = vmatpush1.bf16.msra.mxu0 %v2383
        %3362 = vmatprep.subr.bf16.mxu0 %v2389
        %3363 = vmatpush1.bf16.msra.mxu0 %v2388
        %3364 = vmatprep.subr.bf16.mxu0 %v2394
        %3365 = vmatpush1.bf16.msra.mxu0 %v2393
        %3366 = vmatprep.subr.bf16.mxu0 %v2399
        %3367 = vmatpush1.bf16.msra.mxu0 %v2398
        %3368 = vmatprep.mubr.bf16.mxu0 %v1022
        %3369 = vmatmul.mubr.bf16.gmra.mrb[0].mxu0 %v1021
        %v3370 = vpop.f32.mrb[0].mxu0
        %v3371 = vadd.f32 %v977, %v3370
        %v3372 = vpop.f32.mrb[0].mxu0
        %v3373 = vadd.f32 %v981, %v3372
        %v3374 = vpop.f32.mrb[0].mxu0
        %v3375 = vadd.f32 %v977, %v3374
        %v3376 = vpop.f32.mrb[0].mxu0
        %v3377 = vadd.f32 %v981, %v3376
        %3378 = vdwg.mxu0
        %3379 = vmatprep.subr.bf16.mxu0 %v2404
        %3380 = vmatpush1.bf16.msra.mxu0 %v2403
        %3381 = vmatprep.subr.bf16.mxu0 %v2409
        %3382 = vmatpush1.bf16.msra.mxu0 %v2408
        %3383 = vmatprep.subr.bf16.mxu0 %v2414
        %3384 = vmatpush1.bf16.msra.mxu0 %v2413
        %3385 = vmatprep.subr.bf16.mxu0 %v2419
        %3386 = vmatpush1.bf16.msra.mxu0 %v2418
        %3387 = vmatprep.subr.bf16.mxu0 %v2424
        %3388 = vmatpush1.bf16.msra.mxu0 %v2423
        %3389 = vmatprep.subr.bf16.mxu0 %v2429
        %3390 = vmatpush1.bf16.msra.mxu0 %v2428
        %3391 = vmatprep.subr.bf16.mxu0 %v2434
        %3392 = vmatpush1.bf16.msra.mxu0 %v2433
        %3393 = vmatprep.subr.bf16.mxu0 %v2439
        %3394 = vmatpush1.bf16.msra.mxu0 %v2438
        %3395 = vmatprep.subr.bf16.mxu0 %v2444
        %3396 = vmatpush1.bf16.msra.mxu0 %v2443
        %3397 = vmatprep.subr.bf16.mxu0 %v2449
        %3398 = vmatpush1.bf16.msra.mxu0 %v2448
        %3399 = vmatprep.subr.bf16.mxu0 %v2454
        %3400 = vmatpush1.bf16.msra.mxu0 %v2453
        %3401 = vmatprep.subr.bf16.mxu0 %v2459
        %3402 = vmatpush1.bf16.msra.mxu0 %v2458
        %3403 = vmatprep.subr.bf16.mxu0 %v2464
        %3404 = vmatpush1.bf16.msra.mxu0 %v2463
        %3405 = vmatprep.subr.bf16.mxu0 %v2469
        %3406 = vmatpush1.bf16.msra.mxu0 %v2468
        %3407 = vmatprep.subr.bf16.mxu0 %v2474
        %3408 = vmatpush1.bf16.msra.mxu0 %v2473
        %3409 = vmatprep.subr.bf16.mxu0 %v2479
        %3410 = vmatpush1.bf16.msra.mxu0 %v2478
        %3411 = vmatprep.mubr.bf16.mxu0 %v1024
        %3412 = vmatmul.mubr.bf16.gmra.mrb[0].mxu0 %v1023
        %v3413 = vpop.f32.mrb[0].mxu0
        %v3414 = vadd.f32 %v3371, %v3413
        %v3415 = vpop.f32.mrb[0].mxu0
        %v3416 = vadd.f32 %v3373, %v3415
        %v3417 = vpop.f32.mrb[0].mxu0
        %v3418 = vadd.f32 %v3375, %v3417
        %v3419 = vpop.f32.mrb[0].mxu0
        %v3420 = vadd.f32 %v3377, %v3419
        %3421 = vdwg.mxu0
        %3422 = vmatprep.subr.bf16.mxu0 %v2484
        %3423 = vmatpush1.bf16.msra.mxu0 %v2483
        %3424 = vmatprep.subr.bf16.mxu0 %v2489
        %3425 = vmatpush1.bf16.msra.mxu0 %v2488
        %3426 = vmatprep.subr.bf16.mxu0 %v2494
        %3427 = vmatpush1.bf16.msra.mxu0 %v2493
        %3428 = vmatprep.subr.bf16.mxu0 %v2499
        %3429 = vmatpush1.bf16.msra.mxu0 %v2498
        %3430 = vmatprep.subr.bf16.mxu0 %v2504
        %3431 = vmatpush1.bf16.msra.mxu0 %v2503
        %3432 = vmatprep.subr.bf16.mxu0 %v2509
        %3433 = vmatpush1.bf16.msra.mxu0 %v2508
        %3434 = vmatprep.subr.bf16.mxu0 %v2514
        %3435 = vmatpush1.bf16.msra.mxu0 %v2513
        %3436 = vmatprep.subr.bf16.mxu0 %v2519
        %3437 = vmatpush1.bf16.msra.mxu0 %v2518
        %3438 = vmatprep.subr.bf16.mxu0 %v2524
        %3439 = vmatpush1.bf16.msra.mxu0 %v2523
        %3440 = vmatprep.subr.bf16.mxu0 %v2529
        %3441 = vmatpush1.bf16.msra.mxu0 %v2528
        %3442 = vmatprep.subr.bf16.mxu0 %v2534
        %3443 = vmatpush1.bf16.msra.mxu0 %v2533
        %3444 = vmatprep.subr.bf16.mxu0 %v2539
        %3445 = vmatpush1.bf16.msra.mxu0 %v2538
        %3446 = vmatprep.subr.bf16.mxu0 %v2544
        %3447 = vmatpush1.bf16.msra.mxu0 %v2543
        %3448 = vmatprep.subr.bf16.mxu0 %v2549
        %3449 = vmatpush1.bf16.msra.mxu0 %v2548
        %3450 = vmatprep.subr.bf16.mxu0 %v2554
        %3451 = vmatpush1.bf16.msra.mxu0 %v2553
        %3452 = vmatprep.subr.bf16.mxu0 %v2559
        %3453 = vmatpush1.bf16.msra.mxu0 %v2558
        %3454 = vmatprep.mubr.bf16.mxu0 %v1026
        %3455 = vmatmul.mubr.bf16.gmra.mrb[0].mxu0 %v1025
        %v3456 = vpop.f32.mrb[0].mxu0
        %v3457 = vadd.f32 %v3414, %v3456
        %v3458 = vpop.f32.mrb[0].mxu0
        %v3459 = vadd.f32 %v3416, %v3458
        %v3460 = vpop.f32.mrb[0].mxu0
        %v3461 = vadd.f32 %v3418, %v3460
        %v3462 = vpop.f32.mrb[0].mxu0
        %v3463 = vadd.f32 %v3420, %v3462
        %3464 = vdwg.mxu0
        %3465 = vmatprep.subr.bf16.mxu0 %v2564
        %3466 = vmatpush1.bf16.msra.mxu0 %v2563
        %3467 = vmatprep.subr.bf16.mxu0 %v2569
        %3468 = vmatpush1.bf16.msra.mxu0 %v2568
        %3469 = vmatprep.subr.bf16.mxu0 %v2574
        %3470 = vmatpush1.bf16.msra.mxu0 %v2573
        %3471 = vmatprep.subr.bf16.mxu0 %v2579
        %3472 = vmatpush1.bf16.msra.mxu0 %v2578
        %3473 = vmatprep.subr.bf16.mxu0 %v2584
        %3474 = vmatpush1.bf16.msra.mxu0 %v2583
        %3475 = vmatprep.subr.bf16.mxu0 %v2589
        %3476 = vmatpush1.bf16.msra.mxu0 %v2588
        %3477 = vmatprep.subr.bf16.mxu0 %v2594
        %3478 = vmatpush1.bf16.msra.mxu0 %v2593
        %3479 = vmatprep.subr.bf16.mxu0 %v2599
        %3480 = vmatpush1.bf16.msra.mxu0 %v2598
        %3481 = vmatprep.subr.bf16.mxu0 %v2604
        %3482 = vmatpush1.bf16.msra.mxu0 %v2603
        %3483 = vmatprep.subr.bf16.mxu0 %v2609
        %3484 = vmatpush1.bf16.msra.mxu0 %v2608
        %3485 = vmatprep.subr.bf16.mxu0 %v2614
        %3486 = vmatpush1.bf16.msra.mxu0 %v2613
        %3487 = vmatprep.subr.bf16.mxu0 %v2619
        %3488 = vmatpush1.bf16.msra.mxu0 %v2618
        %3489 = vmatprep.subr.bf16.mxu0 %v2624
        %3490 = vmatpush1.bf16.msra.mxu0 %v2623
        %3491 = vmatprep.subr.bf16.mxu0 %v2629
        %3492 = vmatpush1.bf16.msra.mxu0 %v2628
        %3493 = vmatprep.subr.bf16.mxu0 %v2634
        %3494 = vmatpush1.bf16.msra.mxu0 %v2633
        %3495 = vmatprep.subr.bf16.mxu0 %v2639
        %3496 = vmatpush1.bf16.msra.mxu0 %v2638
        %3497 = vmatprep.mubr.bf16.mxu0 %v1028
        %3498 = vmatmul.mubr.bf16.gmra.mrb[0].mxu0 %v1027
        %v3499 = vpop.f32.mrb[0].mxu0
        %v3500 = vadd.f32 %v3457, %v3499
        %v3501 = vpop.f32.mrb[0].mxu0
        %v3502 = vadd.f32 %v3459, %v3501
        %v3503 = vpop.f32.mrb[0].mxu0
        %v3504 = vadd.f32 %v3461, %v3503
        %v3505 = vpop.f32.mrb[0].mxu0
        %v3506 = vadd.f32 %v3463, %v3505
        %3507 = vdwg.mxu0
        %3508 = vmatprep.subr.bf16.mxu0 %v2644
        %3509 = vmatpush1.bf16.msra.mxu0 %v2643
        %3510 = vmatprep.subr.bf16.mxu0 %v2649
        %3511 = vmatpush1.bf16.msra.mxu0 %v2648
        %3512 = vmatprep.subr.bf16.mxu0 %v2654
        %3513 = vmatpush1.bf16.msra.mxu0 %v2653
        %3514 = vmatprep.subr.bf16.mxu0 %v2659
        %3515 = vmatpush1.bf16.msra.mxu0 %v2658
        %3516 = vmatprep.subr.bf16.mxu0 %v2664
        %3517 = vmatpush1.bf16.msra.mxu0 %v2663
        %3518 = vmatprep.subr.bf16.mxu0 %v2669
        %3519 = vmatpush1.bf16.msra.mxu0 %v2668
        %3520 = vmatprep.subr.bf16.mxu0 %v2674
        %3521 = vmatpush1.bf16.msra.mxu0 %v2673
        %3522 = vmatprep.subr.bf16.mxu0 %v2679
        %3523 = vmatpush1.bf16.msra.mxu0 %v2678
        %3524 = vmatprep.subr.bf16.mxu0 %v2684
        %3525 = vmatpush1.bf16.msra.mxu0 %v2683
        %3526 = vmatprep.subr.bf16.mxu0 %v2689
        %3527 = vmatpush1.bf16.msra.mxu0 %v2688
        %3528 = vmatprep.subr.bf16.mxu0 %v2694
        %3529 = vmatpush1.bf16.msra.mxu0 %v2693
        %3530 = vmatprep.subr.bf16.mxu0 %v2699
        %3531 = vmatpush1.bf16.msra.mxu0 %v2698
        %3532 = vmatprep.subr.bf16.mxu0 %v2704
        %3533 = vmatpush1.bf16.msra.mxu0 %v2703
        %3534 = vmatprep.subr.bf16.mxu0 %v2709
        %3535 = vmatpush1.bf16.msra.mxu0 %v2708
        %3536 = vmatprep.subr.bf16.mxu0 %v2714
        %3537 = vmatpush1.bf16.msra.mxu0 %v2713
        %3538 = vmatprep.subr.bf16.mxu0 %v2719
        %3539 = vmatpush1.bf16.msra.mxu0 %v2718
        %3540 = vmatprep.mubr.bf16.mxu0 %v1030
        %3541 = vmatmul.mubr.bf16.gmra.mrb[0].mxu0 %v1029
        %v3542 = vpop.f32.mrb[0].mxu0
        %v3543 = vadd.f32 %v3500, %v3542
        %v3544 = vpop.f32.mrb[0].mxu0
        %v3545 = vadd.f32 %v3502, %v3544
        %v3546 = vpop.f32.mrb[0].mxu0
        %v3547 = vadd.f32 %v3504, %v3546
        %v3548 = vpop.f32.mrb[0].mxu0
        %v3549 = vadd.f32 %v3506, %v3548
        %3550 = vdwg.mxu0
        %3551 = vmatprep.subr.bf16.mxu0 0
        %3552 = vmatpush1.bf16.msra.mxu0 %v2325
        %3553 = vmatprep.subr.bf16.mxu0 0
        %3554 = vmatpush1.bf16.msra.mxu0 %v2330
        %3555 = vmatprep.subr.bf16.mxu0 0
        %3556 = vmatpush1.bf16.msra.mxu0 %v2335
        %3557 = vmatprep.subr.bf16.mxu0 0
        %3558 = vmatpush1.bf16.msra.mxu0 %v2340
        %3559 = vmatprep.subr.bf16.mxu0 0
        %3560 = vmatpush1.bf16.msra.mxu0 %v2345
        %3561 = vmatprep.subr.bf16.mxu0 0
        %3562 = vmatpush1.bf16.msra.mxu0 %v2350
        %3563 = vmatprep.subr.bf16.mxu0 0
        %3564 = vmatpush1.bf16.msra.mxu0 %v2355
        %3565 = vmatprep.subr.bf16.mxu0 0
        %3566 = vmatpush1.bf16.msra.mxu0 %v2360
        %3567 = vmatprep.subr.bf16.mxu0 0
        %3568 = vmatpush1.bf16.msra.mxu0 %v2365
        %3569 = vmatprep.subr.bf16.mxu0 0
        %3570 = vmatpush1.bf16.msra.mxu0 %v2370
        %3571 = vmatprep.subr.bf16.mxu0 0
        %3572 = vmatpush1.bf16.msra.mxu0 %v2375
        %3573 = vmatprep.subr.bf16.mxu0 0
        %3574 = vmatpush1.bf16.msra.mxu0 %v2380
        %3575 = vmatprep.subr.bf16.mxu0 0
        %3576 = vmatpush1.bf16.msra.mxu0 %v2385
        %3577 = vmatprep.subr.bf16.mxu0 0
        %3578 = vmatpush1.bf16.msra.mxu0 %v2390
        %3579 = vmatprep.subr.bf16.mxu0 0
        %3580 = vmatpush1.bf16.msra.mxu0 %v2395
        %3581 = vmatprep.subr.bf16.mxu0 0
        %3582 = vmatpush1.bf16.msra.mxu0 %v2400
        %3583 = vmatprep.mubr.bf16.mxu0 %v1022
        %3584 = vmatmul.mubr.bf16.gmra.mrb[0].mxu0 %v1021
        %v3585 = vpop.f32.mrb[0].mxu0
        %v3586 = vadd.f32 %v985, %v3585
        %v3587 = vpop.f32.mrb[0].mxu0
        %v3588 = vpop.f32.mrb[0].mxu0
        %v3589 = vadd.f32 %v985, %v3588
        %v3590 = vpop.f32.mrb[0].mxu0
        %3591 = vdwg.mxu0
        %3592 = vmatprep.subr.bf16.mxu0 0
        %3593 = vmatpush1.bf16.msra.mxu0 %v2405
        %3594 = vmatprep.subr.bf16.mxu0 0
        %3595 = vmatpush1.bf16.msra.mxu0 %v2410
        %3596 = vmatprep.subr.bf16.mxu0 0
        %3597 = vmatpush1.bf16.msra.mxu0 %v2415
        %3598 = vmatprep.subr.bf16.mxu0 0
        %3599 = vmatpush1.bf16.msra.mxu0 %v2420
        %3600 = vmatprep.subr.bf16.mxu0 0
        %3601 = vmatpush1.bf16.msra.mxu0 %v2425
        %3602 = vmatprep.subr.bf16.mxu0 0
        %3603 = vmatpush1.bf16.msra.mxu0 %v2430
        %3604 = vmatprep.subr.bf16.mxu0 0
        %3605 = vmatpush1.bf16.msra.mxu0 %v2435
        %3606 = vmatprep.subr.bf16.mxu0 0
        %3607 = vmatpush1.bf16.msra.mxu0 %v2440
        %3608 = vmatprep.subr.bf16.mxu0 0
        %3609 = vmatpush1.bf16.msra.mxu0 %v2445
        %3610 = vmatprep.subr.bf16.mxu0 0
        %3611 = vmatpush1.bf16.msra.mxu0 %v2450
        %3612 = vmatprep.subr.bf16.mxu0 0
        %3613 = vmatpush1.bf16.msra.mxu0 %v2455
        %3614 = vmatprep.subr.bf16.mxu0 0
        %3615 = vmatpush1.bf16.msra.mxu0 %v2460
        %3616 = vmatprep.subr.bf16.mxu0 0
        %3617 = vmatpush1.bf16.msra.mxu0 %v2465
        %3618 = vmatprep.subr.bf16.mxu0 0
        %3619 = vmatpush1.bf16.msra.mxu0 %v2470
        %3620 = vmatprep.subr.bf16.mxu0 0
        %3621 = vmatpush1.bf16.msra.mxu0 %v2475
        %3622 = vmatprep.subr.bf16.mxu0 0
        %3623 = vmatpush1.bf16.msra.mxu0 %v2480
        %3624 = vmatprep.mubr.bf16.mxu0 %v1024
        %3625 = vmatmul.mubr.bf16.gmra.mrb[0].mxu0 %v1023
        %v3626 = vpop.f32.mrb[0].mxu0
        %v3627 = vadd.f32 %v3586, %v3626
        %v3628 = vpop.f32.mrb[0].mxu0
        %v3629 = vpop.f32.mrb[0].mxu0
        %v3630 = vadd.f32 %v3589, %v3629
        %v3631 = vpop.f32.mrb[0].mxu0
        %3632 = vdwg.mxu0
        %3633 = vmatprep.subr.bf16.mxu0 0
        %3634 = vmatpush1.bf16.msra.mxu0 %v2485
        %3635 = vmatprep.subr.bf16.mxu0 0
        %3636 = vmatpush1.bf16.msra.mxu0 %v2490
        %3637 = vmatprep.subr.bf16.mxu0 0
        %3638 = vmatpush1.bf16.msra.mxu0 %v2495
        %3639 = vmatprep.subr.bf16.mxu0 0
        %3640 = vmatpush1.bf16.msra.mxu0 %v2500
        %3641 = vmatprep.subr.bf16.mxu0 0
        %3642 = vmatpush1.bf16.msra.mxu0 %v2505
        %3643 = vmatprep.subr.bf16.mxu0 0
        %3644 = vmatpush1.bf16.msra.mxu0 %v2510
        %3645 = vmatprep.subr.bf16.mxu0 0
        %3646 = vmatpush1.bf16.msra.mxu0 %v2515
        %3647 = vmatprep.subr.bf16.mxu0 0
        %3648 = vmatpush1.bf16.msra.mxu0 %v2520
        %3649 = vmatprep.subr.bf16.mxu0 0
        %3650 = vmatpush1.bf16.msra.mxu0 %v2525
        %3651 = vmatprep.subr.bf16.mxu0 0
        %3652 = vmatpush1.bf16.msra.mxu0 %v2530
        %3653 = vmatprep.subr.bf16.mxu0 0
        %3654 = vmatpush1.bf16.msra.mxu0 %v2535
        %3655 = vmatprep.subr.bf16.mxu0 0
        %3656 = vmatpush1.bf16.msra.mxu0 %v2540
        %3657 = vmatprep.subr.bf16.mxu0 0
        %3658 = vmatpush1.bf16.msra.mxu0 %v2545
        %3659 = vmatprep.subr.bf16.mxu0 0
        %3660 = vmatpush1.bf16.msra.mxu0 %v2550
        %3661 = vmatprep.subr.bf16.mxu0 0
        %3662 = vmatpush1.bf16.msra.mxu0 %v2555
        %3663 = vmatprep.subr.bf16.mxu0 0
        %3664 = vmatpush1.bf16.msra.mxu0 %v2560
        %3665 = vmatprep.mubr.bf16.mxu0 %v1026
        %3666 = vmatmul.mubr.bf16.gmra.mrb[0].mxu0 %v1025
        %v3667 = vpop.f32.mrb[0].mxu0
        %v3668 = vadd.f32 %v3627, %v3667
        %v3669 = vpop.f32.mrb[0].mxu0
        %v3670 = vpop.f32.mrb[0].mxu0
        %v3671 = vadd.f32 %v3630, %v3670
        %v3672 = vpop.f32.mrb[0].mxu0
        %3673 = vdwg.mxu0
        %3674 = vmatprep.subr.bf16.mxu0 0
        %3675 = vmatpush1.bf16.msra.mxu0 %v2565
        %3676 = vmatprep.subr.bf16.mxu0 0
        %3677 = vmatpush1.bf16.msra.mxu0 %v2570
        %3678 = vmatprep.subr.bf16.mxu0 0
        %3679 = vmatpush1.bf16.msra.mxu0 %v2575
        %3680 = vmatprep.subr.bf16.mxu0 0
        %3681 = vmatpush1.bf16.msra.mxu0 %v2580
        %3682 = vmatprep.subr.bf16.mxu0 0
        %3683 = vmatpush1.bf16.msra.mxu0 %v2585
        %3684 = vmatprep.subr.bf16.mxu0 0
        %3685 = vmatpush1.bf16.msra.mxu0 %v2590
        %3686 = vmatprep.subr.bf16.mxu0 0
        %3687 = vmatpush1.bf16.msra.mxu0 %v2595
        %3688 = vmatprep.subr.bf16.mxu0 0
        %3689 = vmatpush1.bf16.msra.mxu0 %v2600
        %3690 = vmatprep.subr.bf16.mxu0 0
        %3691 = vmatpush1.bf16.msra.mxu0 %v2605
        %3692 = vmatprep.subr.bf16.mxu0 0
        %3693 = vmatpush1.bf16.msra.mxu0 %v2610
        %3694 = vmatprep.subr.bf16.mxu0 0
        %3695 = vmatpush1.bf16.msra.mxu0 %v2615
        %3696 = vmatprep.subr.bf16.mxu0 0
        %3697 = vmatpush1.bf16.msra.mxu0 %v2620
        %3698 = vmatprep.subr.bf16.mxu0 0
        %3699 = vmatpush1.bf16.msra.mxu0 %v2625
        %3700 = vmatprep.subr.bf16.mxu0 0
        %3701 = vmatpush1.bf16.msra.mxu0 %v2630
        %3702 = vmatprep.subr.bf16.mxu0 0
        %3703 = vmatpush1.bf16.msra.mxu0 %v2635
        %3704 = vmatprep.subr.bf16.mxu0 0
        %3705 = vmatpush1.bf16.msra.mxu0 %v2640
        %3706 = vmatprep.mubr.bf16.mxu0 %v1028
        %3707 = vmatmul.mubr.bf16.gmra.mrb[0].mxu0 %v1027
        %v3708 = vpop.f32.mrb[0].mxu0
        %v3709 = vadd.f32 %v3668, %v3708
        %v3710 = vpop.f32.mrb[0].mxu0
        %v3711 = vpop.f32.mrb[0].mxu0
        %v3712 = vadd.f32 %v3671, %v3711
        %v3713 = vpop.f32.mrb[0].mxu0
        %3714 = vdwg.mxu0
        %3715 = vmatprep.subr.bf16.mxu0 0
        %3716 = vmatpush1.bf16.msra.mxu0 %v2645
        %3717 = vmatprep.subr.bf16.mxu0 0
        %3718 = vmatpush1.bf16.msra.mxu0 %v2650
        %3719 = vmatprep.subr.bf16.mxu0 0
        %3720 = vmatpush1.bf16.msra.mxu0 %v2655
        %3721 = vmatprep.subr.bf16.mxu0 0
        %3722 = vmatpush1.bf16.msra.mxu0 %v2660
        %3723 = vmatprep.subr.bf16.mxu0 0
        %3724 = vmatpush1.bf16.msra.mxu0 %v2665
        %3725 = vmatprep.subr.bf16.mxu0 0
        %3726 = vmatpush1.bf16.msra.mxu0 %v2670
        %3727 = vmatprep.subr.bf16.mxu0 0
        %3728 = vmatpush1.bf16.msra.mxu0 %v2675
        %3729 = vmatprep.subr.bf16.mxu0 0
        %3730 = vmatpush1.bf16.msra.mxu0 %v2680
        %3731 = vmatprep.subr.bf16.mxu0 0
        %3732 = vmatpush1.bf16.msra.mxu0 %v2685
        %3733 = vmatprep.subr.bf16.mxu0 0
        %3734 = vmatpush1.bf16.msra.mxu0 %v2690
        %3735 = vmatprep.subr.bf16.mxu0 0
        %3736 = vmatpush1.bf16.msra.mxu0 %v2695
        %3737 = vmatprep.subr.bf16.mxu0 0
        %3738 = vmatpush1.bf16.msra.mxu0 %v2700
        %3739 = vmatprep.subr.bf16.mxu0 0
        %3740 = vmatpush1.bf16.msra.mxu0 %v2705
        %3741 = vmatprep.subr.bf16.mxu0 0
        %3742 = vmatpush1.bf16.msra.mxu0 %v2710
        %3743 = vmatprep.subr.bf16.mxu0 0
        %3744 = vmatpush1.bf16.msra.mxu0 %v2715
        %3745 = vmatprep.subr.bf16.mxu0 0
        %3746 = vmatpush1.bf16.msra.mxu0 %v2720
        %3747 = vmatprep.mubr.bf16.mxu0 %v1030
        %3748 = vmatmul.mubr.bf16.gmra.mrb[0].mxu0 %v1029
        %v3749 = vpop.f32.mrb[0].mxu0
        %v3750 = vadd.f32 %v3709, %v3749
        %v3751 = vpop.f32.mrb[0].mxu0
        %v3752 = vpop.f32.mrb[0].mxu0
        %v3753 = vadd.f32 %v3712, %v3752
        %v3754 = vpop.f32.mrb[0].mxu0
        %3755 = vdwg.mxu0
        %v3756 = vmax.f32 %v3328, 0.0
        %v3757 = vmax.f32 %v3330, 0.0
        %v3758 = vmax.f32 %v3543, 0.0
        %v3759 = vmax.f32 %v3545, 0.0
        %v3760 = vmax.f32 %v3750, 0.0
        %v3761 = vmax.f32 %v3332, 0.0
        %v3762 = vmax.f32 %v3334, 0.0
        %v3763 = vmax.f32 %v3547, 0.0
        %v3764 = vmax.f32 %v3549, 0.0
        %v3765 = vmax.f32 %v3753, 0.0
        %v3766 = vpack.c.bf16 %v3761, %v3756
        %v3767 = vpack.c.bf16 %v3762, %v3757
        %v3768 = vpack.c.bf16 %v3763, %v3758
        %v3769 = vpack.c.bf16 %v3764, %v3759
        %v3770 = vpack.c.bf16 %v3765, %v3760
        %v3771 = vld [vmem:[#allocation2] sm:$0xff]
        %v3772 = vld [vmem:[#allocation2 + $0x8] sm:$0xff]
        %v3773 = vld [vmem:[%s464] sm:$0xf]
        %v3774 = vld [vmem:[%s464 + $0x4] sm:$0xf]
        %v3775 = vld [vmem:[%s464 + $0x8] sm:$0xf]
        %v3776 = vld [vmem:[%s464 + $0xc] sm:$0xf]
        %v3777 = vld [vmem:[%s464 + $0x10] sm:$0xf]
        %v3778 = vld [vmem:[%s464 + $0x14] sm:$0xf]
        %v3779 = vld [vmem:[%s464 + $0x18] sm:$0xf]
        %v3780 = vld [vmem:[%s464 + $0x1c] sm:$0xf]
        %v3781 = vld [vmem:[%s464 + $0x20] sm:$0xf]
        %v3782 = vld [vmem:[%s464 + $0x24] sm:$0xf]
        %v3783 = vld [vmem:[%s464 + $0x28] sm:$0xf]
        %v3784 = vld [vmem:[%s464 + $0x2c] sm:$0xf]
        %v3785 = vld [vmem:[%s464 + $0x30] sm:$0xf]
        %v3786 = vld [vmem:[%s464 + $0x34] sm:$0xf]
        %v3787 = vld [vmem:[%s464 + $0x38] sm:$0xf]
        %v3788 = vld [vmem:[%s464 + $0x3c] sm:$0xf]
        %v3789 = vld [vmem:[%s464 + $0x40] sm:$0xf]
        %v3790 = vld [vmem:[%s464 + $0x44] sm:$0xf]
        %v3791 = vld [vmem:[%s464 + $0x48] sm:$0xf]
        %v3792 = vld [vmem:[%s464 + $0x4c] sm:$0xf]
        %v3793 = vld [vmem:[%s464 + $0x50] sm:$0xf]
        %v3794 = vld [vmem:[%s464 + $0x54] sm:$0xf]
        %v3795 = vld [vmem:[%s464 + $0x58] sm:$0xf]
        %v3796 = vld [vmem:[%s464 + $0x5c] sm:$0xf]
        %v3797 = vld [vmem:[%s464 + $0x60] sm:$0xf]
        %v3798 = vld [vmem:[%s464 + $0x64] sm:$0xf]
        %v3799 = vld [vmem:[%s464 + $0x68] sm:$0xf]
        %v3800 = vld [vmem:[%s464 + $0x6c] sm:$0xf]
        %v3801 = vld [vmem:[%s464 + $0x70] sm:$0xf]
        %v3802 = vld [vmem:[%s464 + $0x74] sm:$0xf]
        %v3803 = vld [vmem:[%s464 + $0x78] sm:$0xf]
        %v3804 = vld [vmem:[%s464 + $0x7c] sm:$0xf]
        %v3805 = vld [vmem:[%s464 + $0x80] sm:$0xf]
        %v3806 = vld [vmem:[%s464 + $0x84] sm:$0xf]
        %v3807 = vld [vmem:[%s464 + $0x88] sm:$0xf]
        %v3808 = vld [vmem:[%s464 + $0x8c] sm:$0xf]
        %v3809 = vld [vmem:[%s464 + $0x90] sm:$0xf]
        %v3810 = vld [vmem:[%s464 + $0x94] sm:$0xf]
        %v3811 = vld [vmem:[%s464 + $0x98] sm:$0xf]
        %v3812 = vld [vmem:[%s464 + $0x9c] sm:$0xf]
        %v3813 = vld [vmem:[%s464 + $0xa0] sm:$0xf]
        %v3814 = vld [vmem:[%s464 + $0xa4] sm:$0xf]
        %v3815 = vld [vmem:[%s464 + $0xa8] sm:$0xf]
        %v3816 = vld [vmem:[%s464 + $0xac] sm:$0xf]
        %v3817 = vld [vmem:[%s464 + $0xb0] sm:$0xf]
        %v3818 = vld [vmem:[%s464 + $0xb4] sm:$0xf]
        %v3819 = vld [vmem:[%s464 + $0xb8] sm:$0xf]
        %v3820 = vld [vmem:[%s464 + $0xbc] sm:$0xf]
        %v3821 = vld [vmem:[%s464 + $0xc0] sm:$0xf]
        %v3822 = vld [vmem:[%s464 + $0xc4] sm:$0xf]
        %v3823 = vld [vmem:[%s464 + $0xc8] sm:$0xf]
        %v3824 = vld [vmem:[%s464 + $0xcc] sm:$0xf]
        %v3825 = vld [vmem:[%s464 + $0xd0] sm:$0xf]
        %v3826 = vld [vmem:[%s464 + $0xd4] sm:$0xf]
        %v3827 = vld [vmem:[%s464 + $0xd8] sm:$0xf]
        %v3828 = vld [vmem:[%s464 + $0xdc] sm:$0xf]
        %v3829 = vld [vmem:[%s464 + $0xe0] sm:$0xf]
        %v3830 = vld [vmem:[%s464 + $0xe4] sm:$0xf]
        %v3831 = vld [vmem:[%s464 + $0xe8] sm:$0xf]
        %v3832 = vld [vmem:[%s464 + $0xec] sm:$0xf]
        %v3833 = vld [vmem:[%s464 + $0xf0] sm:$0xf]
        %v3834 = vld [vmem:[%s464 + $0xf4] sm:$0xf]
        %v3835 = vld [vmem:[%s464 + $0xf8] sm:$0xf]
        %v3836 = vld [vmem:[%s464 + $0xfc] sm:$0xf]
        %v3837 = vld [vmem:[%s464 + $0x100] sm:$0xf]
        %v3838 = vld [vmem:[%s464 + $0x104] sm:$0xf]
        %v3839 = vld [vmem:[%s464 + $0x108] sm:$0xf]
        %v3840 = vld [vmem:[%s464 + $0x10c] sm:$0xf]
        %v3841 = vld [vmem:[%s464 + $0x110] sm:$0xf]
        %v3842 = vld [vmem:[%s464 + $0x114] sm:$0xf]
        %v3843 = vld [vmem:[%s464 + $0x118] sm:$0xf]
        %v3844 = vld [vmem:[%s464 + $0x11c] sm:$0xf]
        %v3845 = vld [vmem:[%s464 + $0x120] sm:$0xf]
        %v3846 = vld [vmem:[%s464 + $0x124] sm:$0xf]
        %v3847 = vld [vmem:[%s464 + $0x128] sm:$0xf]
        %v3848 = vld [vmem:[%s464 + $0x12c] sm:$0xf]
        %v3849 = vld [vmem:[%s464 + $0x130] sm:$0xf]
        %v3850 = vld [vmem:[%s464 + $0x134] sm:$0xf]
        %v3851 = vld [vmem:[%s464 + $0x138] sm:$0xf]
        %v3852 = vld [vmem:[%s464 + $0x13c] sm:$0xf]
        %v3933 = vunpack.c.l.b16 %v3773
        %v3934 = vunpack.c.l.b16 %v3774
        %v3935 = vunpack.c.l.b16 %v3775
        %v3936 = vunpack.c.l.b16 %v3776
        %v3937 = vunpack.c.l.b16 %v3777
        %v3938 = vunpack.c.l.b16 %v3778
        %v3939 = vunpack.c.l.b16 %v3779
        %v3940 = vunpack.c.l.b16 %v3780
        %v3941 = vunpack.c.l.b16 %v3781
        %v3942 = vunpack.c.l.b16 %v3782
        %v3943 = vunpack.c.l.b16 %v3783
        %v3944 = vunpack.c.l.b16 %v3784
        %v3945 = vunpack.c.l.b16 %v3785
        %v3946 = vunpack.c.l.b16 %v3786
        %v3947 = vunpack.c.l.b16 %v3787
        %v3948 = vunpack.c.l.b16 %v3788
        %v3949 = vunpack.c.l.b16 %v3789
        %v3950 = vunpack.c.l.b16 %v3790
        %v3951 = vunpack.c.l.b16 %v3791
        %v3952 = vunpack.c.l.b16 %v3792
        %v3953 = vunpack.c.l.b16 %v3793
        %v3954 = vunpack.c.l.b16 %v3794
        %v3955 = vunpack.c.l.b16 %v3795
        %v3956 = vunpack.c.l.b16 %v3796
        %v3957 = vunpack.c.l.b16 %v3797
        %v3958 = vunpack.c.l.b16 %v3798
        %v3959 = vunpack.c.l.b16 %v3799
        %v3960 = vunpack.c.l.b16 %v3800
        %v3961 = vunpack.c.l.b16 %v3801
        %v3962 = vunpack.c.l.b16 %v3802
        %v3963 = vunpack.c.l.b16 %v3803
        %v3964 = vunpack.c.l.b16 %v3804
        %v3965 = vunpack.c.l.b16 %v3805
        %v3966 = vunpack.c.l.b16 %v3806
        %v3967 = vunpack.c.l.b16 %v3807
        %v3968 = vunpack.c.l.b16 %v3808
        %v3969 = vunpack.c.l.b16 %v3809
        %v3970 = vunpack.c.l.b16 %v3810
        %v3971 = vunpack.c.l.b16 %v3811
        %v3972 = vunpack.c.l.b16 %v3812
        %v3973 = vunpack.c.l.b16 %v3813
        %v3974 = vunpack.c.l.b16 %v3814
        %v3975 = vunpack.c.l.b16 %v3815
        %v3976 = vunpack.c.l.b16 %v3816
        %v3977 = vunpack.c.l.b16 %v3817
        %v3978 = vunpack.c.l.b16 %v3818
        %v3979 = vunpack.c.l.b16 %v3819
        %v3980 = vunpack.c.l.b16 %v3820
        %v3981 = vunpack.c.l.b16 %v3821
        %v3982 = vunpack.c.l.b16 %v3822
        %v3983 = vunpack.c.l.b16 %v3823
        %v3984 = vunpack.c.l.b16 %v3824
        %v3985 = vunpack.c.l.b16 %v3825
        %v3986 = vunpack.c.l.b16 %v3826
        %v3987 = vunpack.c.l.b16 %v3827
        %v3988 = vunpack.c.l.b16 %v3828
        %v3989 = vunpack.c.l.b16 %v3829
        %v3990 = vunpack.c.l.b16 %v3830
        %v3991 = vunpack.c.l.b16 %v3831
        %v3992 = vunpack.c.l.b16 %v3832
        %v3993 = vunpack.c.l.b16 %v3833
        %v3994 = vunpack.c.l.b16 %v3834
        %v3995 = vunpack.c.l.b16 %v3835
        %v3996 = vunpack.c.l.b16 %v3836
        %v3997 = vunpack.c.l.b16 %v3837
        %v3998 = vunpack.c.l.b16 %v3838
        %v3999 = vunpack.c.l.b16 %v3839
        %v4000 = vunpack.c.l.b16 %v3840
        %v4001 = vunpack.c.l.b16 %v3841
        %v4002 = vunpack.c.l.b16 %v3842
        %v4003 = vunpack.c.l.b16 %v3843
        %v4004 = vunpack.c.l.b16 %v3844
        %v4005 = vunpack.c.l.b16 %v3845
        %v4006 = vunpack.c.l.b16 %v3846
        %v4007 = vunpack.c.l.b16 %v3847
        %v4008 = vunpack.c.l.b16 %v3848
        %v4009 = vunpack.c.l.b16 %v3849
        %v4010 = vunpack.c.l.b16 %v3850
        %v4011 = vunpack.c.l.b16 %v3851
        %v4012 = vunpack.c.l.b16 %v3852
        %v4013 = vpack.c.b16 %v3934, %v3933
        %v4014 = vpack.c.b16 %v3936, %v3935
        %v4015 = vpack.c.b16 %v3938, %v3937
        %v4016 = vpack.c.b16 %v3940, %v3939
        %v4017 = vpack.c.b16 %v3942, %v3941
        %v4018 = vpack.c.b16 %v3944, %v3943
        %v4019 = vpack.c.b16 %v3946, %v3945
        %v4020 = vpack.c.b16 %v3948, %v3947
        %v4021 = vpack.c.b16 %v3950, %v3949
        %v4022 = vpack.c.b16 %v3952, %v3951
        %v4023 = vpack.c.b16 %v3954, %v3953
        %v4024 = vpack.c.b16 %v3956, %v3955
        %v4025 = vpack.c.b16 %v3958, %v3957
        %v4026 = vpack.c.b16 %v3960, %v3959
        %v4027 = vpack.c.b16 %v3962, %v3961
        %v4028 = vpack.c.b16 %v3964, %v3963
        %v4029 = vpack.c.b16 %v3966, %v3965
        %v4030 = vpack.c.b16 %v3968, %v3967
        %v4031 = vpack.c.b16 %v3970, %v3969
        %v4032 = vpack.c.b16 %v3972, %v3971
        %v4033 = vpack.c.b16 %v3974, %v3973
        %v4034 = vpack.c.b16 %v3976, %v3975
        %v4035 = vpack.c.b16 %v3978, %v3977
        %v4036 = vpack.c.b16 %v3980, %v3979
        %v4037 = vpack.c.b16 %v3982, %v3981
        %v4038 = vpack.c.b16 %v3984, %v3983
        %v4039 = vpack.c.b16 %v3986, %v3985
        %v4040 = vpack.c.b16 %v3988, %v3987
        %v4041 = vpack.c.b16 %v3990, %v3989
        %v4042 = vpack.c.b16 %v3992, %v3991
        %v4043 = vpack.c.b16 %v3994, %v3993
        %v4044 = vpack.c.b16 %v3996, %v3995
        %v4045 = vpack.c.b16 %v3998, %v3997
        %v4046 = vpack.c.b16 %v4000, %v3999
        %v4047 = vpack.c.b16 %v4002, %v4001
        %v4048 = vpack.c.b16 %v4004, %v4003
        %v4049 = vpack.c.b16 %v4006, %v4005
        %v4050 = vpack.c.b16 %v4008, %v4007
        %v4051 = vpack.c.b16 %v4010, %v4009
        %v4052 = vpack.c.b16 %v4012, %v4011
        %4093 = vmatprep.subr.bf16.mxu0 0
        %4094 = vmatpush1.bf16.msra.mxu0 %v4013
        %4095 = vmatprep.subr.bf16.mxu0 0
        %4096 = vmatpush1.bf16.msra.mxu0 %v4014
        %4097 = vmatprep.subr.bf16.mxu0 0
        %4098 = vmatpush1.bf16.msra.mxu0 %v4015
        %4099 = vmatprep.subr.bf16.mxu0 0
        %4100 = vmatpush1.bf16.msra.mxu0 %v4016
        %4101 = vmatprep.subr.bf16.mxu0 0
        %4102 = vmatpush1.bf16.msra.mxu0 %v4017
        %4103 = vmatprep.subr.bf16.mxu0 0
        %4104 = vmatpush1.bf16.msra.mxu0 %v4018
        %4105 = vmatprep.subr.bf16.mxu0 0
        %4106 = vmatpush1.bf16.msra.mxu0 %v4019
        %4107 = vmatprep.subr.bf16.mxu0 0
        %4108 = vmatpush1.bf16.msra.mxu0 %v4020
        %4109 = vmatprep.subr.bf16.mxu0 0
        %4110 = vmatpush1.bf16.msra.mxu0 %v4021
        %4111 = vmatprep.subr.bf16.mxu0 0
        %4112 = vmatpush1.bf16.msra.mxu0 %v4022
        %4113 = vmatprep.subr.bf16.mxu0 0
        %4114 = vmatpush1.bf16.msra.mxu0 %v4023
        %4115 = vmatprep.subr.bf16.mxu0 0
        %4116 = vmatpush1.bf16.msra.mxu0 %v4024
        %4117 = vmatprep.subr.bf16.mxu0 0
        %4118 = vmatpush1.bf16.msra.mxu0 %v4025
        %4119 = vmatprep.subr.bf16.mxu0 0
        %4120 = vmatpush1.bf16.msra.mxu0 %v4026
        %4121 = vmatprep.subr.bf16.mxu0 0
        %4122 = vmatpush1.bf16.msra.mxu0 %v4027
        %4123 = vmatprep.subr.bf16.mxu0 0
        %4124 = vmatpush1.bf16.msra.mxu0 %v4028
        %4125 = vmatprep.mubr.bf16.mxu0 %v3767
        %4126 = vmatmul.mubr.bf16.gmra.mrb[0].mxu0 %v3766
        %v4127 = vpop.f32.mrb[0].mxu0
        %v4128 = vadd.f32 0.0, %v4127
        %v4129 = vpop.f32.mrb[0].mxu0
        %v4130 = vpop.f32.mrb[0].mxu0
        %v4131 = vadd.f32 0.0, %v4130
        %v4132 = vpop.f32.mrb[0].mxu0
        %4133 = vdwg.mxu0
        %4134 = vmatprep.subr.bf16.mxu0 0
        %4135 = vmatpush1.bf16.msra.mxu0 %v4029
        %4136 = vmatprep.subr.bf16.mxu0 0
        %4137 = vmatpush1.bf16.msra.mxu0 %v4030
        %4138 = vmatprep.subr.bf16.mxu0 0
        %4139 = vmatpush1.bf16.msra.mxu0 %v4031
        %4140 = vmatprep.subr.bf16.mxu0 0
        %4141 = vmatpush1.bf16.msra.mxu0 %v4032
        %4142 = vmatprep.subr.bf16.mxu0 0
        %4143 = vmatpush1.bf16.msra.mxu0 %v4033
        %4144 = vmatprep.subr.bf16.mxu0 0
        %4145 = vmatpush1.bf16.msra.mxu0 %v4034
        %4146 = vmatprep.subr.bf16.mxu0 0
        %4147 = vmatpush1.bf16.msra.mxu0 %v4035
        %4148 = vmatprep.subr.bf16.mxu0 0
        %4149 = vmatpush1.bf16.msra.mxu0 %v4036
        %4150 = vmatprep.subr.bf16.mxu0 0
        %4151 = vmatpush1.bf16.msra.mxu0 %v4037
        %4152 = vmatprep.subr.bf16.mxu0 0
        %4153 = vmatpush1.bf16.msra.mxu0 %v4038
        %4154 = vmatprep.subr.bf16.mxu0 0
        %4155 = vmatpush1.bf16.msra.mxu0 %v4039
        %4156 = vmatprep.subr.bf16.mxu0 0
        %4157 = vmatpush1.bf16.msra.mxu0 %v4040
        %4158 = vmatprep.subr.bf16.mxu0 0
        %4159 = vmatpush1.bf16.msra.mxu0 %v4041
        %4160 = vmatprep.subr.bf16.mxu0 0
        %4161 = vmatpush1.bf16.msra.mxu0 %v4042
        %4162 = vmatprep.subr.bf16.mxu0 0
        %4163 = vmatpush1.bf16.msra.mxu0 %v4043
        %4164 = vmatprep.subr.bf16.mxu0 0
        %4165 = vmatpush1.bf16.msra.mxu0 %v4044
        %4166 = vmatprep.mubr.bf16.mxu0 %v3769
        %4167 = vmatmul.mubr.bf16.gmra.mrb[0].mxu0 %v3768
        %v4168 = vpop.f32.mrb[0].mxu0
        %v4169 = vadd.f32 %v4128, %v4168
        %v4170 = vpop.f32.mrb[0].mxu0
        %v4171 = vpop.f32.mrb[0].mxu0
        %v4172 = vadd.f32 %v4131, %v4171
        %v4173 = vpop.f32.mrb[0].mxu0
        %4174 = vdwg.mxu0
        %4175 = vmatprep.subr.bf16.mxu0 0
        %4176 = vmatpush1.bf16.msra.mxu0 %v4045
        %4177 = vmatprep.subr.bf16.mxu0 0
        %4178 = vmatpush1.bf16.msra.mxu0 %v4046
        %4179 = vmatprep.subr.bf16.mxu0 0
        %4180 = vmatpush1.bf16.msra.mxu0 %v4047
        %4181 = vmatprep.subr.bf16.mxu0 0
        %4182 = vmatpush1.bf16.msra.mxu0 %v4048
        %4183 = vmatprep.subr.bf16.mxu0 0
        %4184 = vmatpush1.bf16.msra.mxu0 %v4049
        %4185 = vmatprep.subr.bf16.mxu0 0
        %4186 = vmatpush1.bf16.msra.mxu0 %v4050
        %4187 = vmatprep.subr.bf16.mxu0 0
        %4188 = vmatpush1.bf16.msra.mxu0 %v4051
        %4189 = vmatprep.subr.bf16.mxu0 0
        %4190 = vmatpush1.bf16.msra.mxu0 %v4052
        %4191 = vmatprep.subr.bf16.mxu0 0
        %4192 = vmatpush1.bf16.msra.mxu0 0
        %4193 = vmatprep.subr.bf16.mxu0 0
        %4194 = vmatpush1.bf16.msra.mxu0 0
        %4195 = vmatprep.subr.bf16.mxu0 0
        %4196 = vmatpush1.bf16.msra.mxu0 0
        %4197 = vmatprep.subr.bf16.mxu0 0
        %4198 = vmatpush1.bf16.msra.mxu0 0
        %4199 = vmatprep.subr.bf16.mxu0 0
        %4200 = vmatpush1.bf16.msra.mxu0 0
        %4201 = vmatprep.subr.bf16.mxu0 0
        %4202 = vmatpush1.bf16.msra.mxu0 0
        %4203 = vmatprep.subr.bf16.mxu0 0
        %4204 = vmatpush1.bf16.msra.mxu0 0
        %4205 = vmatprep.subr.bf16.mxu0 0
        %4206 = vmatpush1.bf16.msra.mxu0 0
        %4207 = vmatprep.mubr.bf16.mxu0 0
        %4208 = vmatmul.mubr.bf16.gmra.mrb[0].mxu0 %v3770
        %v4209 = vpop.f32.mrb[0].mxu0
        %v4210 = vadd.f32 %v4169, %v4209
        %v4211 = vpop.f32.mrb[0].mxu0
        %v4212 = vpop.f32.mrb[0].mxu0
        %v4213 = vadd.f32 %v4172, %v4212
        %v4214 = vpop.f32.mrb[0].mxu0
        %4215 = vdwg.mxu0
        %v4216 = vadd.f32 %v3771, %v4210
        %v4217 = vadd.f32 %v3772, %v4213
        %vm4218 = vcmask 261120
        %4219 = vst.msk [vmem:[#allocation2] sm:$0xff] %vm4218, %v4216
        %4220 = vst.msk [vmem:[#allocation2 + $0x8] sm:$0xff] %vm4218, %v4217
        // Predicated region
        $region89: #{tpu_custom_call.1} parent=55 // pred_check
          %p4221 = pneg %p467
        $region90: #{tpu_custom_call.1} parent=55 // pred_check_branch
          %4223 = sbr.rel (%p4221) target = $region92
        $region91: #{tpu_custom_call.1} parent=55 // pred_region
          %4224 = vst [vmem:[#allocation14] sm:$0xff] 0.0
          %4225 = vst [vmem:[#allocation14 + $0x8] sm:$0xff] 0.0
          %4226 = vst [vmem:[#allocation14 + $0x10] sm:$0xff] 0.0
          %4227 = vst [vmem:[#allocation14 + $0x18] sm:$0xff] 0.0
          %v4228 = vld [vmem:[%s3 + $0x180] sm:$0xf]
          %v4229 = vld [vmem:[%s3 + $0x188] sm:$0xf]
          %v4230 = vld [vmem:[%s3 + $0x190] sm:$0xf]
          %v4231 = vld [vmem:[%s3 + $0x198] sm:$0xf]
          %v4232 = vld [vmem:[%s3 + $0x1a0] sm:$0xf]
          %v4233 = vld [vmem:[%s3 + $0x1a8] sm:$0xf]
          %v4234 = vld [vmem:[%s3 + $0x1b0] sm:$0xf]
          %v4235 = vld [vmem:[%s3 + $0x1b8] sm:$0xf]
          %v4236 = vld [vmem:[%s3 + $0x1c0] sm:$0xf]
          %v4237 = vld [vmem:[%s3 + $0x1c8] sm:$0xf]
          %v4238 = vld [vmem:[%s3 + $0x1d0] sm:$0xf]
          %v4239 = vld [vmem:[%s3 + $0x1d8] sm:$0xf]
          %v4240 = vld [vmem:[%s3] sm:$0xff]
          %v4241 = vld [vmem:[%s3 + $0x8] sm:$0xff]
          %v4242 = vld [vmem:[%s3 + $0x10] sm:$0xff]
          %v4243 = vld [vmem:[%s3 + $0x18] sm:$0xff]
          %v4244 = vld [vmem:[%s3 + $0x20] sm:$0xff]
          %v4245 = vld [vmem:[%s3 + $0x28] sm:$0xff]
          %v4246 = vld [vmem:[%s3 + $0x30] sm:$0xff]
          %v4247 = vld [vmem:[%s3 + $0x38] sm:$0xff]
          %v4248 = vld [vmem:[%s3 + $0x40] sm:$0xff]
          %v4249 = vld [vmem:[%s3 + $0x48] sm:$0xff]
          %v4250 = vld [vmem:[%s3 + $0x50] sm:$0xff]
          %v4251 = vld [vmem:[%s3 + $0x58] sm:$0xff]
          %v4252 = vld [vmem:[%s3 + $0x60] sm:$0xff]
          %v4253 = vld [vmem:[%s3 + $0x68] sm:$0xff]
          %v4254 = vld [vmem:[%s3 + $0x70] sm:$0xff]
          %v4255 = vld [vmem:[%s3 + $0x78] sm:$0xff]
          %v4256 = vld [vmem:[%s3 + $0x80] sm:$0xff]
          %v4257 = vld [vmem:[%s3 + $0x88] sm:$0xff]
          %v4258 = vld [vmem:[%s3 + $0x90] sm:$0xff]
          %v4259 = vld [vmem:[%s3 + $0x98] sm:$0xff]
          %v4260 = vld [vmem:[%s3 + $0xa0] sm:$0xff]
          %v4261 = vld [vmem:[%s3 + $0xa8] sm:$0xff]
          %v4262 = vld [vmem:[%s3 + $0xb0] sm:$0xff]
          %v4263 = vld [vmem:[%s3 + $0xb8] sm:$0xff]
          %v4264 = vld [vmem:[%s3 + $0xc0] sm:$0xf]
          %v4265 = vld [vmem:[%s3 + $0xc8] sm:$0xf]
          %v4266 = vld [vmem:[%s3 + $0xd0] sm:$0xf]
          %v4267 = vld [vmem:[%s3 + $0xd8] sm:$0xf]
          %v4268 = vld [vmem:[%s3 + $0xe0] sm:$0xf]
          %v4269 = vld [vmem:[%s3 + $0xe8] sm:$0xf]
          %v4270 = vld [vmem:[%s3 + $0xf0] sm:$0xf]
          %v4271 = vld [vmem:[%s3 + $0xf8] sm:$0xf]
          %v4272 = vld [vmem:[%s3 + $0x100] sm:$0xf]
          %v4273 = vld [vmem:[%s3 + $0x108] sm:$0xf]
          %v4274 = vld [vmem:[%s3 + $0x110] sm:$0xf]
          %v4275 = vld [vmem:[%s3 + $0x118] sm:$0xf]
          %v4276 = vld [vmem:[%s3 + $0x120] sm:$0xf]
          %v4277 = vld [vmem:[%s3 + $0x128] sm:$0xf]
          %v4278 = vld [vmem:[%s3 + $0x130] sm:$0xf]
          %v4279 = vld [vmem:[%s3 + $0x138] sm:$0xf]
          %v4280 = vld [vmem:[%s3 + $0x140] sm:$0xf]
          %v4281 = vld [vmem:[%s3 + $0x148] sm:$0xf]
          %v4282 = vld [vmem:[%s3 + $0x150] sm:$0xf]
          %v4283 = vld [vmem:[%s3 + $0x158] sm:$0xf]
          %v4284 = vld [vmem:[%s3 + $0x160] sm:$0xf]
          %v4285 = vld [vmem:[%s3 + $0x168] sm:$0xf]
          %v4286 = vld [vmem:[%s3 + $0x170] sm:$0xf]
          %v4287 = vld [vmem:[%s3 + $0x178] sm:$0xf]
          %v4288 = vld [vmem:[#allocation3] sm:$0xf]
          %v4289 = vld [vmem:[#allocation3 + $0x4] sm:$0xf]
          %v4290 = vld [vmem:[#allocation9] sm:$0x1]
          %v4291 = vld [vmem:[#allocation9 + $0x1] sm:$0x1]
          %v4293 = vlaneseq
          %v4294 = vshrl.u32 %v4293, 7
          %v4295 = vsub.s32 0, %v4294
          %v4296 = vrot.slane %v4290, %v4295
          %v4300 = vunpack.c.l.b16 %v4288
          %v4301 = vunpack.c.l.b16 %v4289
          %v4302 = vpack.c.b16 %v4301, %v4300
          %v4309 = vunpack.c.l.b16 %v4228
          %v4310 = vunpack.c.l.b16 %v4229
          %v4311 = vunpack.c.l.b16 %v4230
          %v4312 = vunpack.c.l.b16 %v4231
          %v4313 = vunpack.c.l.b16 %v4232
          %v4314 = vunpack.c.l.b16 %v4233
          %v4315 = vpack.c.b16 %v4310, %v4309
          %v4316 = vpack.c.b16 %v4312, %v4311
          %v4317 = vpack.c.b16 %v4314, %v4313
          %vm4321 = vcmask 392192
          %v4323 = vsel %vm4321, %v4302, 0
          %4325 = vmatprep.subr.bf16.mxu0 0
          %4326 = vmatpush1.bf16.msra.mxu0 %v4315
          %4327 = vmatprep.subr.bf16.mxu0 0
          %4328 = vmatpush1.bf16.msra.mxu0 %v4316
          %4329 = vmatprep.subr.bf16.mxu0 0
          %4330 = vmatpush1.bf16.msra.mxu0 %v4317
          %4331 = vmatprep.subr.bf16.mxu0 0
          %4332 = vmatpush1.bf16.msra.mxu0 0
          %4333 = vmatprep.subr.bf16.mxu0 0
          %4334 = vmatpush1.bf16.msra.mxu0 0
          %4335 = vmatprep.subr.bf16.mxu0 0
          %4336 = vmatpush1.bf16.msra.mxu0 0
          %4337 = vmatprep.subr.bf16.mxu0 0
          %4338 = vmatpush1.bf16.msra.mxu0 0
          %4339 = vmatprep.subr.bf16.mxu0 0
          %4340 = vmatpush1.bf16.msra.mxu0 0
          %4341 = vmatprep.subr.bf16.mxu0 0
          %4342 = vmatpush1.bf16.msra.mxu0 0
          %4343 = vmatprep.subr.bf16.mxu0 0
          %4344 = vmatpush1.bf16.msra.mxu0 0
          %4345 = vmatprep.subr.bf16.mxu0 0
          %4346 = vmatpush1.bf16.msra.mxu0 0
          %4347 = vmatprep.subr.bf16.mxu0 0
          %4348 = vmatpush1.bf16.msra.mxu0 0
          %4349 = vmatprep.subr.bf16.mxu0 0
          %4350 = vmatpush1.bf16.msra.mxu0 0
          %4351 = vmatprep.subr.bf16.mxu0 0
          %4352 = vmatpush1.bf16.msra.mxu0 0
          %4353 = vmatprep.subr.bf16.mxu0 0
          %4354 = vmatpush1.bf16.msra.mxu0 0
          %4355 = vmatprep.subr.bf16.mxu0 0
          %4356 = vmatpush1.bf16.msra.mxu0 0
          %4357 = vmatprep.mubr.bf16.mxu0 0
          %4358 = vmatmul.mubr.bf16.gmra.mrb[0].mxu0 %v4323
          %v4359 = vpop.f32.mrb[0].mxu0
          %v4360 = vadd.f32 %v4296, %v4359
          %v4361 = vpop.f32.mrb[0].mxu0
          %v4362 = vpop.f32.mrb[0].mxu0
          %v4363 = vadd.f32 %v4296, %v4362
          %v4364 = vpop.f32.mrb[0].mxu0
          %4365 = vdwg.mxu0
          %v4366 = vmax.f32 %v4360, 0.0
          %v4367 = vmax.f32 %v4363, 0.0
          %v4368 = vpack.c.bf16 %v4367, %v4366
          %v4370 = vlaneseq
          %v4371 = vshrl.u32 %v4370, 7
          %v4372 = vsub.s32 0, %v4371
          %v4373 = vrot.slane %v4291, %v4372
          %v4381 = vunpack.c.l.b16 %v4234
          %v4382 = vunpack.c.l.b16 %v4235
          %v4383 = vunpack.c.l.b16 %v4236
          %v4384 = vunpack.c.l.b16 %v4237
          %v4385 = vunpack.c.l.b16 %v4238
          %v4386 = vunpack.c.l.b16 %v4239
          %v4387 = vpack.c.b16 %v4382, %v4381
          %v4388 = vpack.c.b16 %v4384, %v4383
          %v4389 = vpack.c.b16 %v4386, %v4385
          %v4394 = vsel %vm4321, %v4368, 0
          %4396 = vmatprep.subr.bf16.mxu0 0
          %4397 = vmatpush1.bf16.msra.mxu0 %v4387
          %4398 = vmatprep.subr.bf16.mxu0 0
          %4399 = vmatpush1.bf16.msra.mxu0 %v4388
          %4400 = vmatprep.subr.bf16.mxu0 0
          %4401 = vmatpush1.bf16.msra.mxu0 %v4389
          %4402 = vmatprep.subr.bf16.mxu0 0
          %4403 = vmatpush1.bf16.msra.mxu0 0
          %4404 = vmatprep.subr.bf16.mxu0 0
          %4405 = vmatpush1.bf16.msra.mxu0 0
          %4406 = vmatprep.subr.bf16.mxu0 0
          %4407 = vmatpush1.bf16.msra.mxu0 0
          %4408 = vmatprep.subr.bf16.mxu0 0
          %4409 = vmatpush1.bf16.msra.mxu0 0
          %4410 = vmatprep.subr.bf16.mxu0 0
          %4411 = vmatpush1.bf16.msra.mxu0 0
          %4412 = vmatprep.subr.bf16.mxu0 0
          %4413 = vmatpush1.bf16.msra.mxu0 0
          %4414 = vmatprep.subr.bf16.mxu0 0
          %4415 = vmatpush1.bf16.msra.mxu0 0
          %4416 = vmatprep.subr.bf16.mxu0 0
          %4417 = vmatpush1.bf16.msra.mxu0 0
          %4418 = vmatprep.subr.bf16.mxu0 0
          %4419 = vmatpush1.bf16.msra.mxu0 0
          %4420 = vmatprep.subr.bf16.mxu0 0
          %4421 = vmatpush1.bf16.msra.mxu0 0
          %4422 = vmatprep.subr.bf16.mxu0 0
          %4423 = vmatpush1.bf16.msra.mxu0 0
          %4424 = vmatprep.subr.bf16.mxu0 0
          %4425 = vmatpush1.bf16.msra.mxu0 0
          %4426 = vmatprep.subr.bf16.mxu0 0
          %4427 = vmatpush1.bf16.msra.mxu0 0
          %4428 = vmatprep.mubr.bf16.mxu0 0
          %4429 = vmatmul.mubr.bf16.gmra.mrb[0].mxu0 %v4394
          %v4430 = vpop.f32.mrb[0].mxu0
          %v4431 = vadd.f32 %v4373, %v4430
          %v4432 = vpop.f32.mrb[0].mxu0
          %v4433 = vpop.f32.mrb[0].mxu0
          %v4434 = vadd.f32 %v4373, %v4433
          %v4435 = vpop.f32.mrb[0].mxu0
          %4436 = vdwg.mxu0
          %v4437 = vmul.f32 %v4431, %v4431
          %v4438 = vmul.f32 %v4434, %v4434
          %v4439 = vsel %vm4218, %v4437, 0.0
          %4440 = vadd.xlane.f32.xlu0 %v4439
          %v4441 = vpop.xlane.xlu0 %4440
          %v4442 = vsel %vm4218, %v4438, 0.0
          %4443 = vadd.xlane.f32.xlu0 %v4442
          %v4444 = vpop.xlane.xlu0 %4443
          %v4445 = vmax.f32 %v4441, 1e-24
          %v4446 = vmax.f32 %v4444, 1e-24
          %v4447 = vrsqrt.pop %v4445
          %v4448 = vrsqrt.pop %v4446
          %v4449 = vmul.f32 %v4431, %v4447
          %v4450 = vmul.f32 %v4434, %v4448
          %v4451 = vld [vmem:[#allocation6] sm:$0xff]
          %v4452 = vld [vmem:[#allocation6 + $0x8] sm:$0xff]
          %v4453 = vld [vmem:[#allocation9 + $0x2] sm:$0x3]
          %v4454 = vld [vmem:[#allocation9 + $0x4] sm:$0x1]
          %v4456 = vlaneseq
          %v4457 = vshrl.u32 %v4456, 7
          %v4458 = vsub.s32 0, %v4457
          %v4459 = vrot.slane %v4453, %v4458
          %v4460 = vlaneseq
          %v4461 = vshrl.u32 %v4460, 7
          %v4462 = vsub.s32 1, %v4461
          %v4463 = vrot.slane %v4453, %v4462
          %v4468 = vunpack.c.l.b16 %v4451
          %v4469 = vunpack.c.h.b16 %v4451
          %v4470 = vunpack.c.l.b16 %v4452
          %v4471 = vunpack.c.h.b16 %v4452
          %v4472 = vpack.c.b16 %v4470, %v4468
          %v4473 = vpack.c.b16 %v4471, %v4469
          %v4499 = vunpack.c.l.b16 %v4240
          %v4500 = vunpack.c.h.b16 %v4240
          %v4501 = vunpack.c.l.b16 %v4241
          %v4502 = vunpack.c.h.b16 %v4241
          %v4503 = vunpack.c.l.b16 %v4242
          %v4504 = vunpack.c.h.b16 %v4242
          %v4505 = vunpack.c.l.b16 %v4243
          %v4506 = vunpack.c.h.b16 %v4243
          %v4507 = vunpack.c.l.b16 %v4244
          %v4508 = vunpack.c.h.b16 %v4244
          %v4509 = vunpack.c.l.b16 %v4245
          %v4510 = vunpack.c.h.b16 %v4245
          %v4511 = vunpack.c.l.b16 %v4246
          %v4512 = vunpack.c.h.b16 %v4246
          %v4513 = vunpack.c.l.b16 %v4247
          %v4514 = vunpack.c.h.b16 %v4247
          %v4515 = vunpack.c.l.b16 %v4248
          %v4516 = vunpack.c.h.b16 %v4248
          %v4517 = vunpack.c.l.b16 %v4249
          %v4518 = vunpack.c.h.b16 %v4249
          %v4519 = vunpack.c.l.b16 %v4250
          %v4520 = vunpack.c.h.b16 %v4250
          %v4521 = vunpack.c.l.b16 %v4251
          %v4522 = vunpack.c.h.b16 %v4251
          %v4523 = vunpack.c.l.b16 %v4252
          %v4524 = vunpack.c.h.b16 %v4252
          %v4525 = vunpack.c.l.b16 %v4253
          %v4526 = vunpack.c.h.b16 %v4253
          %v4527 = vunpack.c.l.b16 %v4254
          %v4528 = vunpack.c.h.b16 %v4254
          %v4529 = vunpack.c.l.b16 %v4255
          %v4530 = vunpack.c.h.b16 %v4255
          %v4531 = vunpack.c.l.b16 %v4256
          %v4532 = vunpack.c.h.b16 %v4256
          %v4533 = vunpack.c.l.b16 %v4257
          %v4534 = vunpack.c.h.b16 %v4257
          %v4535 = vunpack.c.l.b16 %v4258
          %v4536 = vunpack.c.h.b16 %v4258
          %v4537 = vunpack.c.l.b16 %v4259
          %v4538 = vunpack.c.h.b16 %v4259
          %v4539 = vunpack.c.l.b16 %v4260
          %v4540 = vunpack.c.h.b16 %v4260
          %v4541 = vunpack.c.l.b16 %v4261
          %v4542 = vunpack.c.h.b16 %v4261
          %v4543 = vunpack.c.l.b16 %v4262
          %v4544 = vunpack.c.h.b16 %v4262
          %v4545 = vunpack.c.l.b16 %v4263
          %v4546 = vunpack.c.h.b16 %v4263
          %v4547 = vpack.c.b16 %v4501, %v4499
          %v4548 = vpack.c.b16 %v4502, %v4500
          %v4549 = vpack.c.b16 %v4505, %v4503
          %v4550 = vpack.c.b16 %v4506, %v4504
          %v4551 = vpack.c.b16 %v4509, %v4507
          %v4552 = vpack.c.b16 %v4510, %v4508
          %v4553 = vpack.c.b16 %v4513, %v4511
          %v4554 = vpack.c.b16 %v4514, %v4512
          %v4555 = vpack.c.b16 %v4517, %v4515
          %v4556 = vpack.c.b16 %v4518, %v4516
          %v4557 = vpack.c.b16 %v4521, %v4519
          %v4558 = vpack.c.b16 %v4522, %v4520
          %v4559 = vpack.c.b16 %v4525, %v4523
          %v4560 = vpack.c.b16 %v4526, %v4524
          %v4561 = vpack.c.b16 %v4529, %v4527
          %v4562 = vpack.c.b16 %v4530, %v4528
          %v4563 = vpack.c.b16 %v4533, %v4531
          %v4564 = vpack.c.b16 %v4534, %v4532
          %v4565 = vpack.c.b16 %v4537, %v4535
          %v4566 = vpack.c.b16 %v4538, %v4536
          %v4567 = vpack.c.b16 %v4541, %v4539
          %v4568 = vpack.c.b16 %v4542, %v4540
          %v4569 = vpack.c.b16 %v4545, %v4543
          %v4570 = vpack.c.b16 %v4546, %v4544
          %vm4595 = vcmask 523264
          %v4597 = vsel %vm4595, %v4473, 0
          %4599 = vmatprep.subr.bf16.mxu0 %v4548
          %4600 = vmatpush1.bf16.msra.mxu0 %v4547
          %4601 = vmatprep.subr.bf16.mxu0 %v4550
          %4602 = vmatpush1.bf16.msra.mxu0 %v4549
          %4603 = vmatprep.subr.bf16.mxu0 %v4552
          %4604 = vmatpush1.bf16.msra.mxu0 %v4551
          %4605 = vmatprep.subr.bf16.mxu0 %v4554
          %4606 = vmatpush1.bf16.msra.mxu0 %v4553
          %4607 = vmatprep.subr.bf16.mxu0 %v4556
          %4608 = vmatpush1.bf16.msra.mxu0 %v4555
          %4609 = vmatprep.subr.bf16.mxu0 %v4558
          %4610 = vmatpush1.bf16.msra.mxu0 %v4557
          %4611 = vmatprep.subr.bf16.mxu0 %v4560
          %4612 = vmatpush1.bf16.msra.mxu0 %v4559
          %4613 = vmatprep.subr.bf16.mxu0 %v4562
          %4614 = vmatpush1.bf16.msra.mxu0 %v4561
          %4615 = vmatprep.subr.bf16.mxu0 %v4564
          %4616 = vmatpush1.bf16.msra.mxu0 %v4563
          %4617 = vmatprep.subr.bf16.mxu0 %v4566
          %4618 = vmatpush1.bf16.msra.mxu0 %v4565
          %4619 = vmatprep.subr.bf16.mxu0 %v4568
          %4620 = vmatpush1.bf16.msra.mxu0 %v4567
          %4621 = vmatprep.subr.bf16.mxu0 %v4570
          %4622 = vmatpush1.bf16.msra.mxu0 %v4569
          %4623 = vmatprep.subr.bf16.mxu0 0
          %4624 = vmatpush1.bf16.msra.mxu0 0
          %4625 = vmatprep.subr.bf16.mxu0 0
          %4626 = vmatpush1.bf16.msra.mxu0 0
          %4627 = vmatprep.subr.bf16.mxu0 0
          %4628 = vmatpush1.bf16.msra.mxu0 0
          %4629 = vmatprep.subr.bf16.mxu0 0
          %4630 = vmatpush1.bf16.msra.mxu0 0
          %4631 = vmatprep.mubr.bf16.mxu0 %v4597
          %4632 = vmatmul.mubr.bf16.gmra.mrb[0].mxu0 %v4472
          %v4633 = vpop.f32.mrb[0].mxu0
          %v4634 = vadd.f32 %v4459, %v4633
          %v4635 = vpop.f32.mrb[0].mxu0
          %v4636 = vadd.f32 %v4463, %v4635
          %v4637 = vpop.f32.mrb[0].mxu0
          %v4638 = vadd.f32 %v4459, %v4637
          %v4639 = vpop.f32.mrb[0].mxu0
          %v4640 = vadd.f32 %v4463, %v4639
          %4641 = vdwg.mxu0
          %v4642 = vmax.f32 %v4634, 0.0
          %v4643 = vmax.f32 %v4636, 0.0
          %v4644 = vmax.f32 %v4638, 0.0
          %v4645 = vmax.f32 %v4640, 0.0
          %v4646 = vpack.c.bf16 %v4644, %v4642
          %v4647 = vpack.c.bf16 %v4645, %v4643
          %v4649 = vlaneseq
          %v4650 = vshrl.u32 %v4649, 7
          %v4651 = vsub.s32 0, %v4650
          %v4652 = vrot.slane %v4454, %v4651
          %v4678 = vunpack.c.l.b16 %v4264
          %v4679 = vunpack.c.l.b16 %v4265
          %v4680 = vunpack.c.l.b16 %v4266
          %v4681 = vunpack.c.l.b16 %v4267
          %v4682 = vunpack.c.l.b16 %v4268
          %v4683 = vunpack.c.l.b16 %v4269
          %v4684 = vunpack.c.l.b16 %v4270
          %v4685 = vunpack.c.l.b16 %v4271
          %v4686 = vunpack.c.l.b16 %v4272
          %v4687 = vunpack.c.l.b16 %v4273
          %v4688 = vunpack.c.l.b16 %v4274
          %v4689 = vunpack.c.l.b16 %v4275
          %v4690 = vunpack.c.l.b16 %v4276
          %v4691 = vunpack.c.l.b16 %v4277
          %v4692 = vunpack.c.l.b16 %v4278
          %v4693 = vunpack.c.l.b16 %v4279
          %v4694 = vunpack.c.l.b16 %v4280
          %v4695 = vunpack.c.l.b16 %v4281
          %v4696 = vunpack.c.l.b16 %v4282
          %v4697 = vunpack.c.l.b16 %v4283
          %v4698 = vunpack.c.l.b16 %v4284
          %v4699 = vunpack.c.l.b16 %v4285
          %v4700 = vunpack.c.l.b16 %v4286
          %v4701 = vunpack.c.l.b16 %v4287
          %v4702 = vpack.c.b16 %v4679, %v4678
          %v4703 = vpack.c.b16 %v4681, %v4680
          %v4704 = vpack.c.b16 %v4683, %v4682
          %v4705 = vpack.c.b16 %v4685, %v4684
          %v4706 = vpack.c.b16 %v4687, %v4686
          %v4707 = vpack.c.b16 %v4689, %v4688
          %v4708 = vpack.c.b16 %v4691, %v4690
          %v4709 = vpack.c.b16 %v4693, %v4692
          %v4710 = vpack.c.b16 %v4695, %v4694
          %v4711 = vpack.c.b16 %v4697, %v4696
          %v4712 = vpack.c.b16 %v4699, %v4698
          %v4713 = vpack.c.b16 %v4701, %v4700
          %v4727 = vsel %vm4595, %v4647, 0
          %4729 = vmatprep.subr.bf16.mxu0 0
          %4730 = vmatpush1.bf16.msra.mxu0 %v4702
          %4731 = vmatprep.subr.bf16.mxu0 0
          %4732 = vmatpush1.bf16.msra.mxu0 %v4703
          %4733 = vmatprep.subr.bf16.mxu0 0
          %4734 = vmatpush1.bf16.msra.mxu0 %v4704
          %4735 = vmatprep.subr.bf16.mxu0 0
          %4736 = vmatpush1.bf16.msra.mxu0 %v4705
          %4737 = vmatprep.subr.bf16.mxu0 0
          %4738 = vmatpush1.bf16.msra.mxu0 %v4706
          %4739 = vmatprep.subr.bf16.mxu0 0
          %4740 = vmatpush1.bf16.msra.mxu0 %v4707
          %4741 = vmatprep.subr.bf16.mxu0 0
          %4742 = vmatpush1.bf16.msra.mxu0 %v4708
          %4743 = vmatprep.subr.bf16.mxu0 0
          %4744 = vmatpush1.bf16.msra.mxu0 %v4709
          %4745 = vmatprep.subr.bf16.mxu0 0
          %4746 = vmatpush1.bf16.msra.mxu0 %v4710
          %4747 = vmatprep.subr.bf16.mxu0 0
          %4748 = vmatpush1.bf16.msra.mxu0 %v4711
          %4749 = vmatprep.subr.bf16.mxu0 0
          %4750 = vmatpush1.bf16.msra.mxu0 %v4712
          %4751 = vmatprep.subr.bf16.mxu0 0
          %4752 = vmatpush1.bf16.msra.mxu0 %v4713
          %4753 = vmatprep.subr.bf16.mxu0 0
          %4754 = vmatpush1.bf16.msra.mxu0 0
          %4755 = vmatprep.subr.bf16.mxu0 0
          %4756 = vmatpush1.bf16.msra.mxu0 0
          %4757 = vmatprep.subr.bf16.mxu0 0
          %4758 = vmatpush1.bf16.msra.mxu0 0
          %4759 = vmatprep.subr.bf16.mxu0 0
          %4760 = vmatpush1.bf16.msra.mxu0 0
          %4761 = vmatprep.mubr.bf16.mxu0 %v4727
          %4762 = vmatmul.mubr.bf16.gmra.mrb[0].mxu0 %v4646
          %v4763 = vpop.f32.mrb[0].mxu0
          %v4764 = vadd.f32 %v4652, %v4763
          %v4765 = vpop.f32.mrb[0].mxu0
          %v4766 = vpop.f32.mrb[0].mxu0
          %v4767 = vadd.f32 %v4652, %v4766
          %v4768 = vpop.f32.mrb[0].mxu0
          %4769 = vdwg.mxu0
          %v4770 = vmul.f32 %v4764, %v4764
          %v4771 = vmul.f32 %v4767, %v4767
          %v4772 = vsel %vm4218, %v4770, 0.0
          %4773 = vadd.xlane.f32.xlu0 %v4772
          %v4774 = vpop.xlane.xlu0 %4773
          %v4775 = vsel %vm4218, %v4771, 0.0
          %4776 = vadd.xlane.f32.xlu0 %v4775
          %v4777 = vpop.xlane.xlu0 %4776
          %v4778 = vmax.f32 %v4774, 1e-24
          %v4779 = vmax.f32 %v4777, 1e-24
          %v4780 = vrsqrt.pop %v4778
          %v4781 = vrsqrt.pop %v4779
          %v4782 = vmul.f32 %v4764, %v4780
          %v4783 = vmul.f32 %v4767, %v4781
          %v4784 = vld [vmem:[#allocation8] sm:$0xff]
          %v4785 = vld [vmem:[#allocation8 + $0x8] sm:$0xff]
          %v4787 = vsel %vm4321, %v4784, 0
          %4789 = vmatprep.subr.mxu0 0.0
          %4790 = vmatpush1.xpose.msra.mxu0 %v4787
          %4791 = vmatprep.subr.mxu0 0.0
          %4792 = vmatpush1.xpose.msra.mxu0 0.0
          %4793 = vmatprep.subr.mxu0 0.0
          %4794 = vmatpush1.xpose.msra.mxu0 0.0
          %4795 = vmatprep.subr.mxu0 0.0
          %4796 = vmatpush1.xpose.msra.mxu0 0.0
          %4797 = vmatprep.subr.mxu0 0.0
          %4798 = vmatpush1.xpose.msra.mxu0 0.0
          %4799 = vmatprep.subr.mxu0 0.0
          %4800 = vmatpush1.xpose.msra.mxu0 0.0
          %4801 = vmatprep.subr.mxu0 0.0
          %4802 = vmatpush1.xpose.msra.mxu0 0.0
          %4803 = vmatprep.subr.mxu0 0.0
          %4804 = vmatpush1.xpose.msra.mxu0 0.0
          %4805 = vmatprep.subr.mxu0 0.0
          %4806 = vmatpush1.xpose.msra.mxu0 0.0
          %4807 = vmatprep.subr.mxu0 0.0
          %4808 = vmatpush1.xpose.msra.mxu0 0.0
          %4809 = vmatprep.subr.mxu0 0.0
          %4810 = vmatpush1.xpose.msra.mxu0 0.0
          %4811 = vmatprep.subr.mxu0 0.0
          %4812 = vmatpush1.xpose.msra.mxu0 0.0
          %4813 = vmatprep.subr.mxu0 0.0
          %4814 = vmatpush1.xpose.msra.mxu0 0.0
          %4815 = vmatprep.subr.mxu0 0.0
          %4816 = vmatpush1.xpose.msra.mxu0 0.0
          %4817 = vmatprep.subr.mxu0 0.0
          %4818 = vmatpush1.xpose.msra.mxu0 0.0
          %4819 = vmatprep.subr.mxu0 0.0
          %4820 = vmatpush1.xpose.msra.mxu0 0.0
          %4821 = vmatprep.subr.mxu0 0.0
          %4822 = vmatpush1.xpose.msra.mxu0 0.0
          %4823 = vmatprep.subr.mxu0 0.0
          %4824 = vmatpush1.xpose.msra.mxu0 0.0
          %4825 = vmatprep.subr.mxu0 0.0
          %4826 = vmatpush1.xpose.msra.mxu0 0.0
          %4827 = vmatprep.subr.mxu0 0.0
          %4828 = vmatpush1.xpose.msra.mxu0 0.0
          %4829 = vmatprep.subr.mxu0 0.0
          %4830 = vmatpush1.xpose.msra.mxu0 0.0
          %4831 = vmatprep.subr.mxu0 0.0
          %4832 = vmatpush1.xpose.msra.mxu0 0.0
          %4833 = vmatprep.subr.mxu0 0.0
          %4834 = vmatpush1.xpose.msra.mxu0 0.0
          %4835 = vmatprep.subr.mxu0 0.0
          %4836 = vmatpush1.xpose.msra.mxu0 0.0
          %4837 = vmatprep.subr.mxu0 0.0
          %4838 = vmatpush1.xpose.msra.mxu0 0.0
          %4839 = vmatprep.subr.mxu0 0.0
          %4840 = vmatpush1.xpose.msra.mxu0 0.0
          %4841 = vmatprep.subr.mxu0 0.0
          %4842 = vmatpush1.xpose.msra.mxu0 0.0
          %4843 = vmatprep.subr.mxu0 0.0
          %4844 = vmatpush1.xpose.msra.mxu0 0.0
          %4845 = vmatprep.subr.mxu0 0.0
          %4846 = vmatpush1.xpose.msra.mxu0 0.0
          %4847 = vmatprep.subr.mxu0 0.0
          %4848 = vmatpush1.xpose.msra.mxu0 0.0
          %4849 = vmatprep.subr.mxu0 0.0
          %4850 = vmatpush1.xpose.msra.mxu0 0.0
          %4851 = vmatprep.subr.mxu0 0.0
          %4852 = vmatpush1.xpose.msra.mxu0 0.0
          %4853 = vmatprep.mubr.f32.mxu0 0.0
          %4854 = vmatmul.mubr.f32.gmra.mrb[0].mxu0 %v4787
          %v4855 = vpop.f32.mrb[0].mxu0
          %v4856 = vadd.f32 0.0, %v4855
          %v4857 = vpop.f32.mrb[0].mxu0
          %4858 = vdwg.mxu0
          %v4860 = vsel %vm4321, %v4785, 0
          %4862 = vmatprep.subr.mxu0 0.0
          %4863 = vmatpush1.xpose.msra.mxu0 %v4860
          %4864 = vmatprep.subr.mxu0 0.0
          %4865 = vmatpush1.xpose.msra.mxu0 0.0
          %4866 = vmatprep.subr.mxu0 0.0
          %4867 = vmatpush1.xpose.msra.mxu0 0.0
          %4868 = vmatprep.subr.mxu0 0.0
          %4869 = vmatpush1.xpose.msra.mxu0 0.0
          %4870 = vmatprep.subr.mxu0 0.0
          %4871 = vmatpush1.xpose.msra.mxu0 0.0
          %4872 = vmatprep.subr.mxu0 0.0
          %4873 = vmatpush1.xpose.msra.mxu0 0.0
          %4874 = vmatprep.subr.mxu0 0.0
          %4875 = vmatpush1.xpose.msra.mxu0 0.0
          %4876 = vmatprep.subr.mxu0 0.0
          %4877 = vmatpush1.xpose.msra.mxu0 0.0
          %4878 = vmatprep.subr.mxu0 0.0
          %4879 = vmatpush1.xpose.msra.mxu0 0.0
          %4880 = vmatprep.subr.mxu0 0.0
          %4881 = vmatpush1.xpose.msra.mxu0 0.0
          %4882 = vmatprep.subr.mxu0 0.0
          %4883 = vmatpush1.xpose.msra.mxu0 0.0
          %4884 = vmatprep.subr.mxu0 0.0
          %4885 = vmatpush1.xpose.msra.mxu0 0.0
          %4886 = vmatprep.subr.mxu0 0.0
          %4887 = vmatpush1.xpose.msra.mxu0 0.0
          %4888 = vmatprep.subr.mxu0 0.0
          %4889 = vmatpush1.xpose.msra.mxu0 0.0
          %4890 = vmatprep.subr.mxu0 0.0
          %4891 = vmatpush1.xpose.msra.mxu0 0.0
          %4892 = vmatprep.subr.mxu0 0.0
          %4893 = vmatpush1.xpose.msra.mxu0 0.0
          %4894 = vmatprep.subr.mxu0 0.0
          %4895 = vmatpush1.xpose.msra.mxu0 0.0
          %4896 = vmatprep.subr.mxu0 0.0
          %4897 = vmatpush1.xpose.msra.mxu0 0.0
          %4898 = vmatprep.subr.mxu0 0.0
          %4899 = vmatpush1.xpose.msra.mxu0 0.0
          %4900 = vmatprep.subr.mxu0 0.0
          %4901 = vmatpush1.xpose.msra.mxu0 0.0
          %4902 = vmatprep.subr.mxu0 0.0
          %4903 = vmatpush1.xpose.msra.mxu0 0.0
          %4904 = vmatprep.subr.mxu0 0.0
          %4905 = vmatpush1.xpose.msra.mxu0 0.0
          %4906 = vmatprep.subr.mxu0 0.0
          %4907 = vmatpush1.xpose.msra.mxu0 0.0
          %4908 = vmatprep.subr.mxu0 0.0
          %4909 = vmatpush1.xpose.msra.mxu0 0.0
          %4910 = vmatprep.subr.mxu0 0.0
          %4911 = vmatpush1.xpose.msra.mxu0 0.0
          %4912 = vmatprep.subr.mxu0 0.0
          %4913 = vmatpush1.xpose.msra.mxu0 0.0
          %4914 = vmatprep.subr.mxu0 0.0
          %4915 = vmatpush1.xpose.msra.mxu0 0.0
          %4916 = vmatprep.subr.mxu0 0.0
          %4917 = vmatpush1.xpose.msra.mxu0 0.0
          %4918 = vmatprep.subr.mxu0 0.0
          %4919 = vmatpush1.xpose.msra.mxu0 0.0
          %4920 = vmatprep.subr.mxu0 0.0
          %4921 = vmatpush1.xpose.msra.mxu0 0.0
          %4922 = vmatprep.subr.mxu0 0.0
          %4923 = vmatpush1.xpose.msra.mxu0 0.0
          %4924 = vmatprep.subr.mxu0 0.0
          %4925 = vmatpush1.xpose.msra.mxu0 0.0
          %4926 = vmatprep.mubr.f32.mxu0 0.0
          %4927 = vmatmul.mubr.f32.gmra.mrb[0].mxu0 %v4860
          %v4928 = vpop.f32.mrb[0].mxu0
          %v4929 = vadd.f32 0.0, %v4928
          %v4930 = vpop.f32.mrb[0].mxu0
          %4931 = vdwg.mxu0
          %vm4932 = vcmask 64512
          %v4934 = vsel %vm4932, %v4856, 0
          %4936 = vmatprep.subr.mxu0 0.0
          %4937 = vmatpush1.msra.mxu0 %v4782
          %4938 = vmatprep.subr.mxu0 0.0
          %4939 = vmatpush1.msra.mxu0 0.0
          %4940 = vmatprep.subr.mxu0 0.0
          %4941 = vmatpush1.msra.mxu0 0.0
          %4942 = vmatprep.subr.mxu0 0.0
          %4943 = vmatpush1.msra.mxu0 0.0
          %4944 = vmatprep.subr.mxu0 0.0
          %4945 = vmatpush1.msra.mxu0 0.0
          %4946 = vmatprep.subr.mxu0 0.0
          %4947 = vmatpush1.msra.mxu0 0.0
          %4948 = vmatprep.subr.mxu0 0.0
          %4949 = vmatpush1.msra.mxu0 0.0
          %4950 = vmatprep.subr.mxu0 0.0
          %4951 = vmatpush1.msra.mxu0 0.0
          %4952 = vmatprep.subr.mxu0 0.0
          %4953 = vmatpush1.msra.mxu0 0.0
          %4954 = vmatprep.subr.mxu0 0.0
          %4955 = vmatpush1.msra.mxu0 0.0
          %4956 = vmatprep.subr.mxu0 0.0
          %4957 = vmatpush1.msra.mxu0 0.0
          %4958 = vmatprep.subr.mxu0 0.0
          %4959 = vmatpush1.msra.mxu0 0.0
          %4960 = vmatprep.subr.mxu0 0.0
          %4961 = vmatpush1.msra.mxu0 0.0
          %4962 = vmatprep.subr.mxu0 0.0
          %4963 = vmatpush1.msra.mxu0 0.0
          %4964 = vmatprep.subr.mxu0 0.0
          %4965 = vmatpush1.msra.mxu0 0.0
          %4966 = vmatprep.subr.mxu0 0.0
          %4967 = vmatpush1.msra.mxu0 0.0
          %4968 = vmatprep.subr.mxu0 0.0
          %4969 = vmatpush1.msra.mxu0 0.0
          %4970 = vmatprep.subr.mxu0 0.0
          %4971 = vmatpush1.msra.mxu0 0.0
          %4972 = vmatprep.subr.mxu0 0.0
          %4973 = vmatpush1.msra.mxu0 0.0
          %4974 = vmatprep.subr.mxu0 0.0
          %4975 = vmatpush1.msra.mxu0 0.0
          %4976 = vmatprep.subr.mxu0 0.0
          %4977 = vmatpush1.msra.mxu0 0.0
          %4978 = vmatprep.subr.mxu0 0.0
          %4979 = vmatpush1.msra.mxu0 0.0
          %4980 = vmatprep.subr.mxu0 0.0
          %4981 = vmatpush1.msra.mxu0 0.0
          %4982 = vmatprep.subr.mxu0 0.0
          %4983 = vmatpush1.msra.mxu0 0.0
          %4984 = vmatprep.subr.mxu0 0.0
          %4985 = vmatpush1.msra.mxu0 0.0
          %4986 = vmatprep.subr.mxu0 0.0
          %4987 = vmatpush1.msra.mxu0 0.0
          %4988 = vmatprep.subr.mxu0 0.0
          %4989 = vmatpush1.msra.mxu0 0.0
          %4990 = vmatprep.subr.mxu0 0.0
          %4991 = vmatpush1.msra.mxu0 0.0
          %4992 = vmatprep.subr.mxu0 0.0
          %4993 = vmatpush1.msra.mxu0 0.0
          %4994 = vmatprep.subr.mxu0 0.0
          %4995 = vmatpush1.msra.mxu0 0.0
          %4996 = vmatprep.subr.mxu0 0.0
          %4997 = vmatpush1.msra.mxu0 0.0
          %4998 = vmatprep.subr.mxu0 0.0
          %4999 = vmatpush1.msra.mxu0 0.0
          %5000 = vmatprep.mubr.f32.mxu0 0.0
          %5001 = vmatmul.mubr.f32.gmra.mrb[0].mxu0 %v4934
          %v5002 = vpop.f32.mrb[0].mxu0
          %v5003 = vadd.f32 0.0, %v5002
          %v5004 = vpop.f32.mrb[0].mxu0
          %5005 = vdwg.mxu0
          %v5007 = vsel %vm4932, %v4929, 0
          %5009 = vmatprep.subr.mxu0 0.0
          %5010 = vmatpush1.msra.mxu0 %v4783
          %5011 = vmatprep.subr.mxu0 0.0
          %5012 = vmatpush1.msra.mxu0 0.0
          %5013 = vmatprep.subr.mxu0 0.0
          %5014 = vmatpush1.msra.mxu0 0.0
          %5015 = vmatprep.subr.mxu0 0.0
          %5016 = vmatpush1.msra.mxu0 0.0
          %5017 = vmatprep.subr.mxu0 0.0
          %5018 = vmatpush1.msra.mxu0 0.0
          %5019 = vmatprep.subr.mxu0 0.0
          %5020 = vmatpush1.msra.mxu0 0.0
          %5021 = vmatprep.subr.mxu0 0.0
          %5022 = vmatpush1.msra.mxu0 0.0
          %5023 = vmatprep.subr.mxu0 0.0
          %5024 = vmatpush1.msra.mxu0 0.0
          %5025 = vmatprep.subr.mxu0 0.0
          %5026 = vmatpush1.msra.mxu0 0.0
          %5027 = vmatprep.subr.mxu0 0.0
          %5028 = vmatpush1.msra.mxu0 0.0
          %5029 = vmatprep.subr.mxu0 0.0
          %5030 = vmatpush1.msra.mxu0 0.0
          %5031 = vmatprep.subr.mxu0 0.0
          %5032 = vmatpush1.msra.mxu0 0.0
          %5033 = vmatprep.subr.mxu0 0.0
          %5034 = vmatpush1.msra.mxu0 0.0
          %5035 = vmatprep.subr.mxu0 0.0
          %5036 = vmatpush1.msra.mxu0 0.0
          %5037 = vmatprep.subr.mxu0 0.0
          %5038 = vmatpush1.msra.mxu0 0.0
          %5039 = vmatprep.subr.mxu0 0.0
          %5040 = vmatpush1.msra.mxu0 0.0
          %5041 = vmatprep.subr.mxu0 0.0
          %5042 = vmatpush1.msra.mxu0 0.0
          %5043 = vmatprep.subr.mxu0 0.0
          %5044 = vmatpush1.msra.mxu0 0.0
          %5045 = vmatprep.subr.mxu0 0.0
          %5046 = vmatpush1.msra.mxu0 0.0
          %5047 = vmatprep.subr.mxu0 0.0
          %5048 = vmatpush1.msra.mxu0 0.0
          %5049 = vmatprep.subr.mxu0 0.0
          %5050 = vmatpush1.msra.mxu0 0.0
          %5051 = vmatprep.subr.mxu0 0.0
          %5052 = vmatpush1.msra.mxu0 0.0
          %5053 = vmatprep.subr.mxu0 0.0
          %5054 = vmatpush1.msra.mxu0 0.0
          %5055 = vmatprep.subr.mxu0 0.0
          %5056 = vmatpush1.msra.mxu0 0.0
          %5057 = vmatprep.subr.mxu0 0.0
          %5058 = vmatpush1.msra.mxu0 0.0
          %5059 = vmatprep.subr.mxu0 0.0
          %5060 = vmatpush1.msra.mxu0 0.0
          %5061 = vmatprep.subr.mxu0 0.0
          %5062 = vmatpush1.msra.mxu0 0.0
          %5063 = vmatprep.subr.mxu0 0.0
          %5064 = vmatpush1.msra.mxu0 0.0
          %5065 = vmatprep.subr.mxu0 0.0
          %5066 = vmatpush1.msra.mxu0 0.0
          %5067 = vmatprep.subr.mxu0 0.0
          %5068 = vmatpush1.msra.mxu0 0.0
          %5069 = vmatprep.subr.mxu0 0.0
          %5070 = vmatpush1.msra.mxu0 0.0
          %5071 = vmatprep.subr.mxu0 0.0
          %5072 = vmatpush1.msra.mxu0 0.0
          %5073 = vmatprep.mubr.f32.mxu0 0.0
          %5074 = vmatmul.mubr.f32.gmra.mrb[0].mxu0 %v5007
          %v5075 = vpop.f32.mrb[0].mxu0
          %v5076 = vadd.f32 0.0, %v5075
          %v5077 = vpop.f32.mrb[0].mxu0
          %5078 = vdwg.mxu0
          %5079 = vst.msk [vmem:[#allocation14] sm:$0xff] %vm4218, %v4449
          %5080 = vst.msk [vmem:[#allocation14 + $0x10] sm:$0xff] %vm4218, %v4450
          %5083 = vrot.lane.b32.xlu0 %v4782, 32
          %v5084 = vpop.permute.xlu0 %5083
          %5085 = vrot.lane.b32.xlu0 %v4783, 32
          %v5086 = vpop.permute.xlu0 %5085
          %vm5089 = vcmask 523520
          %5090 = vst.msk [vmem:[#allocation14] sm:$0xff] %vm5089, %v5084
          %5091 = vst.msk [vmem:[#allocation14 + $0x10] sm:$0xff] %vm5089, %v5086
          %5094 = vrot.lane.b32.xlu0 %v5003, 64
          %v5095 = vpop.permute.xlu0 %5094
          %5096 = vrot.lane.b32.xlu0 %v5076, 64
          %v5097 = vpop.permute.xlu0 %5096
          %vm5100 = vcmask 785920
          %5101 = vst.msk [vmem:[#allocation14] sm:$0xff] %vm5100, %v5095
          %5102 = vst.msk [vmem:[#allocation14 + $0x10] sm:$0xff] %vm5100, %v5097
          %5103 = vrot.lane.b32.xlu0 %v4856, 32
          %v5104 = vpop.permute.xlu0 %5103
          %5105 = vrot.lane.b32.xlu0 %v4929, 32
          %v5106 = vpop.permute.xlu0 %5105
          %vm5109 = vcmask 326912
          %5110 = vst.msk [vmem:[#allocation14 + $0x8] sm:$0xff] %vm5109, %v5104
          %5111 = vst.msk [vmem:[#allocation14 + $0x18] sm:$0xff] %vm5109, %v5106
        $region92: #{tpu_custom_call.1} parent=55 // pred_fallthru
          _
        %p5112 = scmp.eq.s32.totalorder %s24, 1
        // Predicated region
        $region93: #{tpu_custom_call.1} parent=55 // pred_check
          %p5113 = pneg %p5112
        $region94: #{tpu_custom_call.1} parent=55 // pred_check_branch
          %5115 = sbr.rel (%p5113) target = $region96
        $region95: #{tpu_custom_call.1} parent=55 // pred_region
          %v5116 = vld [vmem:[#allocation2] sm:$0xff]
          %v5117 = vld [vmem:[#allocation2 + $0x8] sm:$0xff]
          %v5118 = vld [vmem:[#allocation9 + $0x5] sm:$0x1]
          %v5120 = vlaneseq
          %v5121 = vshrl.u32 %v5120, 7
          %v5122 = vsub.s32 0, %v5121
          %v5123 = vrot.slane %v5118, %v5122
          %v5125 = vadd.f32 %v5116, %v5123
          %v5126 = vadd.f32 %v5117, %v5123
          %v5127 = vmul.f32 %v5125, %v5125
          %v5128 = vmul.f32 %v5126, %v5126
          %v5129 = vsel %vm4218, %v5127, 0.0
          %5130 = vadd.xlane.f32.xlu0 %v5129
          %v5131 = vpop.xlane.xlu0 %5130
          %v5132 = vsel %vm4218, %v5128, 0.0
          %5133 = vadd.xlane.f32.xlu0 %v5132
          %v5134 = vpop.xlane.xlu0 %5133
          %v5135 = vmax.f32 %v5131, 1e-24
          %v5136 = vmax.f32 %v5134, 1e-24
          %v5137 = vrsqrt.pop %v5135
          %v5138 = vrsqrt.pop %v5136
          %v5139 = vmul.f32 %v5125, %v5137
          %v5140 = vmul.f32 %v5126, %v5138
          %v5141 = vld [vmem:[#allocation8] sm:$0xff]
          %v5142 = vld [vmem:[#allocation8 + $0x8] sm:$0xff]
          %vm5143 = vcmask 392192
          %v5145 = vsel %vm5143, %v5141, 0
          %5147 = vmatprep.subr.mxu0 0.0
          %5148 = vmatpush1.xpose.msra.mxu0 %v5145
          %5149 = vmatprep.subr.mxu0 0.0
          %5150 = vmatpush1.xpose.msra.mxu0 0.0
          %5151 = vmatprep.subr.mxu0 0.0
          %5152 = vmatpush1.xpose.msra.mxu0 0.0
          %5153 = vmatprep.subr.mxu0 0.0
          %5154 = vmatpush1.xpose.msra.mxu0 0.0
          %5155 = vmatprep.subr.mxu0 0.0
          %5156 = vmatpush1.xpose.msra.mxu0 0.0
          %5157 = vmatprep.subr.mxu0 0.0
          %5158 = vmatpush1.xpose.msra.mxu0 0.0
          %5159 = vmatprep.subr.mxu0 0.0
          %5160 = vmatpush1.xpose.msra.mxu0 0.0
          %5161 = vmatprep.subr.mxu0 0.0
          %5162 = vmatpush1.xpose.msra.mxu0 0.0
          %5163 = vmatprep.subr.mxu0 0.0
          %5164 = vmatpush1.xpose.msra.mxu0 0.0
          %5165 = vmatprep.subr.mxu0 0.0
          %5166 = vmatpush1.xpose.msra.mxu0 0.0
          %5167 = vmatprep.subr.mxu0 0.0
          %5168 = vmatpush1.xpose.msra.mxu0 0.0
          %5169 = vmatprep.subr.mxu0 0.0
          %5170 = vmatpush1.xpose.msra.mxu0 0.0
          %5171 = vmatprep.subr.mxu0 0.0
          %5172 = vmatpush1.xpose.msra.mxu0 0.0
          %5173 = vmatprep.subr.mxu0 0.0
          %5174 = vmatpush1.xpose.msra.mxu0 0.0
          %5175 = vmatprep.subr.mxu0 0.0
          %5176 = vmatpush1.xpose.msra.mxu0 0.0
          %5177 = vmatprep.subr.mxu0 0.0
          %5178 = vmatpush1.xpose.msra.mxu0 0.0
          %5179 = vmatprep.subr.mxu0 0.0
          %5180 = vmatpush1.xpose.msra.mxu0 0.0
          %5181 = vmatprep.subr.mxu0 0.0
          %5182 = vmatpush1.xpose.msra.mxu0 0.0
          %5183 = vmatprep.subr.mxu0 0.0
          %5184 = vmatpush1.xpose.msra.mxu0 0.0
          %5185 = vmatprep.subr.mxu0 0.0
          %5186 = vmatpush1.xpose.msra.mxu0 0.0
          %5187 = vmatprep.subr.mxu0 0.0
          %5188 = vmatpush1.xpose.msra.mxu0 0.0
          %5189 = vmatprep.subr.mxu0 0.0
          %5190 = vmatpush1.xpose.msra.mxu0 0.0
          %5191 = vmatprep.subr.mxu0 0.0
          %5192 = vmatpush1.xpose.msra.mxu0 0.0
          %5193 = vmatprep.subr.mxu0 0.0
          %5194 = vmatpush1.xpose.msra.mxu0 0.0
          %5195 = vmatprep.subr.mxu0 0.0
          %5196 = vmatpush1.xpose.msra.mxu0 0.0
          %5197 = vmatprep.subr.mxu0 0.0
          %5198 = vmatpush1.xpose.msra.mxu0 0.0
          %5199 = vmatprep.subr.mxu0 0.0
          %5200 = vmatpush1.xpose.msra.mxu0 0.0
          %5201 = vmatprep.subr.mxu0 0.0
          %5202 = vmatpush1.xpose.msra.mxu0 0.0
          %5203 = vmatprep.subr.mxu0 0.0
          %5204 = vmatpush1.xpose.msra.mxu0 0.0
          %5205 = vmatprep.subr.mxu0 0.0
          %5206 = vmatpush1.xpose.msra.mxu0 0.0
          %5207 = vmatprep.subr.mxu0 0.0
          %5208 = vmatpush1.xpose.msra.mxu0 0.0
          %5209 = vmatprep.subr.mxu0 0.0
          %5210 = vmatpush1.xpose.msra.mxu0 0.0
          %5211 = vmatprep.mubr.f32.mxu0 0.0
          %5212 = vmatmul.mubr.f32.gmra.mrb[0].mxu0 %v5145
          %v5213 = vpop.f32.mrb[0].mxu0
          %v5214 = vadd.f32 0.0, %v5213
          %v5215 = vpop.f32.mrb[0].mxu0
          %5216 = vdwg.mxu0
          %v5218 = vsel %vm5143, %v5142, 0
          %5220 = vmatprep.subr.mxu0 0.0
          %5221 = vmatpush1.xpose.msra.mxu0 %v5218
          %5222 = vmatprep.subr.mxu0 0.0
          %5223 = vmatpush1.xpose.msra.mxu0 0.0
          %5224 = vmatprep.subr.mxu0 0.0
          %5225 = vmatpush1.xpose.msra.mxu0 0.0
          %5226 = vmatprep.subr.mxu0 0.0
          %5227 = vmatpush1.xpose.msra.mxu0 0.0
          %5228 = vmatprep.subr.mxu0 0.0
          %5229 = vmatpush1.xpose.msra.mxu0 0.0
          %5230 = vmatprep.subr.mxu0 0.0
          %5231 = vmatpush1.xpose.msra.mxu0 0.0
          %5232 = vmatprep.subr.mxu0 0.0
          %5233 = vmatpush1.xpose.msra.mxu0 0.0
          %5234 = vmatprep.subr.mxu0 0.0
          %5235 = vmatpush1.xpose.msra.mxu0 0.0
          %5236 = vmatprep.subr.mxu0 0.0
          %5237 = vmatpush1.xpose.msra.mxu0 0.0
          %5238 = vmatprep.subr.mxu0 0.0
          %5239 = vmatpush1.xpose.msra.mxu0 0.0
          %5240 = vmatprep.subr.mxu0 0.0
          %5241 = vmatpush1.xpose.msra.mxu0 0.0
          %5242 = vmatprep.subr.mxu0 0.0
          %5243 = vmatpush1.xpose.msra.mxu0 0.0
          %5244 = vmatprep.subr.mxu0 0.0
          %5245 = vmatpush1.xpose.msra.mxu0 0.0
          %5246 = vmatprep.subr.mxu0 0.0
          %5247 = vmatpush1.xpose.msra.mxu0 0.0
          %5248 = vmatprep.subr.mxu0 0.0
          %5249 = vmatpush1.xpose.msra.mxu0 0.0
          %5250 = vmatprep.subr.mxu0 0.0
          %5251 = vmatpush1.xpose.msra.mxu0 0.0
          %5252 = vmatprep.subr.mxu0 0.0
          %5253 = vmatpush1.xpose.msra.mxu0 0.0
          %5254 = vmatprep.subr.mxu0 0.0
          %5255 = vmatpush1.xpose.msra.mxu0 0.0
          %5256 = vmatprep.subr.mxu0 0.0
          %5257 = vmatpush1.xpose.msra.mxu0 0.0
          %5258 = vmatprep.subr.mxu0 0.0
          %5259 = vmatpush1.xpose.msra.mxu0 0.0
          %5260 = vmatprep.subr.mxu0 0.0
          %5261 = vmatpush1.xpose.msra.mxu0 0.0
          %5262 = vmatprep.subr.mxu0 0.0
          %5263 = vmatpush1.xpose.msra.mxu0 0.0
          %5264 = vmatprep.subr.mxu0 0.0
          %5265 = vmatpush1.xpose.msra.mxu0 0.0
          %5266 = vmatprep.subr.mxu0 0.0
          %5267 = vmatpush1.xpose.msra.mxu0 0.0
          %5268 = vmatprep.subr.mxu0 0.0
          %5269 = vmatpush1.xpose.msra.mxu0 0.0
          %5270 = vmatprep.subr.mxu0 0.0
          %5271 = vmatpush1.xpose.msra.mxu0 0.0
          %5272 = vmatprep.subr.mxu0 0.0
          %5273 = vmatpush1.xpose.msra.mxu0 0.0
          %5274 = vmatprep.subr.mxu0 0.0
          %5275 = vmatpush1.xpose.msra.mxu0 0.0
          %5276 = vmatprep.subr.mxu0 0.0
          %5277 = vmatpush1.xpose.msra.mxu0 0.0
          %5278 = vmatprep.subr.mxu0 0.0
          %5279 = vmatpush1.xpose.msra.mxu0 0.0
          %5280 = vmatprep.subr.mxu0 0.0
          %5281 = vmatpush1.xpose.msra.mxu0 0.0
          %5282 = vmatprep.subr.mxu0 0.0
          %5283 = vmatpush1.xpose.msra.mxu0 0.0
          %5284 = vmatprep.mubr.f32.mxu0 0.0
          %5285 = vmatmul.mubr.f32.gmra.mrb[0].mxu0 %v5218
          %v5286 = vpop.f32.mrb[0].mxu0
          %v5287 = vadd.f32 0.0, %v5286
          %v5288 = vpop.f32.mrb[0].mxu0
          %5289 = vdwg.mxu0
          %vm5290 = vcmask 64512
          %v5292 = vsel %vm5290, %v5214, 0
          %5294 = vmatprep.subr.mxu0 0.0
          %5295 = vmatpush1.msra.mxu0 %v5139
          %5296 = vmatprep.subr.mxu0 0.0
          %5297 = vmatpush1.msra.mxu0 0.0
          %5298 = vmatprep.subr.mxu0 0.0
          %5299 = vmatpush1.msra.mxu0 0.0
          %5300 = vmatprep.subr.mxu0 0.0
          %5301 = vmatpush1.msra.mxu0 0.0
          %5302 = vmatprep.subr.mxu0 0.0
          %5303 = vmatpush1.msra.mxu0 0.0
          %5304 = vmatprep.subr.mxu0 0.0
          %5305 = vmatpush1.msra.mxu0 0.0
          %5306 = vmatprep.subr.mxu0 0.0
          %5307 = vmatpush1.msra.mxu0 0.0
          %5308 = vmatprep.subr.mxu0 0.0
          %5309 = vmatpush1.msra.mxu0 0.0
          %5310 = vmatprep.subr.mxu0 0.0
          %5311 = vmatpush1.msra.mxu0 0.0
          %5312 = vmatprep.subr.mxu0 0.0
          %5313 = vmatpush1.msra.mxu0 0.0
          %5314 = vmatprep.subr.mxu0 0.0
          %5315 = vmatpush1.msra.mxu0 0.0
          %5316 = vmatprep.subr.mxu0 0.0
          %5317 = vmatpush1.msra.mxu0 0.0
          %5318 = vmatprep.subr.mxu0 0.0
          %5319 = vmatpush1.msra.mxu0 0.0
          %5320 = vmatprep.subr.mxu0 0.0
          %5321 = vmatpush1.msra.mxu0 0.0
          %5322 = vmatprep.subr.mxu0 0.0
          %5323 = vmatpush1.msra.mxu0 0.0
          %5324 = vmatprep.subr.mxu0 0.0
          %5325 = vmatpush1.msra.mxu0 0.0
          %5326 = vmatprep.subr.mxu0 0.0
          %5327 = vmatpush1.msra.mxu0 0.0
          %5328 = vmatprep.subr.mxu0 0.0
          %5329 = vmatpush1.msra.mxu0 0.0
          %5330 = vmatprep.subr.mxu0 0.0
          %5331 = vmatpush1.msra.mxu0 0.0
          %5332 = vmatprep.subr.mxu0 0.0
          %5333 = vmatpush1.msra.mxu0 0.0
          %5334 = vmatprep.subr.mxu0 0.0
          %5335 = vmatpush1.msra.mxu0 0.0
          %5336 = vmatprep.subr.mxu0 0.0
          %5337 = vmatpush1.msra.mxu0 0.0
          %5338 = vmatprep.subr.mxu0 0.0
          %5339 = vmatpush1.msra.mxu0 0.0
          %5340 = vmatprep.subr.mxu0 0.0
          %5341 = vmatpush1.msra.mxu0 0.0
          %5342 = vmatprep.subr.mxu0 0.0
          %5343 = vmatpush1.msra.mxu0 0.0
          %5344 = vmatprep.subr.mxu0 0.0
          %5345 = vmatpush1.msra.mxu0 0.0
          %5346 = vmatprep.subr.mxu0 0.0
          %5347 = vmatpush1.msra.mxu0 0.0
          %5348 = vmatprep.subr.mxu0 0.0
          %5349 = vmatpush1.msra.mxu0 0.0
          %5350 = vmatprep.subr.mxu0 0.0
          %5351 = vmatpush1.msra.mxu0 0.0
          %5352 = vmatprep.subr.mxu0 0.0
          %5353 = vmatpush1.msra.mxu0 0.0
          %5354 = vmatprep.subr.mxu0 0.0
          %5355 = vmatpush1.msra.mxu0 0.0
          %5356 = vmatprep.subr.mxu0 0.0
          %5357 = vmatpush1.msra.mxu0 0.0
          %5358 = vmatprep.mubr.f32.mxu0 0.0
          %5359 = vmatmul.mubr.f32.gmra.mrb[0].mxu0 %v5292
          %v5360 = vpop.f32.mrb[0].mxu0
          %v5361 = vadd.f32 0.0, %v5360
          %v5362 = vpop.f32.mrb[0].mxu0
          %5363 = vdwg.mxu0
          %v5365 = vsel %vm5290, %v5287, 0
          %5367 = vmatprep.subr.mxu0 0.0
          %5368 = vmatpush1.msra.mxu0 %v5140
          %5369 = vmatprep.subr.mxu0 0.0
          %5370 = vmatpush1.msra.mxu0 0.0
          %5371 = vmatprep.subr.mxu0 0.0
          %5372 = vmatpush1.msra.mxu0 0.0
          %5373 = vmatprep.subr.mxu0 0.0
          %5374 = vmatpush1.msra.mxu0 0.0
          %5375 = vmatprep.subr.mxu0 0.0
          %5376 = vmatpush1.msra.mxu0 0.0
          %5377 = vmatprep.subr.mxu0 0.0
          %5378 = vmatpush1.msra.mxu0 0.0
          %5379 = vmatprep.subr.mxu0 0.0
          %5380 = vmatpush1.msra.mxu0 0.0
          %5381 = vmatprep.subr.mxu0 0.0
          %5382 = vmatpush1.msra.mxu0 0.0
          %5383 = vmatprep.subr.mxu0 0.0
          %5384 = vmatpush1.msra.mxu0 0.0
          %5385 = vmatprep.subr.mxu0 0.0
          %5386 = vmatpush1.msra.mxu0 0.0
          %5387 = vmatprep.subr.mxu0 0.0
          %5388 = vmatpush1.msra.mxu0 0.0
          %5389 = vmatprep.subr.mxu0 0.0
          %5390 = vmatpush1.msra.mxu0 0.0
          %5391 = vmatprep.subr.mxu0 0.0
          %5392 = vmatpush1.msra.mxu0 0.0
          %5393 = vmatprep.subr.mxu0 0.0
          %5394 = vmatpush1.msra.mxu0 0.0
          %5395 = vmatprep.subr.mxu0 0.0
          %5396 = vmatpush1.msra.mxu0 0.0
          %5397 = vmatprep.subr.mxu0 0.0
          %5398 = vmatpush1.msra.mxu0 0.0
          %5399 = vmatprep.subr.mxu0 0.0
          %5400 = vmatpush1.msra.mxu0 0.0
          %5401 = vmatprep.subr.mxu0 0.0
          %5402 = vmatpush1.msra.mxu0 0.0
          %5403 = vmatprep.subr.mxu0 0.0
          %5404 = vmatpush1.msra.mxu0 0.0
          %5405 = vmatprep.subr.mxu0 0.0
          %5406 = vmatpush1.msra.mxu0 0.0
          %5407 = vmatprep.subr.mxu0 0.0
          %5408 = vmatpush1.msra.mxu0 0.0
          %5409 = vmatprep.subr.mxu0 0.0
          %5410 = vmatpush1.msra.mxu0 0.0
          %5411 = vmatprep.subr.mxu0 0.0
          %5412 = vmatpush1.msra.mxu0 0.0
          %5413 = vmatprep.subr.mxu0 0.0
          %5414 = vmatpush1.msra.mxu0 0.0
          %5415 = vmatprep.subr.mxu0 0.0
          %5416 = vmatpush1.msra.mxu0 0.0
          %5417 = vmatprep.subr.mxu0 0.0
          %5418 = vmatpush1.msra.mxu0 0.0
          %5419 = vmatprep.subr.mxu0 0.0
          %5420 = vmatpush1.msra.mxu0 0.0
          %5421 = vmatprep.subr.mxu0 0.0
          %5422 = vmatpush1.msra.mxu0 0.0
          %5423 = vmatprep.subr.mxu0 0.0
          %5424 = vmatpush1.msra.mxu0 0.0
          %5425 = vmatprep.subr.mxu0 0.0
          %5426 = vmatpush1.msra.mxu0 0.0
          %5427 = vmatprep.subr.mxu0 0.0
          %5428 = vmatpush1.msra.mxu0 0.0
          %5429 = vmatprep.subr.mxu0 0.0
          %5430 = vmatpush1.msra.mxu0 0.0
          %5431 = vmatprep.mubr.f32.mxu0 0.0
          %5432 = vmatmul.mubr.f32.gmra.mrb[0].mxu0 %v5365
          %v5433 = vpop.f32.mrb[0].mxu0
          %v5434 = vadd.f32 0.0, %v5433
          %v5435 = vpop.f32.mrb[0].mxu0
          %5436 = vdwg.mxu0
          %5439 = vrot.lane.b32.xlu0 %v5139, 96
          %v5440 = vpop.permute.xlu0 %5439
          %5441 = vrot.lane.b32.xlu0 %v5140, 96
          %v5442 = vpop.permute.xlu0 %5441
          %vm5445 = vcmask 1048320
          %5446 = vst.msk [vmem:[#allocation14] sm:$0xff] %vm5445, %v5440
          %5447 = vst.msk [vmem:[#allocation14 + $0x10] sm:$0xff] %vm5445, %v5442
          %5448 = vst.msk [vmem:[#allocation14 + $0x8] sm:$0xff] %vm4218, %v5361
          %5449 = vst.msk [vmem:[#allocation14 + $0x18] sm:$0xff] %vm4218, %v5434
        $region96: #{tpu_custom_call.1} parent=55 // pred_fallthru
          _
        // Predicated region
        $region97: #{tpu_custom_call.1} parent=55 // pred_check
          %p5450 = pneg %p241
        $region98: #{tpu_custom_call.1} parent=55 // pred_check_branch
          %5452 = sbr.rel (%p5450) target = $region100
        $region99: #{tpu_custom_call.1} parent=55 // pred_region
          %s5454 = ssub.s32 512, 512
          %5455 = vsyncadd [#allocation5], %s5454
          %s5456 = sshll.u32 [#allocation14], 4
          %s5457 = int_to_ptr.vmem [resolvable:$true] %s5456
          %5462 = dma.vmem_to_hbm [thread:$0]  %s5457, 512, %s9, [#allocation5], 256, 256, 16
        $region100: #{tpu_custom_call.1} parent=55 // pred_fallthru
          _
        // Predicated region
        $region101: #{tpu_custom_call.1} parent=55 // pred_check
          %p5463 = pneg %p241
        $region102: #{tpu_custom_call.1} parent=55 // pred_check_branch
          %5465 = sbr.rel (%p5463) target = $region104
        $region103: #{tpu_custom_call.1} parent=55 // pred_region
          %5466 = dma.done [#allocation5], 512
        $region104: #{tpu_custom_call.1} parent=55 // pred_fallthru
          _
      $region56: #{tpu_custom_call.1} parent=5 // pred_fallthru
        _
      %p5467 = scmp.le.s32.totalorder 2, %s19
      // Predicated region
      $region105: #{tpu_custom_call.1} parent=5 // pred_check
        %p5468 = pneg %p5467
      $region106: #{tpu_custom_call.1} parent=5 // pred_check_branch
        %5470 = sbr.rel (%p5468) target = $region108
      $region107: #{tpu_custom_call.1} parent=5 // pred_region
        %s5471 = ssub.s32 %s19, 2
      $region108: #{tpu_custom_call.1} parent=5 // pred_fallthru
        _
    $region6: #{tpu_custom_call.1} parent=1 // loop_footer
      %s23 = sadd.s32 1, %s19
    $region7: #{tpu_custom_call.1} parent=1 // loop_footer_branch
      %18 = sbr.rel target = $region3
    $region8: #{tpu_custom_call.1} parent=1 // loop_exit
      _
    %5472 = vsyncpa [#allocation4], 1
    %s5473 = scalar_lea.sflag [#allocation4], 1
    %5474 = vsyncpa %s5473, 1
    %5475 = vsyncpa [#allocation7], 1
    %5476 = vsyncpa [#allocation10], 1
    %5477 = vsyncpa [#allocation5], 1
    %s5478 = scalar_lea.sflag [#allocation5], 1
    %5479 = vsyncpa %s5478, 1

</llo_original>
